<compile_context>
chip_gen: v6e
topology: v6e:2x2x1
jax: 0.10.0
libtpu: 0.0.40
codegen_flags: <defaults>
</compile_context>

<pallas_src>
import functools
import math

import jax
import jax.numpy as jnp
from jax import lax
from jax.experimental import pallas as pl
from jax.experimental.pallas import tpu as pltpu


# ------------------------------------------------------------------ helpers
def _vmem_limit(est_bytes):
    # Raise the scoped-VMEM limit toward what we need (v6e default is 32 MiB
    # of 128 MiB physical); clamp to 64 MiB so it also fits one v7x TC.
    return int(min(max(2 * est_bytes, 32 << 20), 64 << 20))


def _pick_time_chunk(T, B, D, *, act_itemsize=2, budget_bytes=8 << 20, cap=16):
    """VMEM-budget-driven chunk: per grid step we hold double-buffered x / y
    chunks plus an f32 (Tc*B, 4D) gate slab.  cap keeps the fully-static
    unrolled step loop from bloating the instruction footprint."""
    def step_bytes(tc):
        x_b = 2 * 2 * tc * B * D * act_itemsize       # <=2 slabs, dbl-buffered
        y_b = 2 * tc * B * D * act_itemsize
        gx_b = tc * B * 4 * D * 4
        return x_b + y_b + gx_b

    tc = 1
    for cand in range(1, max(1, min(T, cap)) + 1):
        if step_bytes(cand) <= budget_bytes:
            tc = cand
    return tc


# ----------------------------------------------------------------------------
# Kernel 1: multi-slab matmul + bias (final Linear(2*dim -> dim))
#   inp: (S, N, Dk)   w: (G, S, Dk, Dout)   b: (G, 1, Dout)  ->  out: (G, N, Dout)
#   out[g] = sum_s inp[s] @ w[g, s] + b[g]   (consumes direction-major slabs;
#   no (T, B, 2D) concat is ever materialized in HBM)
# ----------------------------------------------------------------------------
def _proj_kernel(inp_ref, w_ref, b_ref, out_ref):
    acc = b_ref[...].astype(jnp.float32)                       # (1, Dout)
    for s in range(inp_ref.shape[0]):                          # S small/static
        acc = acc + jnp.dot(inp_ref[s], w_ref[s],
                            preferred_element_type=jnp.float32)
    out_ref[...] = acc.astype(out_ref.dtype)


def multi_slab_matmul(inp, w, b, *, out_dtype=jnp.float32, row_tile=512):
    S, N, Dk = inp.shape
    G, S2, Dk2, Dout = w.shape
    assert S == S2 and Dk == Dk2 and b.shape == (G, 1, Dout)
    if N <= row_tile:
        tm = N
    else:                              # largest divisor <= row_tile (keeps
        tm = 1                         # blocks exact; pad rows in production)
        for c in range(1, row_tile + 1):
            if N % c == 0:
                tm = c
    n_rows = N // tm
    isz = jnp.dtype(inp.dtype).itemsize
    est = 2 * (S * tm * Dk + tm * Dout) * isz + 2 * S * Dk * Dout * isz
    return pl.pallas_call(
        _proj_kernel,
        out_shape=jax.ShapeDtypeStruct((G, N, Dout), out_dtype),
        grid_spec=pltpu.PrefetchScalarGridSpec(
            num_scalar_prefetch=0,
            grid=(G, n_rows),
            in_specs=[
                pl.BlockSpec((S, tm, Dk), lambda g, r: (0, r, 0)),
                pl.BlockSpec((None, S, Dk, Dout), lambda g, r: (g, 0, 0, 0)),
                pl.BlockSpec((None, 1, Dout), lambda g, r: (g, 0, 0)),
            ],
            out_specs=pl.BlockSpec((None, tm, Dout), lambda g, r: (g, r, 0)),
        ),
        compiler_params=pltpu.CompilerParams(
            dimension_semantics=("parallel", "parallel"),
            vmem_limit_bytes=_vmem_limit(est)),
    )(inp, w, b)


# ----------------------------------------------------------------------------
# Kernel 2: fused bidirectional LSTM layer (input projection fused per chunk)
#   slabs: (S, T_pad*B, Din)     -- direction-major input slabs, row = t*B + b
#   w_ih : (2, S, Din, 4D)       -- resident per direction
#   b    : (2, 1, 4D) f32        -- b_ih + b_hh, folded
#   w_hh : (2, D, 4D)            -- resident per direction
# Outputs: y (2, T_pad*B, D), h_n (2, B, D) f32, c_n (2, B, D) f32
# grid = (direction ["parallel"], time_chunks ["arbitrary"]); backward time
# reversal is done via the index_map + a reversed static step order.
# ----------------------------------------------------------------------------
def _blstm_layer_kernel(x_ref, wih_ref, b_ref, whh_ref, y_ref, hn_ref, cn_ref,
                        *, time_chunk, batch, T_actual, nchunks, needs_mask):
    d = pl.program_id(0)
    c_idx = pl.program_id(1)
    D = hn_ref.shape[-1]
    B = batch
    Tc = time_chunk
    S = x_ref.shape[0]

    @pl.when(c_idx == 0)
    def _():
        # h_n / c_n output blocks double as the VMEM-resident recurrent state
        # (requires time = innermost "arbitrary" grid axis; do not reorder).
        hn_ref[...] = jnp.zeros_like(hn_ref)
        cn_ref[...] = jnp.zeros_like(cn_ref)

    # Fused, hoisted-per-chunk input projection: one (Tc*B, Din)@(Din, 4D)
    # MXU matmul per input slab, bias folded in.  Gates stay f32; the big f32
    # gx tensor never leaves VMEM.
    gxc = b_ref[...].astype(jnp.float32)                       # (1, 4D)
    for s in range(S):
        gxc = gxc + jnp.dot(x_ref[s], wih_ref[s],
                            preferred_element_type=jnp.float32)  # (Tc*B, 4D)

    w_hh = whh_ref[...]                     # (D, 4D), MXU dtype (bf16 or f32)

    def run(reverse):
        h = hn_ref[...]                     # f32 (B, D)
        c_st = cn_ref[...]
        steps = range(Tc - 1, -1, -1) if reverse else range(Tc)
        block_t = (nchunks - 1 - c_idx) if reverse else c_idx
        for l in steps:                     # static unroll -> static row slices
            r0 = l * B
            gates = gxc[r0:r0 + B, :] + jnp.dot(
                h.astype(w_hh.dtype), w_hh, preferred_element_type=jnp.float32)
            # gate columns are [i | f | o | g]: one contiguous sigmoid slab.
            sig = jax.nn.sigmoid(gates[:, :3 * D])
            i_g = sig[:, 0:D]
            f_g = sig[:, D:2 * D]
            o_g = sig[:, 2 * D:3 * D]
            g_g = jnp.tanh(gates[:, 3 * D:])
            c_new = f_g * c_st + i_g * g_g              # cell state stays f32
            h_new = o_g * jnp.tanh(c_new)
            if needs_mask:                  # padded-T tail: freeze state, zero y
                valid = (block_t * Tc + l) < T_actual
                y_ref[r0:r0 + B, :] = jnp.where(valid, h_new,
                                                0.0).astype(y_ref.dtype)
                h = jnp.where(valid, h_new, h)
                c_st = jnp.where(valid, c_new, c_st)
            else:
                y_ref[r0:r0 + B, :] = h_new.astype(y_ref.dtype)
                h, c_st = h_new, c_new
        hn_ref[...] = h
        cn_ref[...] = c_st

    @pl.when(d == 0)
    def _():
        run(reverse=False)

    @pl.when(d == 1)
    def _():
        run(reverse=True)


def blstm_layer(slabs, w_ih, b, w_hh, *, T_actual, time_chunk, batch, out_dtype):
    S, NB, Din = slabs.shape
    two, S2, Din2, G4 = w_ih.shape
    assert two == 2 and S == S2 and Din == Din2
    D = w_hh.shape[1]
    assert G4 == 4 * D and w_hh.shape == (2, D, 4 * D) and b.shape == (2, 1, 4 * D)
    B = batch
    T_pad = NB // B
    assert T_pad * B == NB and T_pad % time_chunk == 0
    nchunks = T_pad // time_chunk
    needs_mask = (T_actual != T_pad)

    kernel = functools.partial(_blstm_layer_kernel, time_chunk=time_chunk,
                               batch=B, T_actual=T_actual, nchunks=nchunks,
                               needs_mask=needs_mask)

    def t_of(d, c):
        # d == 0 -> c ; d == 1 -> nchunks - 1 - c  (in-index-map time reversal)
        return c + d * (nchunks - 1 - 2 * c)

    rows_map = lambda d, c: (0, t_of(d, c), 0)
    y_map = lambda d, c: (d, t_of(d, c), 0)
    dir3 = lambda d, c: (d, 0, 0)
    dir4 = lambda d, c: (d, 0, 0, 0)

    isz = jnp.dtype(slabs.dtype).itemsize
    rows = time_chunk * B
    est = (2 * S * rows * Din * isz + 2 * rows * D * isz           # x, y chunks
           + 2 * (S * Din * 4 * D + D * 4 * D) * isz               # weights
           + rows * 4 * D * 4 + 4 * B * D * 4 + 2 * 4 * D * 4)     # gx, state, b

    return pl.pallas_call(
        kernel,
        out_shape=(jax.ShapeDtypeStruct((2, NB, D), out_dtype),
                   jax.ShapeDtypeStruct((2, B, D), jnp.float32),
                   jax.ShapeDtypeStruct((2, B, D), jnp.float32)),
        grid_spec=pltpu.PrefetchScalarGridSpec(
            num_scalar_prefetch=0,
            grid=(2, nchunks),
            in_specs=[
                pl.BlockSpec((S, rows, Din), rows_map),
                pl.BlockSpec((None, S, Din, 4 * D), dir4),   # resident per dir
                pl.BlockSpec((None, 1, 4 * D), dir3),
                pl.BlockSpec((None, D, 4 * D), dir3),        # resident per dir
            ],
            out_specs=[
                pl.BlockSpec((None, rows, D), y_map),
                pl.BlockSpec((None, B, D), dir3),            # revisited => state
                pl.BlockSpec((None, B, D), dir3),
            ],
        ),
        compiler_params=pltpu.CompilerParams(
            dimension_semantics=("parallel", "arbitrary"),   # dirs || , time seq
            vmem_limit_bytes=_vmem_limit(est)),
    )(slabs, w_ih, b, w_hh)


# ----------------------------------------------------------------------------
# Full BLSTM forward
# ----------------------------------------------------------------------------
def blstm_forward(x, params, dim, layers=2, time_chunk=None,
                  mxu_dtype=jnp.bfloat16):
    """Pallas BLSTM forward.  x: (T, B, dim) -> (y, (h_n, c_n))."""
    # TODO(synk): optional initial hidden state (the `hidden` arg of the
    # PyTorch forward) is not plumbed through; zero-init is used (the default).
    T, B, D = x.shape
    assert D == dim
    act_isz = jnp.dtype(mxu_dtype).itemsize
    if time_chunk is None:
        time_chunk = _pick_time_chunk(T, B, dim, act_itemsize=act_isz)
    T_pad = -(-T // time_chunk) * time_chunk
    if T_pad != T:                       # pad awkward T; kernel masks the tail
        x = jnp.concatenate(
            [x, jnp.zeros((T_pad - T, B, dim), x.dtype)], axis=0)

    slabs = x.reshape(1, T_pad * B, dim).astype(mxu_dtype)   # layer-0 slab
    h_list, c_list = [], []
    for l in range(layers):
        p = params["lstm"][l]
        y, h_n, c_n = blstm_layer(
            slabs, p["w_ih"].astype(mxu_dtype), p["b"],
            p["w_hh"].astype(mxu_dtype),
            T_actual=T, time_chunk=time_chunk, batch=B, out_dtype=mxu_dtype)
        h_list.append(h_n)
        c_list.append(c_n)
        slabs = y                        # direction-major slabs; no concat

    lin_in = slabs if T_pad == T else slabs[:, :T * B, :]
    out = multi_slab_matmul(lin_in, params["lin_w"].astype(mxu_dtype),
                            params["lin_b"], out_dtype=jnp.float32)
    out = out[0].reshape(T, B, dim)
    h_n = jnp.concatenate(h_list, axis=0)   # (layers*2, B, D): [l0_f,l0_b,...]
    c_n = jnp.concatenate(c_list, axis=0)
    return out, (h_n, c_n)


# ----------------------------------------------------------------------------
# Pure-JAX reference (same decomposition & [i,f,o,g] gate layout;
# mxu_dtype=float32 => exact PyTorch math)
# ----------------------------------------------------------------------------
def blstm_forward_ref(x, params, dim, layers=2, mxu_dtype=jnp.bfloat16):
    T, B, _ = x.shape
    slabs = x.reshape(1, T * B, dim).astype(mxu_dtype)
    h_list, c_list = [], []
    for l in range(layers):
        p = params["lstm"][l]
        w_ih = p["w_ih"].astype(mxu_dtype)   # (2, S, dim, 4dim)
        w_hh = p["w_hh"].astype(mxu_dtype)   # (2, dim, 4dim)
        S = slabs.shape[0]
        ys = []
        for d in range(2):
            gx = p["b"][d].astype(jnp.float32)
            for s in range(S):
                gx = gx + jnp.dot(slabs[s], w_ih[d, s],
                                  preferred_element_type=jnp.float32)
            gx = gx.reshape(T, B, 4 * dim)
            g_seq = gx if d == 0 else gx[::-1]

            def step(carry, g_t, _d=d):
                h, c = carry
                gates = g_t + jnp.dot(h.astype(mxu_dtype), w_hh[_d],
                                      preferred_element_type=jnp.float32)
                i_g, f_g, o_g, g_g = jnp.split(gates, 4, axis=-1)
                i_g = jax.nn.sigmoid(i_g)
                f_g = jax.nn.sigmoid(f_g)
                o_g = jax.nn.sigmoid(o_g)
                g_g = jnp.tanh(g_g)
                c = f_g * c + i_g * g_g
                h = o_g * jnp.tanh(c)
                return (h, c), h

            init = (jnp.zeros((B, dim), jnp.float32),
                    jnp.zeros((B, dim), jnp.float32))
            (h_f, c_f), y = lax.scan(step, init, g_seq)
            if d == 1:
                y = y[::-1]
            ys.append(y.astype(mxu_dtype))
            h_list.append(h_f)
            c_list.append(c_f)
        slabs = jnp.stack(ys, 0).reshape(2, T * B, dim)

    lin_w = params["lin_w"].astype(mxu_dtype)
    out = params["lin_b"][0].astype(jnp.float32)
    for s in range(2):
        out = out + jnp.dot(slabs[s], lin_w[0, s],
                            preferred_element_type=jnp.float32)
    out = out.reshape(T, B, dim)
    return out, (jnp.stack(h_list, 0), jnp.stack(c_list, 0))


# ----------------------------------------------------------------------------
# Deterministic parameter init (PyTorch-style uniform(-1/sqrt(D), 1/sqrt(D))).
# Gate columns are laid out as [i | f | o | g]; biases are pre-folded
# (b = b_ih + b_hh).  Porting a real PyTorch checkpoint must permute PyTorch's
# [i, f, g, o] rows to this order and fold the biases.
# ----------------------------------------------------------------------------
def init_params(key, dim, layers=2):
    k = 1.0 / math.sqrt(dim)

    def unif(key, shape, bound):
        return jax.random.uniform(key, shape, jnp.float32, -bound, bound)

    params = {"lstm": []}
    for l in range(layers):
        S = 1 if l == 0 else 2          # input slabs: x for l0, (y_f, y_b) after
        keys = jax.random.split(jax.random.fold_in(key, l), 8)
        w_ih = jnp.stack([unif(keys[d], (S * dim, 4 * dim), k)
                          .reshape(S, dim, 4 * dim) for d in range(2)], 0)
        w_hh = jnp.stack([unif(keys[2 + d], (dim, 4 * dim), k)
                          for d in range(2)], 0)
        b = jnp.stack([unif(keys[4 + d], (1, 4 * dim), k)
                       + unif(keys[6 + d], (1, 4 * dim), k)
                       for d in range(2)], 0)          # b_ih + b_hh, per dir
        params["lstm"].append({"w_ih": w_ih, "w_hh": w_hh, "b": b})

    klin = 1.0 / math.sqrt(2 * dim)
    k1, k2 = jax.random.split(jax.random.fold_in(key, 999))
    params["lin_w"] = unif(k1, (2 * dim, dim), klin).reshape(1, 2, dim, dim)
    params["lin_b"] = unif(k2, (1, 1, dim), klin)
    return params


# ----------------------------------------------------------------------------
if __name__ == "__main__":
    dim, layers = 32, 2
    T, B = 8, 2

    key = jax.random.PRNGKey(0)
    kx, kp = jax.random.split(key)
    x = jax.random.normal(kx, (T, B, dim), jnp.float32)
    params = init_params(kp, dim, layers)

    # default path: bf16-fed MXU, f32 gates/state; 2 time chunks of 4 steps
    fwd = jax.jit(lambda x, p: blstm_forward(x, p, dim, layers, time_chunk=4))
    out, (h_n, c_n) = fwd(x, params)
    out = jax.block_until_ready(out)
    h_n = jax.block_until_ready(h_n)
    c_n = jax.block_until_ready(c_n)

    assert out.shape == (T, B, dim)
    assert h_n.shape == (layers * 2, B, dim) and c_n.shape == (layers * 2, B, dim)

    # cast-matched bf16 reference
    out_r, (h_r, c_r) = blstm_forward_ref(x, params, dim, layers,
                                          mxu_dtype=jnp.bfloat16)
    assert jnp.allclose(out, out_r, atol=1e-2, rtol=1e-2)
    assert jnp.allclose(h_n, h_r, atol=1e-2, rtol=1e-2)
    assert jnp.allclose(c_n, c_r, atol=1e-2, rtol=1e-2)

    # strict check of the kernel math in pure f32 vs PyTorch-equivalent reference
    fwd32 = jax.jit(lambda x, p: blstm_forward(x, p, dim, layers, time_chunk=4,
                                               mxu_dtype=jnp.float32))
    out32, (h32, c32) = fwd32(x, params)
    out32 = jax.block_until_ready(out32)
    out_f, (h_f, c_f) = blstm_forward_ref(x, params, dim, layers,
                                          mxu_dtype=jnp.float32)
    assert jnp.allclose(out32, out_f, atol=5e-4, rtol=5e-4)
    assert jnp.allclose(h32, h_f, atol=5e-4, rtol=5e-4)
    assert jnp.allclose(c32, c_f, atol=5e-4, rtol=5e-4)

    # padded / masked-tail path: T=6 with time_chunk=4 -> T_pad=8 (f32, strict)
    x6 = x[:6]
    out6, (h6, c6) = jax.jit(
        lambda x, p: blstm_forward(x, p, dim, layers, time_chunk=4,
                                   mxu_dtype=jnp.float32))(x6, params)
    out6 = jax.block_until_ready(out6)
    out6_r, (h6_r, c6_r) = blstm_forward_ref(x6, params, dim, layers,
                                             mxu_dtype=jnp.float32)
    assert out6.shape == (6, B, dim)
    assert jnp.allclose(out6, out6_r, atol=5e-4, rtol=5e-4)
    assert jnp.allclose(h6, h6_r, atol=5e-4, rtol=5e-4)
    assert jnp.allclose(c6, c6_r, atol=5e-4, rtol=5e-4)

    print("KERNEL_OK")
</pallas_src>

<mosaic_0001>
module attributes {stable_mosaic.version = 11 : i64} {
  func.func @_blstm_layer_kernel(%arg0: i32, %arg1: i32, %arg2: memref<1x8x32xbf16, #tpu.memory_space<vmem>>, %arg3: memref<1x1x32x128xbf16, #tpu.memory_space<vmem>>, %arg4: memref<1x1x128xf32, #tpu.memory_space<vmem>>, %arg5: memref<1x32x128xbf16, #tpu.memory_space<vmem>>, %arg6: memref<1x8x32xbf16, #tpu.memory_space<vmem>>, %arg7: memref<1x2x32xf32, #tpu.memory_space<vmem>>, %arg8: memref<1x2x32xf32, #tpu.memory_space<vmem>>) attributes {dimension_semantics = [#tpu.dimension_semantics<parallel>, #tpu.dimension_semantics<arbitrary>], iteration_bounds = array<i64: 2, 2>, scalar_prefetch = 0 : i64, scratch_operands = 0 : i64, tpu.core_type = #tpu.core_type<tc>, window_params = [{transform_indices = @transform_0, window_bounds = array<i64: 1, 8, 32>}, {transform_indices = @transform_1, window_bounds = array<i64: 1, 1, 32, 128>}, {transform_indices = @transform_2, window_bounds = array<i64: 1, 1, 128>}, {transform_indices = @transform_3, window_bounds = array<i64: 1, 32, 128>}, {transform_indices = @transform_4, window_bounds = array<i64: 1, 8, 32>}, {transform_indices = @transform_5, window_bounds = array<i64: 1, 2, 32>}, {transform_indices = @transform_6, window_bounds = array<i64: 1, 2, 32>}]} {
    %c0_i32 = arith.constant 0 : i32
    %0 = arith.cmpi eq, %arg1, %c0_i32 : i32
    %1 = arith.extui %0 : i1 to i32
    %c0_i32_0 = arith.constant 0 : i32
    %2 = arith.cmpi ne, %1, %c0_i32_0 : i32
    scf.if %2 {
      %cst_16 = arith.constant 0.000000e+00 : f32
      %20 = vector.broadcast %cst_16 : f32 to vector<2x32xf32>
      %c0_17 = arith.constant 0 : index
      %c0_18 = arith.constant 0 : index
      %c0_19 = arith.constant 0 : index
      %21 = vector.load %arg7[%c0_17, %c0_18, %c0_19] : memref<1x2x32xf32, #tpu.memory_space<vmem>>, vector<1x2x32xf32>
      %22 = vector.shape_cast %21 : vector<1x2x32xf32> to vector<2x32xf32>
      %23 = vector.shape_cast %20 : vector<2x32xf32> to vector<1x2x32xf32>
      tpu.vector_store %arg7[%c0_17, %c0_18, %c0_19], %23 {strides = array<i32>} : memref<1x2x32xf32, #tpu.memory_space<vmem>>, vector<1x2x32xf32>,
      %cst_20 = arith.constant 0.000000e+00 : f32
      %24 = vector.broadcast %cst_20 : f32 to vector<2x32xf32>
      %c0_21 = arith.constant 0 : index
      %c0_22 = arith.constant 0 : index
      %c0_23 = arith.constant 0 : index
      %25 = vector.load %arg8[%c0_21, %c0_22, %c0_23] : memref<1x2x32xf32, #tpu.memory_space<vmem>>, vector<1x2x32xf32>
      %26 = vector.shape_cast %25 : vector<1x2x32xf32> to vector<2x32xf32>
      %27 = vector.shape_cast %24 : vector<2x32xf32> to vector<1x2x32xf32>
      tpu.vector_store %arg8[%c0_21, %c0_22, %c0_23], %27 {strides = array<i32>} : memref<1x2x32xf32, #tpu.memory_space<vmem>>, vector<1x2x32xf32>,
    } else {
    }
    %c0 = arith.constant 0 : index
    %c0_1 = arith.constant 0 : index
    %c0_2 = arith.constant 0 : index
    %3 = vector.load %arg4[%c0, %c0_1, %c0_2] : memref<1x1x128xf32, #tpu.memory_space<vmem>>, vector<1x1x128xf32>
    %4 = vector.shape_cast %3 : vector<1x1x128xf32> to vector<1x128xf32>
    %c0_3 = arith.constant 0 : index
    %c0_4 = arith.constant 0 : index
    %c0_5 = arith.constant 0 : index
    %5 = vector.load %arg2[%c0_3, %c0_4, %c0_5] : memref<1x8x32xbf16, #tpu.memory_space<vmem>>, vector<1x8x32xbf16>
    %6 = vector.shape_cast %5 : vector<1x8x32xbf16> to vector<8x32xbf16>
    %c0_6 = arith.constant 0 : index
    %c0_7 = arith.constant 0 : index
    %c0_8 = arith.constant 0 : index
    %c0_9 = arith.constant 0 : index
    %7 = vector.load %arg3[%c0_6, %c0_7, %c0_8, %c0_9] : memref<1x1x32x128xbf16, #tpu.memory_space<vmem>>, vector<1x1x32x128xbf16>
    %8 = vector.shape_cast %7 : vector<1x1x32x128xbf16> to vector<32x128xbf16>
    %cst = arith.constant dense<0.000000e+00> : vector<8x128xf32>
    %9 = tpu.matmul %6, %8, %cst {dimension_numbers = #tpu.dot_dimension_numbers<[1], [0], [0], [1], [0, 0, 1, 1], [], []>} : vector<8x32xbf16>, vector<32x128xbf16>, vector<8x128xf32> -> vector<8x128xf32>
    %10 = vector.broadcast %4 : vector<1x128xf32> to vector<8x128xf32>
    %11 = arith.addf %10, %9 : vector<8x128xf32>
    %c0_10 = arith.constant 0 : index
    %c0_11 = arith.constant 0 : index
    %c0_12 = arith.constant 0 : index
    %12 = vector.load %arg5[%c0_10, %c0_11, %c0_12] : memref<1x32x128xbf16, #tpu.memory_space<vmem>>, vector<1x32x128xbf16>
    %13 = vector.shape_cast %12 : vector<1x32x128xbf16> to vector<32x128xbf16>
    %c0_i32_13 = arith.constant 0 : i32
    %14 = arith.cmpi eq, %arg0, %c0_i32_13 : i32
    %15 = arith.extui %14 : i1 to i32
    %c0_i32_14 = arith.constant 0 : i32
    %16 = arith.cmpi ne, %15, %c0_i32_14 : i32
    scf.if %16 {
      %c0_16 = arith.constant 0 : index
      %c0_17 = arith.constant 0 : index
      %c0_18 = arith.constant 0 : index
      %20 = vector.load %arg7[%c0_16, %c0_17, %c0_18] : memref<1x2x32xf32, #tpu.memory_space<vmem>>, vector<1x2x32xf32>
      %21 = vector.shape_cast %20 : vector<1x2x32xf32> to vector<2x32xf32>
      %c0_19 = arith.constant 0 : index
      %c0_20 = arith.constant 0 : index
      %c0_21 = arith.constant 0 : index
      %22 = vector.load %arg8[%c0_19, %c0_20, %c0_21] : memref<1x2x32xf32, #tpu.memory_space<vmem>>, vector<1x2x32xf32>
      %23 = vector.shape_cast %22 : vector<1x2x32xf32> to vector<2x32xf32>
      %24 = vector.extract_strided_slice %11 {offsets = [0, 0], sizes = [2, 128], strides = [1, 1]} : vector<8x128xf32> to vector<2x128xf32>
      %25 = arith.truncf %21 : vector<2x32xf32> to vector<2x32xbf16>
      %cst_22 = arith.constant dense<0.000000e+00> : vector<2x128xf32>
      %26 = tpu.matmul %25, %13, %cst_22 {dimension_numbers = #tpu.dot_dimension_numbers<[1], [0], [0], [1], [0, 0, 1, 1], [], []>} : vector<2x32xbf16>, vector<32x128xbf16>, vector<2x128xf32> -> vector<2x128xf32>
      %27 = arith.addf %24, %26 : vector<2x128xf32>
      %28 = vector.extract_strided_slice %27 {offsets = [0, 0], sizes = [2, 96], strides = [1, 1]} : vector<2x128xf32> to vector<2x96xf32>
      %29 = arith.negf %28 : vector<2x96xf32>
      %30 = math.exp %29 : vector<2x96xf32>
      %cst_23 = arith.constant 1.000000e+00 : f32
      %31 = vector.broadcast %cst_23 : f32 to vector<2x96xf32>
      %32 = arith.addf %31, %30 : vector<2x96xf32>
      %33 = arith.divf %31, %32 : vector<2x96xf32>
      %34 = vector.extract_strided_slice %33 {offsets = [0, 0], sizes = [2, 32], strides = [1, 1]} : vector<2x96xf32> to vector<2x32xf32>
      %35 = vector.extract_strided_slice %33 {offsets = [0, 32], sizes = [2, 32], strides = [1, 1]} : vector<2x96xf32> to vector<2x32xf32>
      %36 = vector.extract_strided_slice %33 {offsets = [0, 64], sizes = [2, 32], strides = [1, 1]} : vector<2x96xf32> to vector<2x32xf32>
      %37 = vector.extract_strided_slice %27 {offsets = [0, 96], sizes = [2, 32], strides = [1, 1]} : vector<2x128xf32> to vector<2x32xf32>
      %38 = math.tanh %37 : vector<2x32xf32>
      %39 = arith.mulf %35, %23 : vector<2x32xf32>
      %40 = arith.mulf %34, %38 : vector<2x32xf32>
      %41 = arith.addf %39, %40 : vector<2x32xf32>
      %42 = math.tanh %41 : vector<2x32xf32>
      %43 = arith.mulf %36, %42 : vector<2x32xf32>
      %44 = arith.truncf %43 : vector<2x32xf32> to vector<2x32xbf16>
      %c0_24 = arith.constant 0 : index
      %c0_25 = arith.constant 0 : index
      %c0_26 = arith.constant 0 : index
      %45 = vector.load %arg6[%c0_24, %c0_25, %c0_26] : memref<1x8x32xbf16, #tpu.memory_space<vmem>>, vector<1x2x32xbf16>
      %46 = vector.shape_cast %45 : vector<1x2x32xbf16> to vector<2x32xbf16>
      %47 = vector.shape_cast %44 : vector<2x32xbf16> to vector<1x2x32xbf16>
      tpu.vector_store %arg6[%c0_24, %c0_25, %c0_26], %47 {strides = array<i32>} : memref<1x8x32xbf16, #tpu.memory_space<vmem>>, vector<1x2x32xbf16>,
      %48 = vector.extract_strided_slice %11 {offsets = [2, 0], sizes = [2, 128], strides = [1, 1]} : vector<8x128xf32> to vector<2x128xf32>
      %49 = arith.truncf %43 : vector<2x32xf32> to vector<2x32xbf16>
      %cst_27 = arith.constant dense<0.000000e+00> : vector<2x128xf32>
      %50 = tpu.matmul %49, %13, %cst_27 {dimension_numbers = #tpu.dot_dimension_numbers<[1], [0], [0], [1], [0, 0, 1, 1], [], []>} : vector<2x32xbf16>, vector<32x128xbf16>, vector<2x128xf32> -> vector<2x128xf32>
      %51 = arith.addf %48, %50 : vector<2x128xf32>
      %52 = vector.extract_strided_slice %51 {offsets = [0, 0], sizes = [2, 96], strides = [1, 1]} : vector<2x128xf32> to vector<2x96xf32>
      %53 = arith.negf %52 : vector<2x96xf32>
      %54 = math.exp %53 : vector<2x96xf32>
      %cst_28 = arith.constant 1.000000e+00 : f32
      %55 = vector.broadcast %cst_28 : f32 to vector<2x96xf32>
      %56 = arith.addf %55, %54 : vector<2x96xf32>
      %57 = arith.divf %55, %56 : vector<2x96xf32>
      %58 = vector.extract_strided_slice %57 {offsets = [0, 0], sizes = [2, 32], strides = [1, 1]} : vector<2x96xf32> to vector<2x32xf32>
      %59 = vector.extract_strided_slice %57 {offsets = [0, 32], sizes = [2, 32], strides = [1, 1]} : vector<2x96xf32> to vector<2x32xf32>
      %60 = vector.extract_strided_slice %57 {offsets = [0, 64], sizes = [2, 32], strides = [1, 1]} : vector<2x96xf32> to vector<2x32xf32>
      %61 = vector.extract_strided_slice %51 {offsets = [0, 96], sizes = [2, 32], strides = [1, 1]} : vector<2x128xf32> to vector<2x32xf32>
      %62 = math.tanh %61 : vector<2x32xf32>
      %63 = arith.mulf %59, %41 : vector<2x32xf32>
      %64 = arith.mulf %58, %62 : vector<2x32xf32>
      %65 = arith.addf %63, %64 : vector<2x32xf32>
      %66 = math.tanh %65 : vector<2x32xf32>
      %67 = arith.mulf %60, %66 : vector<2x32xf32>
      %68 = arith.truncf %67 : vector<2x32xf32> to vector<2x32xbf16>
      %c0_29 = arith.constant 0 : index
      %c2 = arith.constant 2 : index
      %c0_30 = arith.constant 0 : index
      %69 = vector.load %arg6[%c0_29, %c2, %c0_30] : memref<1x8x32xbf16, #tpu.memory_space<vmem>>, vector<1x2x32xbf16>
      %70 = vector.shape_cast %69 : vector<1x2x32xbf16> to vector<2x32xbf16>
      %71 = vector.shape_cast %68 : vector<2x32xbf16> to vector<1x2x32xbf16>
      tpu.vector_store %arg6[%c0_29, %c2, %c0_30], %71 {strides = array<i32>} : memref<1x8x32xbf16, #tpu.memory_space<vmem>>, vector<1x2x32xbf16>,
      %72 = vector.extract_strided_slice %11 {offsets = [4, 0], sizes = [2, 128], strides = [1, 1]} : vector<8x128xf32> to vector<2x128xf32>
      %73 = arith.truncf %67 : vector<2x32xf32> to vector<2x32xbf16>
      %cst_31 = arith.constant dense<0.000000e+00> : vector<2x128xf32>
      %74 = tpu.matmul %73, %13, %cst_31 {dimension_numbers = #tpu.dot_dimension_numbers<[1], [0], [0], [1], [0, 0, 1, 1], [], []>} : vector<2x32xbf16>, vector<32x128xbf16>, vector<2x128xf32> -> vector<2x128xf32>
      %75 = arith.addf %72, %74 : vector<2x128xf32>
      %76 = vector.extract_strided_slice %75 {offsets = [0, 0], sizes = [2, 96], strides = [1, 1]} : vector<2x128xf32> to vector<2x96xf32>
      %77 = arith.negf %76 : vector<2x96xf32>
      %78 = math.exp %77 : vector<2x96xf32>
      %cst_32 = arith.constant 1.000000e+00 : f32
      %79 = vector.broadcast %cst_32 : f32 to vector<2x96xf32>
      %80 = arith.addf %79, %78 : vector<2x96xf32>
      %81 = arith.divf %79, %80 : vector<2x96xf32>
      %82 = vector.extract_strided_slice %81 {offsets = [0, 0], sizes = [2, 32], strides = [1, 1]} : vector<2x96xf32> to vector<2x32xf32>
      %83 = vector.extract_strided_slice %81 {offsets = [0, 32], sizes = [2, 32], strides = [1, 1]} : vector<2x96xf32> to vector<2x32xf32>
      %84 = vector.extract_strided_slice %81 {offsets = [0, 64], sizes = [2, 32], strides = [1, 1]} : vector<2x96xf32> to vector<2x32xf32>
      %85 = vector.extract_strided_slice %75 {offsets = [0, 96], sizes = [2, 32], strides = [1, 1]} : vector<2x128xf32> to vector<2x32xf32>
      %86 = math.tanh %85 : vector<2x32xf32>
      %87 = arith.mulf %83, %65 : vector<2x32xf32>
      %88 = arith.mulf %82, %86 : vector<2x32xf32>
      %89 = arith.addf %87, %88 : vector<2x32xf32>
      %90 = math.tanh %89 : vector<2x32xf32>
      %91 = arith.mulf %84, %90 : vector<2x32xf32>
      %92 = arith.truncf %91 : vector<2x32xf32> to vector<2x32xbf16>
      %c0_33 = arith.constant 0 : index
      %c4 = arith.constant 4 : index
      %c0_34 = arith.constant 0 : index
      %93 = vector.load %arg6[%c0_33, %c4, %c0_34] : memref<1x8x32xbf16, #tpu.memory_space<vmem>>, vector<1x2x32xbf16>
      %94 = vector.shape_cast %93 : vector<1x2x32xbf16> to vector<2x32xbf16>
      %95 = vector.shape_cast %92 : vector<2x32xbf16> to vector<1x2x32xbf16>
      tpu.vector_store %arg6[%c0_33, %c4, %c0_34], %95 {strides = array<i32>} : memref<1x8x32xbf16, #tpu.memory_space<vmem>>, vector<1x2x32xbf16>,
      %96 = vector.extract_strided_slice %11 {offsets = [6, 0], sizes = [2, 128], strides = [1, 1]} : vector<8x128xf32> to vector<2x128xf32>
      %97 = arith.truncf %91 : vector<2x32xf32> to vector<2x32xbf16>
      %cst_35 = arith.constant dense<0.000000e+00> : vector<2x128xf32>
      %98 = tpu.matmul %97, %13, %cst_35 {dimension_numbers = #tpu.dot_dimension_numbers<[1], [0], [0], [1], [0, 0, 1, 1], [], []>} : vector<2x32xbf16>, vector<32x128xbf16>, vector<2x128xf32> -> vector<2x128xf32>
      %99 = arith.addf %96, %98 : vector<2x128xf32>
      %100 = vector.extract_strided_slice %99 {offsets = [0, 0], sizes = [2, 96], strides = [1, 1]} : vector<2x128xf32> to vector<2x96xf32>
      %101 = arith.negf %100 : vector<2x96xf32>
      %102 = math.exp %101 : vector<2x96xf32>
      %cst_36 = arith.constant 1.000000e+00 : f32
      %103 = vector.broadcast %cst_36 : f32 to vector<2x96xf32>
      %104 = arith.addf %103, %102 : vector<2x96xf32>
      %105 = arith.divf %103, %104 : vector<2x96xf32>
      %106 = vector.extract_strided_slice %105 {offsets = [0, 0], sizes = [2, 32], strides = [1, 1]} : vector<2x96xf32> to vector<2x32xf32>
      %107 = vector.extract_strided_slice %105 {offsets = [0, 32], sizes = [2, 32], strides = [1, 1]} : vector<2x96xf32> to vector<2x32xf32>
      %108 = vector.extract_strided_slice %105 {offsets = [0, 64], sizes = [2, 32], strides = [1, 1]} : vector<2x96xf32> to vector<2x32xf32>
      %109 = vector.extract_strided_slice %99 {offsets = [0, 96], sizes = [2, 32], strides = [1, 1]} : vector<2x128xf32> to vector<2x32xf32>
      %110 = math.tanh %109 : vector<2x32xf32>
      %111 = arith.mulf %107, %89 : vector<2x32xf32>
      %112 = arith.mulf %106, %110 : vector<2x32xf32>
      %113 = arith.addf %111, %112 : vector<2x32xf32>
      %114 = math.tanh %113 : vector<2x32xf32>
      %115 = arith.mulf %108, %114 : vector<2x32xf32>
      %116 = arith.truncf %115 : vector<2x32xf32> to vector<2x32xbf16>
      %c0_37 = arith.constant 0 : index
      %c6 = arith.constant 6 : index
      %c0_38 = arith.constant 0 : index
      %117 = vector.load %arg6[%c0_37, %c6, %c0_38] : memref<1x8x32xbf16, #tpu.memory_space<vmem>>, vector<1x2x32xbf16>
      %118 = vector.shape_cast %117 : vector<1x2x32xbf16> to vector<2x32xbf16>
      %119 = vector.shape_cast %116 : vector<2x32xbf16> to vector<1x2x32xbf16>
      tpu.vector_store %arg6[%c0_37, %c6, %c0_38], %119 {strides = array<i32>} : memref<1x8x32xbf16, #tpu.memory_space<vmem>>, vector<1x2x32xbf16>,
      %c0_39 = arith.constant 0 : index
      %c0_40 = arith.constant 0 : index
      %c0_41 = arith.constant 0 : index
      %120 = vector.load %arg7[%c0_39, %c0_40, %c0_41] : memref<1x2x32xf32, #tpu.memory_space<vmem>>, vector<1x2x32xf32>
      %121 = vector.shape_cast %120 : vector<1x2x32xf32> to vector<2x32xf32>
      %122 = vector.shape_cast %115 : vector<2x32xf32> to vector<1x2x32xf32>
      tpu.vector_store %arg7[%c0_39, %c0_40, %c0_41], %122 {strides = array<i32>} : memref<1x2x32xf32, #tpu.memory_space<vmem>>, vector<1x2x32xf32>,
      %c0_42 = arith.constant 0 : index
      %c0_43 = arith.constant 0 : index
      %c0_44 = arith.constant 0 : index
      %123 = vector.load %arg8[%c0_42, %c0_43, %c0_44] : memref<1x2x32xf32, #tpu.memory_space<vmem>>, vector<1x2x32xf32>
      %124 = vector.shape_cast %123 : vector<1x2x32xf32> to vector<2x32xf32>
      %125 = vector.shape_cast %113 : vector<2x32xf32> to vector<1x2x32xf32>
      tpu.vector_store %arg8[%c0_42, %c0_43, %c0_44], %125 {strides = array<i32>} : memref<1x2x32xf32, #tpu.memory_space<vmem>>, vector<1x2x32xf32>,
    } else {
    }
    %c1_i32 = arith.constant 1 : i32
    %17 = arith.cmpi eq, %arg0, %c1_i32 : i32
    %18 = arith.extui %17 : i1 to i32
    %c0_i32_15 = arith.constant 0 : i32
    %19 = arith.cmpi ne, %18, %c0_i32_15 : i32
    scf.if %19 {
      %c0_16 = arith.constant 0 : index
      %c0_17 = arith.constant 0 : index
      %c0_18 = arith.constant 0 : index
      %20 = vector.load %arg7[%c0_16, %c0_17, %c0_18] : memref<1x2x32xf32, #tpu.memory_space<vmem>>, vector<1x2x32xf32>
      %21 = vector.shape_cast %20 : vector<1x2x32xf32> to vector<2x32xf32>
      %c0_19 = arith.constant 0 : index
      %c0_20 = arith.constant 0 : index
      %c0_21 = arith.constant 0 : index
      %22 = vector.load %arg8[%c0_19, %c0_20, %c0_21] : memref<1x2x32xf32, #tpu.memory_space<vmem>>, vector<1x2x32xf32>
      %23 = vector.shape_cast %22 : vector<1x2x32xf32> to vector<2x32xf32>
      %24 = vector.extract_strided_slice %11 {offsets = [6, 0], sizes = [2, 128], strides = [1, 1]} : vector<8x128xf32> to vector<2x128xf32>
      %25 = arith.truncf %21 : vector<2x32xf32> to vector<2x32xbf16>
      %cst_22 = arith.constant dense<0.000000e+00> : vector<2x128xf32>
      %26 = tpu.matmul %25, %13, %cst_22 {dimension_numbers = #tpu.dot_dimension_numbers<[1], [0], [0], [1], [0, 0, 1, 1], [], []>} : vector<2x32xbf16>, vector<32x128xbf16>, vector<2x128xf32> -> vector<2x128xf32>
      %27 = arith.addf %24, %26 : vector<2x128xf32>
      %28 = vector.extract_strided_slice %27 {offsets = [0, 0], sizes = [2, 96], strides = [1, 1]} : vector<2x128xf32> to vector<2x96xf32>
      %29 = arith.negf %28 : vector<2x96xf32>
      %30 = math.exp %29 : vector<2x96xf32>
      %cst_23 = arith.constant 1.000000e+00 : f32
      %31 = vector.broadcast %cst_23 : f32 to vector<2x96xf32>
      %32 = arith.addf %31, %30 : vector<2x96xf32>
      %33 = arith.divf %31, %32 : vector<2x96xf32>
      %34 = vector.extract_strided_slice %33 {offsets = [0, 0], sizes = [2, 32], strides = [1, 1]} : vector<2x96xf32> to vector<2x32xf32>
      %35 = vector.extract_strided_slice %33 {offsets = [0, 32], sizes = [2, 32], strides = [1, 1]} : vector<2x96xf32> to vector<2x32xf32>
      %36 = vector.extract_strided_slice %33 {offsets = [0, 64], sizes = [2, 32], strides = [1, 1]} : vector<2x96xf32> to vector<2x32xf32>
      %37 = vector.extract_strided_slice %27 {offsets = [0, 96], sizes = [2, 32], strides = [1, 1]} : vector<2x128xf32> to vector<2x32xf32>
      %38 = math.tanh %37 : vector<2x32xf32>
      %39 = arith.mulf %35, %23 : vector<2x32xf32>
      %40 = arith.mulf %34, %38 : vector<2x32xf32>
      %41 = arith.addf %39, %40 : vector<2x32xf32>
      %42 = math.tanh %41 : vector<2x32xf32>
      %43 = arith.mulf %36, %42 : vector<2x32xf32>
      %44 = arith.truncf %43 : vector<2x32xf32> to vector<2x32xbf16>
      %c0_24 = arith.constant 0 : index
      %c6 = arith.constant 6 : index
      %c0_25 = arith.constant 0 : index
      %45 = vector.load %arg6[%c0_24, %c6, %c0_25] : memref<1x8x32xbf16, #tpu.memory_space<vmem>>, vector<1x2x32xbf16>
      %46 = vector.shape_cast %45 : vector<1x2x32xbf16> to vector<2x32xbf16>
      %47 = vector.shape_cast %44 : vector<2x32xbf16> to vector<1x2x32xbf16>
      tpu.vector_store %arg6[%c0_24, %c6, %c0_25], %47 {strides = array<i32>} : memref<1x8x32xbf16, #tpu.memory_space<vmem>>, vector<1x2x32xbf16>,
      %48 = vector.extract_strided_slice %11 {offsets = [4, 0], sizes = [2, 128], strides = [1, 1]} : vector<8x128xf32> to vector<2x128xf32>
      %49 = arith.truncf %43 : vector<2x32xf32> to vector<2x32xbf16>
      %cst_26 = arith.constant dense<0.000000e+00> : vector<2x128xf32>
      %50 = tpu.matmul %49, %13, %cst_26 {dimension_numbers = #tpu.dot_dimension_numbers<[1], [0], [0], [1], [0, 0, 1, 1], [], []>} : vector<2x32xbf16>, vector<32x128xbf16>, vector<2x128xf32> -> vector<2x128xf32>
      %51 = arith.addf %48, %50 : vector<2x128xf32>
      %52 = vector.extract_strided_slice %51 {offsets = [0, 0], sizes = [2, 96], strides = [1, 1]} : vector<2x128xf32> to vector<2x96xf32>
      %53 = arith.negf %52 : vector<2x96xf32>
      %54 = math.exp %53 : vector<2x96xf32>
      %cst_27 = arith.constant 1.000000e+00 : f32
      %55 = vector.broadcast %cst_27 : f32 to vector<2x96xf32>
      %56 = arith.addf %55, %54 : vector<2x96xf32>
      %57 = arith.divf %55, %56 : vector<2x96xf32>
      %58 = vector.extract_strided_slice %57 {offsets = [0, 0], sizes = [2, 32], strides = [1, 1]} : vector<2x96xf32> to vector<2x32xf32>
      %59 = vector.extract_strided_slice %57 {offsets = [0, 32], sizes = [2, 32], strides = [1, 1]} : vector<2x96xf32> to vector<2x32xf32>
      %60 = vector.extract_strided_slice %57 {offsets = [0, 64], sizes = [2, 32], strides = [1, 1]} : vector<2x96xf32> to vector<2x32xf32>
      %61 = vector.extract_strided_slice %51 {offsets = [0, 96], sizes = [2, 32], strides = [1, 1]} : vector<2x128xf32> to vector<2x32xf32>
      %62 = math.tanh %61 : vector<2x32xf32>
      %63 = arith.mulf %59, %41 : vector<2x32xf32>
      %64 = arith.mulf %58, %62 : vector<2x32xf32>
      %65 = arith.addf %63, %64 : vector<2x32xf32>
      %66 = math.tanh %65 : vector<2x32xf32>
      %67 = arith.mulf %60, %66 : vector<2x32xf32>
      %68 = arith.truncf %67 : vector<2x32xf32> to vector<2x32xbf16>
      %c0_28 = arith.constant 0 : index
      %c4 = arith.constant 4 : index
      %c0_29 = arith.constant 0 : index
      %69 = vector.load %arg6[%c0_28, %c4, %c0_29] : memref<1x8x32xbf16, #tpu.memory_space<vmem>>, vector<1x2x32xbf16>
      %70 = vector.shape_cast %69 : vector<1x2x32xbf16> to vector<2x32xbf16>
      %71 = vector.shape_cast %68 : vector<2x32xbf16> to vector<1x2x32xbf16>
      tpu.vector_store %arg6[%c0_28, %c4, %c0_29], %71 {strides = array<i32>} : memref<1x8x32xbf16, #tpu.memory_space<vmem>>, vector<1x2x32xbf16>,
      %72 = vector.extract_strided_slice %11 {offsets = [2, 0], sizes = [2, 128], strides = [1, 1]} : vector<8x128xf32> to vector<2x128xf32>
      %73 = arith.truncf %67 : vector<2x32xf32> to vector<2x32xbf16>
      %cst_30 = arith.constant dense<0.000000e+00> : vector<2x128xf32>
      %74 = tpu.matmul %73, %13, %cst_30 {dimension_numbers = #tpu.dot_dimension_numbers<[1], [0], [0], [1], [0, 0, 1, 1], [], []>} : vector<2x32xbf16>, vector<32x128xbf16>, vector<2x128xf32> -> vector<2x128xf32>
      %75 = arith.addf %72, %74 : vector<2x128xf32>
      %76 = vector.extract_strided_slice %75 {offsets = [0, 0], sizes = [2, 96], strides = [1, 1]} : vector<2x128xf32> to vector<2x96xf32>
      %77 = arith.negf %76 : vector<2x96xf32>
      %78 = math.exp %77 : vector<2x96xf32>
      %cst_31 = arith.constant 1.000000e+00 : f32
      %79 = vector.broadcast %cst_31 : f32 to vector<2x96xf32>
      %80 = arith.addf %79, %78 : vector<2x96xf32>
      %81 = arith.divf %79, %80 : vector<2x96xf32>
      %82 = vector.extract_strided_slice %81 {offsets = [0, 0], sizes = [2, 32], strides = [1, 1]} : vector<2x96xf32> to vector<2x32xf32>
      %83 = vector.extract_strided_slice %81 {offsets = [0, 32], sizes = [2, 32], strides = [1, 1]} : vector<2x96xf32> to vector<2x32xf32>
      %84 = vector.extract_strided_slice %81 {offsets = [0, 64], sizes = [2, 32], strides = [1, 1]} : vector<2x96xf32> to vector<2x32xf32>
      %85 = vector.extract_strided_slice %75 {offsets = [0, 96], sizes = [2, 32], strides = [1, 1]} : vector<2x128xf32> to vector<2x32xf32>
      %86 = math.tanh %85 : vector<2x32xf32>
      %87 = arith.mulf %83, %65 : vector<2x32xf32>
      %88 = arith.mulf %82, %86 : vector<2x32xf32>
      %89 = arith.addf %87, %88 : vector<2x32xf32>
      %90 = math.tanh %89 : vector<2x32xf32>
      %91 = arith.mulf %84, %90 : vector<2x32xf32>
      %92 = arith.truncf %91 : vector<2x32xf32> to vector<2x32xbf16>
      %c0_32 = arith.constant 0 : index
      %c2 = arith.constant 2 : index
      %c0_33 = arith.constant 0 : index
      %93 = vector.load %arg6[%c0_32, %c2, %c0_33] : memref<1x8x32xbf16, #tpu.memory_space<vmem>>, vector<1x2x32xbf16>
      %94 = vector.shape_cast %93 : vector<1x2x32xbf16> to vector<2x32xbf16>
      %95 = vector.shape_cast %92 : vector<2x32xbf16> to vector<1x2x32xbf16>
      tpu.vector_store %arg6[%c0_32, %c2, %c0_33], %95 {strides = array<i32>} : memref<1x8x32xbf16, #tpu.memory_space<vmem>>, vector<1x2x32xbf16>,
      %96 = vector.extract_strided_slice %11 {offsets = [0, 0], sizes = [2, 128], strides = [1, 1]} : vector<8x128xf32> to vector<2x128xf32>
      %97 = arith.truncf %91 : vector<2x32xf32> to vector<2x32xbf16>
      %cst_34 = arith.constant dense<0.000000e+00> : vector<2x128xf32>
      %98 = tpu.matmul %97, %13, %cst_34 {dimension_numbers = #tpu.dot_dimension_numbers<[1], [0], [0], [1], [0, 0, 1, 1], [], []>} : vector<2x32xbf16>, vector<32x128xbf16>, vector<2x128xf32> -> vector<2x128xf32>
      %99 = arith.addf %96, %98 : vector<2x128xf32>
      %100 = vector.extract_strided_slice %99 {offsets = [0, 0], sizes = [2, 96], strides = [1, 1]} : vector<2x128xf32> to vector<2x96xf32>
      %101 = arith.negf %100 : vector<2x96xf32>
      %102 = math.exp %101 : vector<2x96xf32>
      %cst_35 = arith.constant 1.000000e+00 : f32
      %103 = vector.broadcast %cst_35 : f32 to vector<2x96xf32>
      %104 = arith.addf %103, %102 : vector<2x96xf32>
      %105 = arith.divf %103, %104 : vector<2x96xf32>
      %106 = vector.extract_strided_slice %105 {offsets = [0, 0], sizes = [2, 32], strides = [1, 1]} : vector<2x96xf32> to vector<2x32xf32>
      %107 = vector.extract_strided_slice %105 {offsets = [0, 32], sizes = [2, 32], strides = [1, 1]} : vector<2x96xf32> to vector<2x32xf32>
      %108 = vector.extract_strided_slice %105 {offsets = [0, 64], sizes = [2, 32], strides = [1, 1]} : vector<2x96xf32> to vector<2x32xf32>
      %109 = vector.extract_strided_slice %99 {offsets = [0, 96], sizes = [2, 32], strides = [1, 1]} : vector<2x128xf32> to vector<2x32xf32>
      %110 = math.tanh %109 : vector<2x32xf32>
      %111 = arith.mulf %107, %89 : vector<2x32xf32>
      %112 = arith.mulf %106, %110 : vector<2x32xf32>
      %113 = arith.addf %111, %112 : vector<2x32xf32>
      %114 = math.tanh %113 : vector<2x32xf32>
      %115 = arith.mulf %108, %114 : vector<2x32xf32>
      %116 = arith.truncf %115 : vector<2x32xf32> to vector<2x32xbf16>
      %c0_36 = arith.constant 0 : index
      %c0_37 = arith.constant 0 : index
      %c0_38 = arith.constant 0 : index
      %117 = vector.load %arg6[%c0_36, %c0_37, %c0_38] : memref<1x8x32xbf16, #tpu.memory_space<vmem>>, vector<1x2x32xbf16>
      %118 = vector.shape_cast %117 : vector<1x2x32xbf16> to vector<2x32xbf16>
      %119 = vector.shape_cast %116 : vector<2x32xbf16> to vector<1x2x32xbf16>
      tpu.vector_store %arg6[%c0_36, %c0_37, %c0_38], %119 {strides = array<i32>} : memref<1x8x32xbf16, #tpu.memory_space<vmem>>, vector<1x2x32xbf16>,
      %c0_39 = arith.constant 0 : index
      %c0_40 = arith.constant 0 : index
      %c0_41 = arith.constant 0 : index
      %120 = vector.load %arg7[%c0_39, %c0_40, %c0_41] : memref<1x2x32xf32, #tpu.memory_space<vmem>>, vector<1x2x32xf32>
      %121 = vector.shape_cast %120 : vector<1x2x32xf32> to vector<2x32xf32>
      %122 = vector.shape_cast %115 : vector<2x32xf32> to vector<1x2x32xf32>
      tpu.vector_store %arg7[%c0_39, %c0_40, %c0_41], %122 {strides = array<i32>} : memref<1x2x32xf32, #tpu.memory_space<vmem>>, vector<1x2x32xf32>,
      %c0_42 = arith.constant 0 : index
      %c0_43 = arith.constant 0 : index
      %c0_44 = arith.constant 0 : index
      %123 = vector.load %arg8[%c0_42, %c0_43, %c0_44] : memref<1x2x32xf32, #tpu.memory_space<vmem>>, vector<1x2x32xf32>
      %124 = vector.shape_cast %123 : vector<1x2x32xf32> to vector<2x32xf32>
      %125 = vector.shape_cast %113 : vector<2x32xf32> to vector<1x2x32xf32>
      tpu.vector_store %arg8[%c0_42, %c0_43, %c0_44], %125 {strides = array<i32>} : memref<1x2x32xf32, #tpu.memory_space<vmem>>, vector<1x2x32xf32>,
    } else {
    }
    return
  }
  func.func @transform_0(%arg0: i32, %arg1: i32) -> (i32, i32, i32) {
    %c2_i32 = arith.constant 2 : i32
    %0 = arith.muli %c2_i32, %arg1 : i32
    %c1_i32 = arith.constant 1 : i32
    %1 = arith.subi %c1_i32, %0 : i32
    %2 = arith.muli %arg0, %1 : i32
    %3 = arith.addi %arg1, %2 : i32
    %c0_i32 = arith.constant 0 : i32
    %c0_i32_0 = arith.constant 0 : i32
    %c0_i32_1 = arith.constant 0 : i32
    return %c0_i32, %3, %c0_i32_0 : i32, i32, i32
  }
  func.func @transform_1(%arg0: i32, %arg1: i32) -> (i32, i32, i32, i32) {
    %c0_i32 = arith.constant 0 : i32
    %c0_i32_0 = arith.constant 0 : i32
    %c0_i32_1 = arith.constant 0 : i32
    %c0_i32_2 = arith.constant 0 : i32
    return %arg0, %c0_i32, %c0_i32_0, %c0_i32_1 : i32, i32, i32, i32
  }
  func.func @transform_2(%arg0: i32, %arg1: i32) -> (i32, i32, i32) {
    %c0_i32 = arith.constant 0 : i32
    %c0_i32_0 = arith.constant 0 : i32
    %c0_i32_1 = arith.constant 0 : i32
    return %arg0, %c0_i32, %c0_i32_0 : i32, i32, i32
  }
  func.func @transform_3(%arg0: i32, %arg1: i32) -> (i32, i32, i32) {
    %c0_i32 = arith.constant 0 : i32
    %c0_i32_0 = arith.constant 0 : i32
    %c0_i32_1 = arith.constant 0 : i32
    return %arg0, %c0_i32, %c0_i32_0 : i32, i32, i32
  }
  func.func @transform_4(%arg0: i32, %arg1: i32) -> (i32, i32, i32) {
    %c2_i32 = arith.constant 2 : i32
    %0 = arith.muli %c2_i32, %arg1 : i32
    %c1_i32 = arith.constant 1 : i32
    %1 = arith.subi %c1_i32, %0 : i32
    %2 = arith.muli %arg0, %1 : i32
    %3 = arith.addi %arg1, %2 : i32
    %c0_i32 = arith.constant 0 : i32
    %c0_i32_0 = arith.constant 0 : i32
    return %arg0, %3, %c0_i32 : i32, i32, i32
  }
  func.func @transform_5(%arg0: i32, %arg1: i32) -> (i32, i32, i32) {
    %c0_i32 = arith.constant 0 : i32
    %c0_i32_0 = arith.constant 0 : i32
    %c0_i32_1 = arith.constant 0 : i32
    return %arg0, %c0_i32, %c0_i32_0 : i32, i32, i32
  }
  func.func @transform_6(%arg0: i32, %arg1: i32) -> (i32, i32, i32) {
    %c0_i32 = arith.constant 0 : i32
    %c0_i32_0 = arith.constant 0 : i32
    %c0_i32_1 = arith.constant 0 : i32
    return %arg0, %c0_i32, %c0_i32_0 : i32, i32, i32
  }
}

module attributes {stable_mosaic.version = 11 : i64} {
  func.func @_proj_kernel(%arg0: i32, %arg1: i32, %arg2: memref<2x16x32xbf16, #tpu.memory_space<vmem>>, %arg3: memref<1x2x32x32xbf16, #tpu.memory_space<vmem>>, %arg4: memref<1x1x32xf32, #tpu.memory_space<vmem>>, %arg5: memref<1x16x32xf32, #tpu.memory_space<vmem>>) attributes {dimension_semantics = [#tpu.dimension_semantics<parallel>, #tpu.dimension_semantics<parallel>], iteration_bounds = array<i64: 1, 1>, scalar_prefetch = 0 : i64, scratch_operands = 0 : i64, tpu.core_type = #tpu.core_type<tc>, window_params = [{transform_indices = @transform_0, window_bounds = array<i64: 2, 16, 32>}, {transform_indices = @transform_1, window_bounds = array<i64: 1, 2, 32, 32>}, {transform_indices = @transform_2, window_bounds = array<i64: 1, 1, 32>}, {transform_indices = @transform_3, window_bounds = array<i64: 1, 16, 32>}]} {
    %c0 = arith.constant 0 : index
    %c0_0 = arith.constant 0 : index
    %c0_1 = arith.constant 0 : index
    %0 = vector.load %arg4[%c0, %c0_0, %c0_1] : memref<1x1x32xf32, #tpu.memory_space<vmem>>, vector<1x1x32xf32>
    %1 = vector.shape_cast %0 : vector<1x1x32xf32> to vector<1x32xf32>
    %c0_2 = arith.constant 0 : index
    %c0_3 = arith.constant 0 : index
    %c0_4 = arith.constant 0 : index
    %2 = vector.load %arg2[%c0_2, %c0_3, %c0_4] : memref<2x16x32xbf16, #tpu.memory_space<vmem>>, vector<1x16x32xbf16>
    %3 = vector.shape_cast %2 : vector<1x16x32xbf16> to vector<16x32xbf16>
    %c0_5 = arith.constant 0 : index
    %c0_6 = arith.constant 0 : index
    %c0_7 = arith.constant 0 : index
    %c0_8 = arith.constant 0 : index
    %4 = vector.load %arg3[%c0_5, %c0_6, %c0_7, %c0_8] : memref<1x2x32x32xbf16, #tpu.memory_space<vmem>>, vector<1x1x32x32xbf16>
    %5 = vector.shape_cast %4 : vector<1x1x32x32xbf16> to vector<32x32xbf16>
    %cst = arith.constant dense<0.000000e+00> : vector<16x32xf32>
    %6 = tpu.matmul %3, %5, %cst {dimension_numbers = #tpu.dot_dimension_numbers<[1], [0], [0], [1], [0, 0, 1, 1], [], []>} : vector<16x32xbf16>, vector<32x32xbf16>, vector<16x32xf32> -> vector<16x32xf32>
    %7 = vector.broadcast %1 : vector<1x32xf32> to vector<16x32xf32>
    %8 = arith.addf %7, %6 : vector<16x32xf32>
    %c1 = arith.constant 1 : index
    %c0_9 = arith.constant 0 : index
    %c0_10 = arith.constant 0 : index
    %9 = vector.load %arg2[%c1, %c0_9, %c0_10] : memref<2x16x32xbf16, #tpu.memory_space<vmem>>, vector<1x16x32xbf16>
    %10 = vector.shape_cast %9 : vector<1x16x32xbf16> to vector<16x32xbf16>
    %c0_11 = arith.constant 0 : index
    %c1_12 = arith.constant 1 : index
    %c0_13 = arith.constant 0 : index
    %c0_14 = arith.constant 0 : index
    %11 = vector.load %arg3[%c0_11, %c1_12, %c0_13, %c0_14] : memref<1x2x32x32xbf16, #tpu.memory_space<vmem>>, vector<1x1x32x32xbf16>
    %12 = vector.shape_cast %11 : vector<1x1x32x32xbf16> to vector<32x32xbf16>
    %cst_15 = arith.constant dense<0.000000e+00> : vector<16x32xf32>
    %13 = tpu.matmul %10, %12, %cst_15 {dimension_numbers = #tpu.dot_dimension_numbers<[1], [0], [0], [1], [0, 0, 1, 1], [], []>} : vector<16x32xbf16>, vector<32x32xbf16>, vector<16x32xf32> -> vector<16x32xf32>
    %14 = arith.addf %8, %13 : vector<16x32xf32>
    %c0_16 = arith.constant 0 : index
    %c0_17 = arith.constant 0 : index
    %c0_18 = arith.constant 0 : index
    %15 = vector.load %arg5[%c0_16, %c0_17, %c0_18] : memref<1x16x32xf32, #tpu.memory_space<vmem>>, vector<1x16x32xf32>
    %16 = vector.shape_cast %15 : vector<1x16x32xf32> to vector<16x32xf32>
    %17 = vector.shape_cast %14 : vector<16x32xf32> to vector<1x16x32xf32>
    tpu.vector_store %arg5[%c0_16, %c0_17, %c0_18], %17 {strides = array<i32>} : memref<1x16x32xf32, #tpu.memory_space<vmem>>, vector<1x16x32xf32>,
    return
  }
  func.func @transform_0(%arg0: i32, %arg1: i32) -> (i32, i32, i32) {
    %c0_i32 = arith.constant 0 : i32
    %c0_i32_0 = arith.constant 0 : i32
    %c0_i32_1 = arith.constant 0 : i32
    return %c0_i32, %arg1, %c0_i32_0 : i32, i32, i32
  }
  func.func @transform_1(%arg0: i32, %arg1: i32) -> (i32, i32, i32, i32) {
    %c0_i32 = arith.constant 0 : i32
    %c0_i32_0 = arith.constant 0 : i32
    %c0_i32_1 = arith.constant 0 : i32
    %c0_i32_2 = arith.constant 0 : i32
    return %arg0, %c0_i32, %c0_i32_0, %c0_i32_1 : i32, i32, i32, i32
  }
  func.func @transform_2(%arg0: i32, %arg1: i32) -> (i32, i32, i32) {
    %c0_i32 = arith.constant 0 : i32
    %c0_i32_0 = arith.constant 0 : i32
    %c0_i32_1 = arith.constant 0 : i32
    return %arg0, %c0_i32, %c0_i32_0 : i32, i32, i32
  }
  func.func @transform_3(%arg0: i32, %arg1: i32) -> (i32, i32, i32) {
    %c0_i32 = arith.constant 0 : i32
    %c0_i32_0 = arith.constant 0 : i32
    return %arg0, %arg1, %c0_i32 : i32, i32, i32
  }
}

module attributes {stable_mosaic.version = 11 : i64} {
  func.func @_blstm_layer_kernel(%arg0: i32, %arg1: i32, %arg2: memref<2x8x32xbf16, #tpu.memory_space<vmem>>, %arg3: memref<1x2x32x128xbf16, #tpu.memory_space<vmem>>, %arg4: memref<1x1x128xf32, #tpu.memory_space<vmem>>, %arg5: memref<1x32x128xbf16, #tpu.memory_space<vmem>>, %arg6: memref<1x8x32xbf16, #tpu.memory_space<vmem>>, %arg7: memref<1x2x32xf32, #tpu.memory_space<vmem>>, %arg8: memref<1x2x32xf32, #tpu.memory_space<vmem>>) attributes {dimension_semantics = [#tpu.dimension_semantics<parallel>, #tpu.dimension_semantics<arbitrary>], iteration_bounds = array<i64: 2, 2>, scalar_prefetch = 0 : i64, scratch_operands = 0 : i64, tpu.core_type = #tpu.core_type<tc>, window_params = [{transform_indices = @transform_0, window_bounds = array<i64: 2, 8, 32>}, {transform_indices = @transform_1, window_bounds = array<i64: 1, 2, 32, 128>}, {transform_indices = @transform_2, window_bounds = array<i64: 1, 1, 128>}, {transform_indices = @transform_3, window_bounds = array<i64: 1, 32, 128>}, {transform_indices = @transform_4, window_bounds = array<i64: 1, 8, 32>}, {transform_indices = @transform_5, window_bounds = array<i64: 1, 2, 32>}, {transform_indices = @transform_6, window_bounds = array<i64: 1, 2, 32>}]} {
    %c0_i32 = arith.constant 0 : i32
    %0 = arith.cmpi eq, %arg1, %c0_i32 : i32
    %1 = arith.extui %0 : i1 to i32
    %c0_i32_0 = arith.constant 0 : i32
    %2 = arith.cmpi ne, %1, %c0_i32_0 : i32
    scf.if %2 {
      %cst_23 = arith.constant 0.000000e+00 : f32
      %26 = vector.broadcast %cst_23 : f32 to vector<2x32xf32>
      %c0_24 = arith.constant 0 : index
      %c0_25 = arith.constant 0 : index
      %c0_26 = arith.constant 0 : index
      %27 = vector.load %arg7[%c0_24, %c0_25, %c0_26] : memref<1x2x32xf32, #tpu.memory_space<vmem>>, vector<1x2x32xf32>
      %28 = vector.shape_cast %27 : vector<1x2x32xf32> to vector<2x32xf32>
      %29 = vector.shape_cast %26 : vector<2x32xf32> to vector<1x2x32xf32>
      tpu.vector_store %arg7[%c0_24, %c0_25, %c0_26], %29 {strides = array<i32>} : memref<1x2x32xf32, #tpu.memory_space<vmem>>, vector<1x2x32xf32>,
      %cst_27 = arith.constant 0.000000e+00 : f32
      %30 = vector.broadcast %cst_27 : f32 to vector<2x32xf32>
      %c0_28 = arith.constant 0 : index
      %c0_29 = arith.constant 0 : index
      %c0_30 = arith.constant 0 : index
      %31 = vector.load %arg8[%c0_28, %c0_29, %c0_30] : memref<1x2x32xf32, #tpu.memory_space<vmem>>, vector<1x2x32xf32>
      %32 = vector.shape_cast %31 : vector<1x2x32xf32> to vector<2x32xf32>
      %33 = vector.shape_cast %30 : vector<2x32xf32> to vector<1x2x32xf32>
      tpu.vector_store %arg8[%c0_28, %c0_29, %c0_30], %33 {strides = array<i32>} : memref<1x2x32xf32, #tpu.memory_space<vmem>>, vector<1x2x32xf32>,
    } else {
    }
    %c0 = arith.constant 0 : index
    %c0_1 = arith.constant 0 : index
    %c0_2 = arith.constant 0 : index
    %3 = vector.load %arg4[%c0, %c0_1, %c0_2] : memref<1x1x128xf32, #tpu.memory_space<vmem>>, vector<1x1x128xf32>
    %4 = vector.shape_cast %3 : vector<1x1x128xf32> to vector<1x128xf32>
    %c0_3 = arith.constant 0 : index
    %c0_4 = arith.constant 0 : index
    %c0_5 = arith.constant 0 : index
    %5 = vector.load %arg2[%c0_3, %c0_4, %c0_5] : memref<2x8x32xbf16, #tpu.memory_space<vmem>>, vector<1x8x32xbf16>
    %6 = vector.shape_cast %5 : vector<1x8x32xbf16> to vector<8x32xbf16>
    %c0_6 = arith.constant 0 : index
    %c0_7 = arith.constant 0 : index
    %c0_8 = arith.constant 0 : index
    %c0_9 = arith.constant 0 : index
    %7 = vector.load %arg3[%c0_6, %c0_7, %c0_8, %c0_9] : memref<1x2x32x128xbf16, #tpu.memory_space<vmem>>, vector<1x1x32x128xbf16>
    %8 = vector.shape_cast %7 : vector<1x1x32x128xbf16> to vector<32x128xbf16>
    %cst = arith.constant dense<0.000000e+00> : vector<8x128xf32>
    %9 = tpu.matmul %6, %8, %cst {dimension_numbers = #tpu.dot_dimension_numbers<[1], [0], [0], [1], [0, 0, 1, 1], [], []>} : vector<8x32xbf16>, vector<32x128xbf16>, vector<8x128xf32> -> vector<8x128xf32>
    %10 = vector.broadcast %4 : vector<1x128xf32> to vector<8x128xf32>
    %11 = arith.addf %10, %9 : vector<8x128xf32>
    %c1 = arith.constant 1 : index
    %c0_10 = arith.constant 0 : index
    %c0_11 = arith.constant 0 : index
    %12 = vector.load %arg2[%c1, %c0_10, %c0_11] : memref<2x8x32xbf16, #tpu.memory_space<vmem>>, vector<1x8x32xbf16>
    %13 = vector.shape_cast %12 : vector<1x8x32xbf16> to vector<8x32xbf16>
    %c0_12 = arith.constant 0 : index
    %c1_13 = arith.constant 1 : index
    %c0_14 = arith.constant 0 : index
    %c0_15 = arith.constant 0 : index
    %14 = vector.load %arg3[%c0_12, %c1_13, %c0_14, %c0_15] : memref<1x2x32x128xbf16, #tpu.memory_space<vmem>>, vector<1x1x32x128xbf16>
    %15 = vector.shape_cast %14 : vector<1x1x32x128xbf16> to vector<32x128xbf16>
    %cst_16 = arith.constant dense<0.000000e+00> : vector<8x128xf32>
    %16 = tpu.matmul %13, %15, %cst_16 {dimension_numbers = #tpu.dot_dimension_numbers<[1], [0], [0], [1], [0, 0, 1, 1], [], []>} : vector<8x32xbf16>, vector<32x128xbf16>, vector<8x128xf32> -> vector<8x128xf32>
    %17 = arith.addf %11, %16 : vector<8x128xf32>
    %c0_17 = arith.constant 0 : index
    %c0_18 = arith.constant 0 : index
    %c0_19 = arith.constant 0 : index
    %18 = vector.load %arg5[%c0_17, %c0_18, %c0_19] : memref<1x32x128xbf16, #tpu.memory_space<vmem>>, vector<1x32x128xbf16>
    %19 = vector.shape_cast %18 : vector<1x32x128xbf16> to vector<32x128xbf16>
    %c0_i32_20 = arith.constant 0 : i32
    %20 = arith.cmpi eq, %arg0, %c0_i32_20 : i32
    %21 = arith.extui %20 : i1 to i32
    %c0_i32_21 = arith.constant 0 : i32
    %22 = arith.cmpi ne, %21, %c0_i32_21 : i32
    scf.if %22 {
      %c0_23 = arith.constant 0 : index
      %c0_24 = arith.constant 0 : index
      %c0_25 = arith.constant 0 : index
      %26 = vector.load %arg7[%c0_23, %c0_24, %c0_25] : memref<1x2x32xf32, #tpu.memory_space<vmem>>, vector<1x2x32xf32>
      %27 = vector.shape_cast %26 : vector<1x2x32xf32> to vector<2x32xf32>
      %c0_26 = arith.constant 0 : index
      %c0_27 = arith.constant 0 : index
      %c0_28 = arith.constant 0 : index
      %28 = vector.load %arg8[%c0_26, %c0_27, %c0_28] : memref<1x2x32xf32, #tpu.memory_space<vmem>>, vector<1x2x32xf32>
      %29 = vector.shape_cast %28 : vector<1x2x32xf32> to vector<2x32xf32>
      %30 = vector.extract_strided_slice %17 {offsets = [0, 0], sizes = [2, 128], strides = [1, 1]} : vector<8x128xf32> to vector<2x128xf32>
      %31 = arith.truncf %27 : vector<2x32xf32> to vector<2x32xbf16>
      %cst_29 = arith.constant dense<0.000000e+00> : vector<2x128xf32>
      %32 = tpu.matmul %31, %19, %cst_29 {dimension_numbers = #tpu.dot_dimension_numbers<[1], [0], [0], [1], [0, 0, 1, 1], [], []>} : vector<2x32xbf16>, vector<32x128xbf16>, vector<2x128xf32> -> vector<2x128xf32>
      %33 = arith.addf %30, %32 : vector<2x128xf32>
      %34 = vector.extract_strided_slice %33 {offsets = [0, 0], sizes = [2, 96], strides = [1, 1]} : vector<2x128xf32> to vector<2x96xf32>
      %35 = arith.negf %34 : vector<2x96xf32>
      %36 = math.exp %35 : vector<2x96xf32>
      %cst_30 = arith.constant 1.000000e+00 : f32
      %37 = vector.broadcast %cst_30 : f32 to vector<2x96xf32>
      %38 = arith.addf %37, %36 : vector<2x96xf32>
      %39 = arith.divf %37, %38 : vector<2x96xf32>
      %40 = vector.extract_strided_slice %39 {offsets = [0, 0], sizes = [2, 32], strides = [1, 1]} : vector<2x96xf32> to vector<2x32xf32>
      %41 = vector.extract_strided_slice %39 {offsets = [0, 32], sizes = [2, 32], strides = [1, 1]} : vector<2x96xf32> to vector<2x32xf32>
      %42 = vector.extract_strided_slice %39 {offsets = [0, 64], sizes = [2, 32], strides = [1, 1]} : vector<2x96xf32> to vector<2x32xf32>
      %43 = vector.extract_strided_slice %33 {offsets = [0, 96], sizes = [2, 32], strides = [1, 1]} : vector<2x128xf32> to vector<2x32xf32>
      %44 = math.tanh %43 : vector<2x32xf32>
      %45 = arith.mulf %41, %29 : vector<2x32xf32>
      %46 = arith.mulf %40, %44 : vector<2x32xf32>
      %47 = arith.addf %45, %46 : vector<2x32xf32>
      %48 = math.tanh %47 : vector<2x32xf32>
      %49 = arith.mulf %42, %48 : vector<2x32xf32>
      %50 = arith.truncf %49 : vector<2x32xf32> to vector<2x32xbf16>
      %c0_31 = arith.constant 0 : index
      %c0_32 = arith.constant 0 : index
      %c0_33 = arith.constant 0 : index
      %51 = vector.load %arg6[%c0_31, %c0_32, %c0_33] : memref<1x8x32xbf16, #tpu.memory_space<vmem>>, vector<1x2x32xbf16>
      %52 = vector.shape_cast %51 : vector<1x2x32xbf16> to vector<2x32xbf16>
      %53 = vector.shape_cast %50 : vector<2x32xbf16> to vector<1x2x32xbf16>
      tpu.vector_store %arg6[%c0_31, %c0_32, %c0_33], %53 {strides = array<i32>} : memref<1x8x32xbf16, #tpu.memory_space<vmem>>, vector<1x2x32xbf16>,
      %54 = vector.extract_strided_slice %17 {offsets = [2, 0], sizes = [2, 128], strides = [1, 1]} : vector<8x128xf32> to vector<2x128xf32>
      %55 = arith.truncf %49 : vector<2x32xf32> to vector<2x32xbf16>
      %cst_34 = arith.constant dense<0.000000e+00> : vector<2x128xf32>
      %56 = tpu.matmul %55, %19, %cst_34 {dimension_numbers = #tpu.dot_dimension_numbers<[1], [0], [0], [1], [0, 0, 1, 1], [], []>} : vector<2x32xbf16>, vector<32x128xbf16>, vector<2x128xf32> -> vector<2x128xf32>
      %57 = arith.addf %54, %56 : vector<2x128xf32>
      %58 = vector.extract_strided_slice %57 {offsets = [0, 0], sizes = [2, 96], strides = [1, 1]} : vector<2x128xf32> to vector<2x96xf32>
      %59 = arith.negf %58 : vector<2x96xf32>
      %60 = math.exp %59 : vector<2x96xf32>
      %cst_35 = arith.constant 1.000000e+00 : f32
      %61 = vector.broadcast %cst_35 : f32 to vector<2x96xf32>
      %62 = arith.addf %61, %60 : vector<2x96xf32>
      %63 = arith.divf %61, %62 : vector<2x96xf32>
      %64 = vector.extract_strided_slice %63 {offsets = [0, 0], sizes = [2, 32], strides = [1, 1]} : vector<2x96xf32> to vector<2x32xf32>
      %65 = vector.extract_strided_slice %63 {offsets = [0, 32], sizes = [2, 32], strides = [1, 1]} : vector<2x96xf32> to vector<2x32xf32>
      %66 = vector.extract_strided_slice %63 {offsets = [0, 64], sizes = [2, 32], strides = [1, 1]} : vector<2x96xf32> to vector<2x32xf32>
      %67 = vector.extract_strided_slice %57 {offsets = [0, 96], sizes = [2, 32], strides = [1, 1]} : vector<2x128xf32> to vector<2x32xf32>
      %68 = math.tanh %67 : vector<2x32xf32>
      %69 = arith.mulf %65, %47 : vector<2x32xf32>
      %70 = arith.mulf %64, %68 : vector<2x32xf32>
      %71 = arith.addf %69, %70 : vector<2x32xf32>
      %72 = math.tanh %71 : vector<2x32xf32>
      %73 = arith.mulf %66, %72 : vector<2x32xf32>
      %74 = arith.truncf %73 : vector<2x32xf32> to vector<2x32xbf16>
      %c0_36 = arith.constant 0 : index
      %c2 = arith.constant 2 : index
      %c0_37 = arith.constant 0 : index
      %75 = vector.load %arg6[%c0_36, %c2, %c0_37] : memref<1x8x32xbf16, #tpu.memory_space<vmem>>, vector<1x2x32xbf16>
      %76 = vector.shape_cast %75 : vector<1x2x32xbf16> to vector<2x32xbf16>
      %77 = vector.shape_cast %74 : vector<2x32xbf16> to vector<1x2x32xbf16>
      tpu.vector_store %arg6[%c0_36, %c2, %c0_37], %77 {strides = array<i32>} : memref<1x8x32xbf16, #tpu.memory_space<vmem>>, vector<1x2x32xbf16>,
      %78 = vector.extract_strided_slice %17 {offsets = [4, 0], sizes = [2, 128], strides = [1, 1]} : vector<8x128xf32> to vector<2x128xf32>
      %79 = arith.truncf %73 : vector<2x32xf32> to vector<2x32xbf16>
      %cst_38 = arith.constant dense<0.000000e+00> : vector<2x128xf32>
      %80 = tpu.matmul %79, %19, %cst_38 {dimension_numbers = #tpu.dot_dimension_numbers<[1], [0], [0], [1], [0, 0, 1, 1], [], []>} : vector<2x32xbf16>, vector<32x128xbf16>, vector<2x128xf32> -> vector<2x128xf32>
      %81 = arith.addf %78, %80 : vector<2x128xf32>
      %82 = vector.extract_strided_slice %81 {offsets = [0, 0], sizes = [2, 96], strides = [1, 1]} : vector<2x128xf32> to vector<2x96xf32>
      %83 = arith.negf %82 : vector<2x96xf32>
      %84 = math.exp %83 : vector<2x96xf32>
      %cst_39 = arith.constant 1.000000e+00 : f32
      %85 = vector.broadcast %cst_39 : f32 to vector<2x96xf32>
      %86 = arith.addf %85, %84 : vector<2x96xf32>
      %87 = arith.divf %85, %86 : vector<2x96xf32>
      %88 = vector.extract_strided_slice %87 {offsets = [0, 0], sizes = [2, 32], strides = [1, 1]} : vector<2x96xf32> to vector<2x32xf32>
      %89 = vector.extract_strided_slice %87 {offsets = [0, 32], sizes = [2, 32], strides = [1, 1]} : vector<2x96xf32> to vector<2x32xf32>
      %90 = vector.extract_strided_slice %87 {offsets = [0, 64], sizes = [2, 32], strides = [1, 1]} : vector<2x96xf32> to vector<2x32xf32>
      %91 = vector.extract_strided_slice %81 {offsets = [0, 96], sizes = [2, 32], strides = [1, 1]} : vector<2x128xf32> to vector<2x32xf32>
      %92 = math.tanh %91 : vector<2x32xf32>
      %93 = arith.mulf %89, %71 : vector<2x32xf32>
      %94 = arith.mulf %88, %92 : vector<2x32xf32>
      %95 = arith.addf %93, %94 : vector<2x32xf32>
      %96 = math.tanh %95 : vector<2x32xf32>
      %97 = arith.mulf %90, %96 : vector<2x32xf32>
      %98 = arith.truncf %97 : vector<2x32xf32> to vector<2x32xbf16>
      %c0_40 = arith.constant 0 : index
      %c4 = arith.constant 4 : index
      %c0_41 = arith.constant 0 : index
      %99 = vector.load %arg6[%c0_40, %c4, %c0_41] : memref<1x8x32xbf16, #tpu.memory_space<vmem>>, vector<1x2x32xbf16>
      %100 = vector.shape_cast %99 : vector<1x2x32xbf16> to vector<2x32xbf16>
      %101 = vector.shape_cast %98 : vector<2x32xbf16> to vector<1x2x32xbf16>
      tpu.vector_store %arg6[%c0_40, %c4, %c0_41], %101 {strides = array<i32>} : memref<1x8x32xbf16, #tpu.memory_space<vmem>>, vector<1x2x32xbf16>,
      %102 = vector.extract_strided_slice %17 {offsets = [6, 0], sizes = [2, 128], strides = [1, 1]} : vector<8x128xf32> to vector<2x128xf32>
      %103 = arith.truncf %97 : vector<2x32xf32> to vector<2x32xbf16>
      %cst_42 = arith.constant dense<0.000000e+00> : vector<2x128xf32>
      %104 = tpu.matmul %103, %19, %cst_42 {dimension_numbers = #tpu.dot_dimension_numbers<[1], [0], [0], [1], [0, 0, 1, 1], [], []>} : vector<2x32xbf16>, vector<32x128xbf16>, vector<2x128xf32> -> vector<2x128xf32>
      %105 = arith.addf %102, %104 : vector<2x128xf32>
      %106 = vector.extract_strided_slice %105 {offsets = [0, 0], sizes = [2, 96], strides = [1, 1]} : vector<2x128xf32> to vector<2x96xf32>
      %107 = arith.negf %106 : vector<2x96xf32>
      %108 = math.exp %107 : vector<2x96xf32>
      %cst_43 = arith.constant 1.000000e+00 : f32
      %109 = vector.broadcast %cst_43 : f32 to vector<2x96xf32>
      %110 = arith.addf %109, %108 : vector<2x96xf32>
      %111 = arith.divf %109, %110 : vector<2x96xf32>
      %112 = vector.extract_strided_slice %111 {offsets = [0, 0], sizes = [2, 32], strides = [1, 1]} : vector<2x96xf32> to vector<2x32xf32>
      %113 = vector.extract_strided_slice %111 {offsets = [0, 32], sizes = [2, 32], strides = [1, 1]} : vector<2x96xf32> to vector<2x32xf32>
      %114 = vector.extract_strided_slice %111 {offsets = [0, 64], sizes = [2, 32], strides = [1, 1]} : vector<2x96xf32> to vector<2x32xf32>
      %115 = vector.extract_strided_slice %105 {offsets = [0, 96], sizes = [2, 32], strides = [1, 1]} : vector<2x128xf32> to vector<2x32xf32>
      %116 = math.tanh %115 : vector<2x32xf32>
      %117 = arith.mulf %113, %95 : vector<2x32xf32>
      %118 = arith.mulf %112, %116 : vector<2x32xf32>
      %119 = arith.addf %117, %118 : vector<2x32xf32>
      %120 = math.tanh %119 : vector<2x32xf32>
      %121 = arith.mulf %114, %120 : vector<2x32xf32>
      %122 = arith.truncf %121 : vector<2x32xf32> to vector<2x32xbf16>
      %c0_44 = arith.constant 0 : index
      %c6 = arith.constant 6 : index
      %c0_45 = arith.constant 0 : index
      %123 = vector.load %arg6[%c0_44, %c6, %c0_45] : memref<1x8x32xbf16, #tpu.memory_space<vmem>>, vector<1x2x32xbf16>
      %124 = vector.shape_cast %123 : vector<1x2x32xbf16> to vector<2x32xbf16>
      %125 = vector.shape_cast %122 : vector<2x32xbf16> to vector<1x2x32xbf16>
      tpu.vector_store %arg6[%c0_44, %c6, %c0_45], %125 {strides = array<i32>} : memref<1x8x32xbf16, #tpu.memory_space<vmem>>, vector<1x2x32xbf16>,
      %c0_46 = arith.constant 0 : index
      %c0_47 = arith.constant 0 : index
      %c0_48 = arith.constant 0 : index
      %126 = vector.load %arg7[%c0_46, %c0_47, %c0_48] : memref<1x2x32xf32, #tpu.memory_space<vmem>>, vector<1x2x32xf32>
      %127 = vector.shape_cast %126 : vector<1x2x32xf32> to vector<2x32xf32>
      %128 = vector.shape_cast %121 : vector<2x32xf32> to vector<1x2x32xf32>
      tpu.vector_store %arg7[%c0_46, %c0_47, %c0_48], %128 {strides = array<i32>} : memref<1x2x32xf32, #tpu.memory_space<vmem>>, vector<1x2x32xf32>,
      %c0_49 = arith.constant 0 : index
      %c0_50 = arith.constant 0 : index
      %c0_51 = arith.constant 0 : index
      %129 = vector.load %arg8[%c0_49, %c0_50, %c0_51] : memref<1x2x32xf32, #tpu.memory_space<vmem>>, vector<1x2x32xf32>
      %130 = vector.shape_cast %129 : vector<1x2x32xf32> to vector<2x32xf32>
      %131 = vector.shape_cast %119 : vector<2x32xf32> to vector<1x2x32xf32>
      tpu.vector_store %arg8[%c0_49, %c0_50, %c0_51], %131 {strides = array<i32>} : memref<1x2x32xf32, #tpu.memory_space<vmem>>, vector<1x2x32xf32>,
    } else {
    }
    %c1_i32 = arith.constant 1 : i32
    %23 = arith.cmpi eq, %arg0, %c1_i32 : i32
    %24 = arith.extui %23 : i1 to i32
    %c0_i32_22 = arith.constant 0 : i32
    %25 = arith.cmpi ne, %24, %c0_i32_22 : i32
    scf.if %25 {
      %c0_23 = arith.constant 0 : index
      %c0_24 = arith.constant 0 : index
      %c0_25 = arith.constant 0 : index
      %26 = vector.load %arg7[%c0_23, %c0_24, %c0_25] : memref<1x2x32xf32, #tpu.memory_space<vmem>>, vector<1x2x32xf32>
      %27 = vector.shape_cast %26 : vector<1x2x32xf32> to vector<2x32xf32>
      %c0_26 = arith.constant 0 : index
      %c0_27 = arith.constant 0 : index
      %c0_28 = arith.constant 0 : index
      %28 = vector.load %arg8[%c0_26, %c0_27, %c0_28] : memref<1x2x32xf32, #tpu.memory_space<vmem>>, vector<1x2x32xf32>
      %29 = vector.shape_cast %28 : vector<1x2x32xf32> to vector<2x32xf32>
      %30 = vector.extract_strided_slice %17 {offsets = [6, 0], sizes = [2, 128], strides = [1, 1]} : vector<8x128xf32> to vector<2x128xf32>
      %31 = arith.truncf %27 : vector<2x32xf32> to vector<2x32xbf16>
      %cst_29 = arith.constant dense<0.000000e+00> : vector<2x128xf32>
      %32 = tpu.matmul %31, %19, %cst_29 {dimension_numbers = #tpu.dot_dimension_numbers<[1], [0], [0], [1], [0, 0, 1, 1], [], []>} : vector<2x32xbf16>, vector<32x128xbf16>, vector<2x128xf32> -> vector<2x128xf32>
      %33 = arith.addf %30, %32 : vector<2x128xf32>
      %34 = vector.extract_strided_slice %33 {offsets = [0, 0], sizes = [2, 96], strides = [1, 1]} : vector<2x128xf32> to vector<2x96xf32>
      %35 = arith.negf %34 : vector<2x96xf32>
      %36 = math.exp %35 : vector<2x96xf32>
      %cst_30 = arith.constant 1.000000e+00 : f32
      %37 = vector.broadcast %cst_30 : f32 to vector<2x96xf32>
      %38 = arith.addf %37, %36 : vector<2x96xf32>
      %39 = arith.divf %37, %38 : vector<2x96xf32>
      %40 = vector.extract_strided_slice %39 {offsets = [0, 0], sizes = [2, 32], strides = [1, 1]} : vector<2x96xf32> to vector<2x32xf32>
      %41 = vector.extract_strided_slice %39 {offsets = [0, 32], sizes = [2, 32], strides = [1, 1]} : vector<2x96xf32> to vector<2x32xf32>
      %42 = vector.extract_strided_slice %39 {offsets = [0, 64], sizes = [2, 32], strides = [1, 1]} : vector<2x96xf32> to vector<2x32xf32>
      %43 = vector.extract_strided_slice %33 {offsets = [0, 96], sizes = [2, 32], strides = [1, 1]} : vector<2x128xf32> to vector<2x32xf32>
      %44 = math.tanh %43 : vector<2x32xf32>
      %45 = arith.mulf %41, %29 : vector<2x32xf32>
      %46 = arith.mulf %40, %44 : vector<2x32xf32>
      %47 = arith.addf %45, %46 : vector<2x32xf32>
      %48 = math.tanh %47 : vector<2x32xf32>
      %49 = arith.mulf %42, %48 : vector<2x32xf32>
      %50 = arith.truncf %49 : vector<2x32xf32> to vector<2x32xbf16>
      %c0_31 = arith.constant 0 : index
      %c6 = arith.constant 6 : index
      %c0_32 = arith.constant 0 : index
      %51 = vector.load %arg6[%c0_31, %c6, %c0_32] : memref<1x8x32xbf16, #tpu.memory_space<vmem>>, vector<1x2x32xbf16>
      %52 = vector.shape_cast %51 : vector<1x2x32xbf16> to vector<2x32xbf16>
      %53 = vector.shape_cast %50 : vector<2x32xbf16> to vector<1x2x32xbf16>
      tpu.vector_store %arg6[%c0_31, %c6, %c0_32], %53 {strides = array<i32>} : memref<1x8x32xbf16, #tpu.memory_space<vmem>>, vector<1x2x32xbf16>,
      %54 = vector.extract_strided_slice %17 {offsets = [4, 0], sizes = [2, 128], strides = [1, 1]} : vector<8x128xf32> to vector<2x128xf32>
      %55 = arith.truncf %49 : vector<2x32xf32> to vector<2x32xbf16>
      %cst_33 = arith.constant dense<0.000000e+00> : vector<2x128xf32>
      %56 = tpu.matmul %55, %19, %cst_33 {dimension_numbers = #tpu.dot_dimension_numbers<[1], [0], [0], [1], [0, 0, 1, 1], [], []>} : vector<2x32xbf16>, vector<32x128xbf16>, vector<2x128xf32> -> vector<2x128xf32>
      %57 = arith.addf %54, %56 : vector<2x128xf32>
      %58 = vector.extract_strided_slice %57 {offsets = [0, 0], sizes = [2, 96], strides = [1, 1]} : vector<2x128xf32> to vector<2x96xf32>
      %59 = arith.negf %58 : vector<2x96xf32>
      %60 = math.exp %59 : vector<2x96xf32>
      %cst_34 = arith.constant 1.000000e+00 : f32
      %61 = vector.broadcast %cst_34 : f32 to vector<2x96xf32>
      %62 = arith.addf %61, %60 : vector<2x96xf32>
      %63 = arith.divf %61, %62 : vector<2x96xf32>
      %64 = vector.extract_strided_slice %63 {offsets = [0, 0], sizes = [2, 32], strides = [1, 1]} : vector<2x96xf32> to vector<2x32xf32>
      %65 = vector.extract_strided_slice %63 {offsets = [0, 32], sizes = [2, 32], strides = [1, 1]} : vector<2x96xf32> to vector<2x32xf32>
      %66 = vector.extract_strided_slice %63 {offsets = [0, 64], sizes = [2, 32], strides = [1, 1]} : vector<2x96xf32> to vector<2x32xf32>
      %67 = vector.extract_strided_slice %57 {offsets = [0, 96], sizes = [2, 32], strides = [1, 1]} : vector<2x128xf32> to vector<2x32xf32>
      %68 = math.tanh %67 : vector<2x32xf32>
      %69 = arith.mulf %65, %47 : vector<2x32xf32>
      %70 = arith.mulf %64, %68 : vector<2x32xf32>
      %71 = arith.addf %69, %70 : vector<2x32xf32>
      %72 = math.tanh %71 : vector<2x32xf32>
      %73 = arith.mulf %66, %72 : vector<2x32xf32>
      %74 = arith.truncf %73 : vector<2x32xf32> to vector<2x32xbf16>
      %c0_35 = arith.constant 0 : index
      %c4 = arith.constant 4 : index
      %c0_36 = arith.constant 0 : index
      %75 = vector.load %arg6[%c0_35, %c4, %c0_36] : memref<1x8x32xbf16, #tpu.memory_space<vmem>>, vector<1x2x32xbf16>
      %76 = vector.shape_cast %75 : vector<1x2x32xbf16> to vector<2x32xbf16>
      %77 = vector.shape_cast %74 : vector<2x32xbf16> to vector<1x2x32xbf16>
      tpu.vector_store %arg6[%c0_35, %c4, %c0_36], %77 {strides = array<i32>} : memref<1x8x32xbf16, #tpu.memory_space<vmem>>, vector<1x2x32xbf16>,
      %78 = vector.extract_strided_slice %17 {offsets = [2, 0], sizes = [2, 128], strides = [1, 1]} : vector<8x128xf32> to vector<2x128xf32>
      %79 = arith.truncf %73 : vector<2x32xf32> to vector<2x32xbf16>
      %cst_37 = arith.constant dense<0.000000e+00> : vector<2x128xf32>
      %80 = tpu.matmul %79, %19, %cst_37 {dimension_numbers = #tpu.dot_dimension_numbers<[1], [0], [0], [1], [0, 0, 1, 1], [], []>} : vector<2x32xbf16>, vector<32x128xbf16>, vector<2x128xf32> -> vector<2x128xf32>
      %81 = arith.addf %78, %80 : vector<2x128xf32>
      %82 = vector.extract_strided_slice %81 {offsets = [0, 0], sizes = [2, 96], strides = [1, 1]} : vector<2x128xf32> to vector<2x96xf32>
      %83 = arith.negf %82 : vector<2x96xf32>
      %84 = math.exp %83 : vector<2x96xf32>
      %cst_38 = arith.constant 1.000000e+00 : f32
      %85 = vector.broadcast %cst_38 : f32 to vector<2x96xf32>
      %86 = arith.addf %85, %84 : vector<2x96xf32>
      %87 = arith.divf %85, %86 : vector<2x96xf32>
      %88 = vector.extract_strided_slice %87 {offsets = [0, 0], sizes = [2, 32], strides = [1, 1]} : vector<2x96xf32> to vector<2x32xf32>
      %89 = vector.extract_strided_slice %87 {offsets = [0, 32], sizes = [2, 32], strides = [1, 1]} : vector<2x96xf32> to vector<2x32xf32>
      %90 = vector.extract_strided_slice %87 {offsets = [0, 64], sizes = [2, 32], strides = [1, 1]} : vector<2x96xf32> to vector<2x32xf32>
      %91 = vector.extract_strided_slice %81 {offsets = [0, 96], sizes = [2, 32], strides = [1, 1]} : vector<2x128xf32> to vector<2x32xf32>
      %92 = math.tanh %91 : vector<2x32xf32>
      %93 = arith.mulf %89, %71 : vector<2x32xf32>
      %94 = arith.mulf %88, %92 : vector<2x32xf32>
      %95 = arith.addf %93, %94 : vector<2x32xf32>
      %96 = math.tanh %95 : vector<2x32xf32>
      %97 = arith.mulf %90, %96 : vector<2x32xf32>
      %98 = arith.truncf %97 : vector<2x32xf32> to vector<2x32xbf16>
      %c0_39 = arith.constant 0 : index
      %c2 = arith.constant 2 : index
      %c0_40 = arith.constant 0 : index
      %99 = vector.load %arg6[%c0_39, %c2, %c0_40] : memref<1x8x32xbf16, #tpu.memory_space<vmem>>, vector<1x2x32xbf16>
      %100 = vector.shape_cast %99 : vector<1x2x32xbf16> to vector<2x32xbf16>
      %101 = vector.shape_cast %98 : vector<2x32xbf16> to vector<1x2x32xbf16>
      tpu.vector_store %arg6[%c0_39, %c2, %c0_40], %101 {strides = array<i32>} : memref<1x8x32xbf16, #tpu.memory_space<vmem>>, vector<1x2x32xbf16>,
      %102 = vector.extract_strided_slice %17 {offsets = [0, 0], sizes = [2, 128], strides = [1, 1]} : vector<8x128xf32> to vector<2x128xf32>
      %103 = arith.truncf %97 : vector<2x32xf32> to vector<2x32xbf16>
      %cst_41 = arith.constant dense<0.000000e+00> : vector<2x128xf32>
      %104 = tpu.matmul %103, %19, %cst_41 {dimension_numbers = #tpu.dot_dimension_numbers<[1], [0], [0], [1], [0, 0, 1, 1], [], []>} : vector<2x32xbf16>, vector<32x128xbf16>, vector<2x128xf32> -> vector<2x128xf32>
      %105 = arith.addf %102, %104 : vector<2x128xf32>
      %106 = vector.extract_strided_slice %105 {offsets = [0, 0], sizes = [2, 96], strides = [1, 1]} : vector<2x128xf32> to vector<2x96xf32>
      %107 = arith.negf %106 : vector<2x96xf32>
      %108 = math.exp %107 : vector<2x96xf32>
      %cst_42 = arith.constant 1.000000e+00 : f32
      %109 = vector.broadcast %cst_42 : f32 to vector<2x96xf32>
      %110 = arith.addf %109, %108 : vector<2x96xf32>
      %111 = arith.divf %109, %110 : vector<2x96xf32>
      %112 = vector.extract_strided_slice %111 {offsets = [0, 0], sizes = [2, 32], strides = [1, 1]} : vector<2x96xf32> to vector<2x32xf32>
      %113 = vector.extract_strided_slice %111 {offsets = [0, 32], sizes = [2, 32], strides = [1, 1]} : vector<2x96xf32> to vector<2x32xf32>
      %114 = vector.extract_strided_slice %111 {offsets = [0, 64], sizes = [2, 32], strides = [1, 1]} : vector<2x96xf32> to vector<2x32xf32>
      %115 = vector.extract_strided_slice %105 {offsets = [0, 96], sizes = [2, 32], strides = [1, 1]} : vector<2x128xf32> to vector<2x32xf32>
      %116 = math.tanh %115 : vector<2x32xf32>
      %117 = arith.mulf %113, %95 : vector<2x32xf32>
      %118 = arith.mulf %112, %116 : vector<2x32xf32>
      %119 = arith.addf %117, %118 : vector<2x32xf32>
      %120 = math.tanh %119 : vector<2x32xf32>
      %121 = arith.mulf %114, %120 : vector<2x32xf32>
      %122 = arith.truncf %121 : vector<2x32xf32> to vector<2x32xbf16>
      %c0_43 = arith.constant 0 : index
      %c0_44 = arith.constant 0 : index
      %c0_45 = arith.constant 0 : index
      %123 = vector.load %arg6[%c0_43, %c0_44, %c0_45] : memref<1x8x32xbf16, #tpu.memory_space<vmem>>, vector<1x2x32xbf16>
      %124 = vector.shape_cast %123 : vector<1x2x32xbf16> to vector<2x32xbf16>
      %125 = vector.shape_cast %122 : vector<2x32xbf16> to vector<1x2x32xbf16>
      tpu.vector_store %arg6[%c0_43, %c0_44, %c0_45], %125 {strides = array<i32>} : memref<1x8x32xbf16, #tpu.memory_space<vmem>>, vector<1x2x32xbf16>,
      %c0_46 = arith.constant 0 : index
      %c0_47 = arith.constant 0 : index
      %c0_48 = arith.constant 0 : index
      %126 = vector.load %arg7[%c0_46, %c0_47, %c0_48] : memref<1x2x32xf32, #tpu.memory_space<vmem>>, vector<1x2x32xf32>
      %127 = vector.shape_cast %126 : vector<1x2x32xf32> to vector<2x32xf32>
      %128 = vector.shape_cast %121 : vector<2x32xf32> to vector<1x2x32xf32>
      tpu.vector_store %arg7[%c0_46, %c0_47, %c0_48], %128 {strides = array<i32>} : memref<1x2x32xf32, #tpu.memory_space<vmem>>, vector<1x2x32xf32>,
      %c0_49 = arith.constant 0 : index
      %c0_50 = arith.constant 0 : index
      %c0_51 = arith.constant 0 : index
      %129 = vector.load %arg8[%c0_49, %c0_50, %c0_51] : memref<1x2x32xf32, #tpu.memory_space<vmem>>, vector<1x2x32xf32>
      %130 = vector.shape_cast %129 : vector<1x2x32xf32> to vector<2x32xf32>
      %131 = vector.shape_cast %119 : vector<2x32xf32> to vector<1x2x32xf32>
      tpu.vector_store %arg8[%c0_49, %c0_50, %c0_51], %131 {strides = array<i32>} : memref<1x2x32xf32, #tpu.memory_space<vmem>>, vector<1x2x32xf32>,
    } else {
    }
    return
  }
  func.func @transform_0(%arg0: i32, %arg1: i32) -> (i32, i32, i32) {
    %c2_i32 = arith.constant 2 : i32
    %0 = arith.muli %c2_i32, %arg1 : i32
    %c1_i32 = arith.constant 1 : i32
    %1 = arith.subi %c1_i32, %0 : i32
    %2 = arith.muli %arg0, %1 : i32
    %3 = arith.addi %arg1, %2 : i32
    %c0_i32 = arith.constant 0 : i32
    %c0_i32_0 = arith.constant 0 : i32
    %c0_i32_1 = arith.constant 0 : i32
    return %c0_i32, %3, %c0_i32_0 : i32, i32, i32
  }
  func.func @transform_1(%arg0: i32, %arg1: i32) -> (i32, i32, i32, i32) {
    %c0_i32 = arith.constant 0 : i32
    %c0_i32_0 = arith.constant 0 : i32
    %c0_i32_1 = arith.constant 0 : i32
    %c0_i32_2 = arith.constant 0 : i32
    return %arg0, %c0_i32, %c0_i32_0, %c0_i32_1 : i32, i32, i32, i32
  }
  func.func @transform_2(%arg0: i32, %arg1: i32) -> (i32, i32, i32) {
    %c0_i32 = arith.constant 0 : i32
    %c0_i32_0 = arith.constant 0 : i32
    %c0_i32_1 = arith.constant 0 : i32
    return %arg0, %c0_i32, %c0_i32_0 : i32, i32, i32
  }
  func.func @transform_3(%arg0: i32, %arg1: i32) -> (i32, i32, i32) {
    %c0_i32 = arith.constant 0 : i32
    %c0_i32_0 = arith.constant 0 : i32
    %c0_i32_1 = arith.constant 0 : i32
    return %arg0, %c0_i32, %c0_i32_0 : i32, i32, i32
  }
  func.func @transform_4(%arg0: i32, %arg1: i32) -> (i32, i32, i32) {
    %c2_i32 = arith.constant 2 : i32
    %0 = arith.muli %c2_i32, %arg1 : i32
    %c1_i32 = arith.constant 1 : i32
    %1 = arith.subi %c1_i32, %0 : i32
    %2 = arith.muli %arg0, %1 : i32
    %3 = arith.addi %arg1, %2 : i32
    %c0_i32 = arith.constant 0 : i32
    %c0_i32_0 = arith.constant 0 : i32
    return %arg0, %3, %c0_i32 : i32, i32, i32
  }
  func.func @transform_5(%arg0: i32, %arg1: i32) -> (i32, i32, i32) {
    %c0_i32 = arith.constant 0 : i32
    %c0_i32_0 = arith.constant 0 : i32
    %c0_i32_1 = arith.constant 0 : i32
    return %arg0, %c0_i32, %c0_i32_0 : i32, i32, i32
  }
  func.func @transform_6(%arg0: i32, %arg1: i32) -> (i32, i32, i32) {
    %c0_i32 = arith.constant 0 : i32
    %c0_i32_0 = arith.constant 0 : i32
    %c0_i32_1 = arith.constant 0 : i32
    return %arg0, %c0_i32, %c0_i32_0 : i32, i32, i32
  }
}

</mosaic_0001>

<llo_original>
// kernel: _lambda_.5
$region0: #{_lambda_.5}
  #allocation0 [shape = 'u32[]', space=smem, size = 0x4, offset = 0x4, fixed_abs, tag = 'smem constant byte address 0x4 - core index']
  #allocation1 [shape = 'u32[144,128]{1,0:T(1,128)}', space=vmem, size = 0x12000, scoped, tag = 'internal scratch']
  %s0 = inlined_call_operand.vmem [shape: bf16[2,16,32], index: 0, kind: input, shape index: {}]
  %s1 = inlined_call_operand.vmem [shape: bf16[1,2,32,32], index: 1, kind: input, shape index: {}]
  %s2 = inlined_call_operand.vmem [shape: f32[1,1,32], index: 2, kind: input, shape index: {}]
  %s3 = inlined_call_operand.hbm [shape: f32[1,16,32], index: 3, kind: output, shape index: {}]
  %s4 = sld [smem:[#allocation0]]
  $region22: #{_lambda_.5} parent=0
    _
  %s6 = ssub.s32 1, %s4
  %s7 = scalar_select 0, %s6, %s4
  $region1: #{_lambda_.5} parent=0
    #allocation2 [shape = 'u8[8192]{0}', space=vmem, size = 0x2000, scoped, tag = 'output window, operand 0, single buffered']
    #allocation3 [shape = 's32[1]{0}', space=sflag, size = 0x4, scoped, tag = 'scoped memory for _lambda_.5']
    %8 = vsyncpa [#allocation3], 0
    // Predicated region
    $region2: #{_lambda_.5} parent=1 // pred_check
      _
    $region3: #{_lambda_.5} parent=1 // pred_check_branch
      %10 = sbr.rel (0) target = $region5
    $region4: #{_lambda_.5} parent=1 // pred_region
      _
    $region5: #{_lambda_.5} parent=1 // pred_fallthru
      _
    // Predicated region
    $region6: #{_lambda_.5} parent=1 // pred_check
      _
    $region7: #{_lambda_.5} parent=1 // pred_check_branch
      %12 = sbr.rel (0) target = $region9
    $region8: #{_lambda_.5} parent=1 // pred_region
      _
    $region9: #{_lambda_.5} parent=1 // pred_fallthru
      _
    // Predicated region
    $region10: #{_lambda_.5} parent=1 // pred_check
      _
    $region11: #{_lambda_.5} parent=1 // pred_check_branch
      %14 = sbr.rel (0) target = $region13
    $region12: #{_lambda_.5} parent=1 // pred_region
      _
    $region13: #{_lambda_.5} parent=1 // pred_fallthru
      _
    %v16 = vld [vmem:[%s2] sm:$0x1]
    %v17 = vld [vmem:[%s0] sm:$0xf]
    %v18 = vld [vmem:[%s0 + $0x4] sm:$0xf]
    %v19 = vld [vmem:[%s1] sm:$0xf]
    %v20 = vld [vmem:[%s1 + $0x4] sm:$0xf]
    %v21 = vld [vmem:[%s1 + $0x8] sm:$0xf]
    %v22 = vld [vmem:[%s1 + $0xc] sm:$0xf]
    %v25 = vunpack.c.l.b16 %v17
    %v26 = vunpack.c.l.b16 %v18
    %v27 = vpack.c.b16 %v26, %v25
    %v32 = vunpack.c.l.b16 %v19
    %v33 = vunpack.c.l.b16 %v20
    %v34 = vunpack.c.l.b16 %v21
    %v35 = vunpack.c.l.b16 %v22
    %v36 = vpack.c.b16 %v33, %v32
    %v37 = vpack.c.b16 %v35, %v34
    %vm40 = vcmask 261120
    %v42 = vsel %vm40, %v27, 0
    %44 = vmatprep.subr.bf16.mxu0 0
    %45 = vmatpush1.bf16.msra.mxu0 0
    %46 = vmatprep.subr.bf16.mxu0 0
    %47 = vmatpush1.bf16.msra.mxu0 0
    %48 = vmatprep.subr.bf16.mxu0 0
    %49 = vmatpush1.bf16.msra.mxu0 0
    %50 = vmatprep.subr.bf16.mxu0 0
    %51 = vmatpush1.bf16.msra.mxu0 0
    %52 = vmatprep.subr.bf16.mxu0 0
    %53 = vmatpush1.bf16.msra.mxu0 0
    %54 = vmatprep.subr.bf16.mxu0 0
    %55 = vmatpush1.bf16.msra.mxu0 0
    %56 = vmatprep.subr.bf16.mxu0 0
    %57 = vmatpush1.bf16.msra.mxu0 %v37
    %58 = vmatprep.subr.bf16.mxu0 0
    %59 = vmatpush1.bf16.msra.mxu0 %v36
    %60 = vmatprep.subr.bf16.mxu0 0
    %61 = vmatpush2.bf16.msra.mxu0 0
    %62 = vmatprep.subr.bf16.mxu0 0
    %63 = vmatpush2.bf16.msra.mxu0 0
    %64 = vmatprep.subr.bf16.mxu0 0
    %65 = vmatpush2.bf16.msra.mxu0 0
    %66 = vmatprep.subr.bf16.mxu0 0
    %67 = vmatpush2.bf16.msra.mxu0 0
    %68 = vmatprep.subr.bf16.mxu0 0
    %69 = vmatpush2.bf16.msra.mxu0 0
    %70 = vmatprep.subr.bf16.mxu0 0
    %71 = vmatpush2.bf16.msra.mxu0 0
    %72 = vmatprep.subr.bf16.mxu0 0
    %73 = vmatpush2.bf16.msra.mxu0 0
    %74 = vmatprep.subr.bf16.mxu0 0
    %75 = vmatpush2.bf16.msra.mxu0 0
    %76 = vmatprep.mubr.bf16.mxu0 0
    %77 = vmatmul.mubr.bf16.gmra.mxu0 %v42
    %v78 = vpop.f32.mrf.mxu0
    %v79 = vadd.f32 0.0, %v78
    %v80 = vpop.f32.mrf.mxu0
    %v81 = vpop.f32.mrf.mxu0
    %v82 = vadd.f32 0.0, %v81
    %v83 = vpop.f32.mrf.mxu0
    %84 = vdwg.mxu0
    %v86 = vlaneseq
    %v87 = vshrl.u32 %v86, 7
    %v88 = vsub.s32 0, %v87
    %v89 = vrot.slane %v16, %v88
    %v91 = vadd.f32 %v89, %v79
    %v92 = vadd.f32 %v89, %v82
    %s93 = scalar_lea.vmem %s0, 8
    %v94 = vld [vmem:[%s93] sm:$0xf]
    %v95 = vld [vmem:[%s93 + $0x4] sm:$0xf]
    %s96 = scalar_lea.vmem %s1, 16
    %v97 = vld [vmem:[%s96] sm:$0xf]
    %v98 = vld [vmem:[%s96 + $0x4] sm:$0xf]
    %v99 = vld [vmem:[%s96 + $0x8] sm:$0xf]
    %v100 = vld [vmem:[%s96 + $0xc] sm:$0xf]
    %v103 = vunpack.c.l.b16 %v94
    %v104 = vunpack.c.l.b16 %v95
    %v105 = vpack.c.b16 %v104, %v103
    %v110 = vunpack.c.l.b16 %v97
    %v111 = vunpack.c.l.b16 %v98
    %v112 = vunpack.c.l.b16 %v99
    %v113 = vunpack.c.l.b16 %v100
    %v114 = vpack.c.b16 %v111, %v110
    %v115 = vpack.c.b16 %v113, %v112
    %v119 = vsel %vm40, %v105, 0
    %121 = vmatprep.subr.bf16.mxu0 0
    %122 = vmatpush1.bf16.msra.mxu0 0
    %123 = vmatprep.subr.bf16.mxu0 0
    %124 = vmatpush1.bf16.msra.mxu0 0
    %125 = vmatprep.subr.bf16.mxu0 0
    %126 = vmatpush1.bf16.msra.mxu0 0
    %127 = vmatprep.subr.bf16.mxu0 0
    %128 = vmatpush1.bf16.msra.mxu0 0
    %129 = vmatprep.subr.bf16.mxu0 0
    %130 = vmatpush1.bf16.msra.mxu0 0
    %131 = vmatprep.subr.bf16.mxu0 0
    %132 = vmatpush1.bf16.msra.mxu0 0
    %133 = vmatprep.subr.bf16.mxu0 0
    %134 = vmatpush1.bf16.msra.mxu0 %v115
    %135 = vmatprep.subr.bf16.mxu0 0
    %136 = vmatpush1.bf16.msra.mxu0 %v114
    %137 = vmatprep.subr.bf16.mxu0 0
    %138 = vmatpush2.bf16.msra.mxu0 0
    %139 = vmatprep.subr.bf16.mxu0 0
    %140 = vmatpush2.bf16.msra.mxu0 0
    %141 = vmatprep.subr.bf16.mxu0 0
    %142 = vmatpush2.bf16.msra.mxu0 0
    %143 = vmatprep.subr.bf16.mxu0 0
    %144 = vmatpush2.bf16.msra.mxu0 0
    %145 = vmatprep.subr.bf16.mxu0 0
    %146 = vmatpush2.bf16.msra.mxu0 0
    %147 = vmatprep.subr.bf16.mxu0 0
    %148 = vmatpush2.bf16.msra.mxu0 0
    %149 = vmatprep.subr.bf16.mxu0 0
    %150 = vmatpush2.bf16.msra.mxu0 0
    %151 = vmatprep.subr.bf16.mxu0 0
    %152 = vmatpush2.bf16.msra.mxu0 0
    %153 = vmatprep.mubr.bf16.mxu0 0
    %154 = vmatmul.mubr.bf16.gmra.mxu0 %v119
    %v155 = vpop.f32.mrf.mxu0
    %v156 = vadd.f32 0.0, %v155
    %v157 = vpop.f32.mrf.mxu0
    %v158 = vpop.f32.mrf.mxu0
    %v159 = vadd.f32 0.0, %v158
    %v160 = vpop.f32.mrf.mxu0
    %161 = vdwg.mxu0
    %v162 = vadd.f32 %v91, %v156
    %v163 = vadd.f32 %v92, %v159
    %164 = vst.msk [vmem:[#allocation2] sm:$0xff] %vm40, %v162
    %165 = vst.msk [vmem:[#allocation2 + $0x8] sm:$0xff] %vm40, %v163
    // Predicated region
    $region14: #{_lambda_.5} parent=1 // pred_check
      _
    $region15: #{_lambda_.5} parent=1 // pred_check_branch
      %167 = sbr.rel (0) target = $region17
    $region16: #{_lambda_.5} parent=1 // pred_region
      %s169 = ssub.s32 256, 256
      %170 = vsyncadd [#allocation3], %s169
      %s171 = sshll.u32 [#allocation2], 4
      %s172 = int_to_ptr.vmem [resolvable:$true] %s171
      %177 = dma.vmem_to_hbm [thread:$0]  %s172, 256, %s3, [#allocation3], 128, 128, 8
    $region17: #{_lambda_.5} parent=1 // pred_fallthru
      _
    // Predicated region
    $region18: #{_lambda_.5} parent=1 // pred_check
      _
    $region19: #{_lambda_.5} parent=1 // pred_check_branch
      %179 = sbr.rel (0) target = $region21
    $region20: #{_lambda_.5} parent=1 // pred_region
      %180 = dma.done [#allocation3], 256
    $region21: #{_lambda_.5} parent=1 // pred_fallthru
      _
    %181 = vsyncpa [#allocation3], 1

// kernel: _lambda_.3
$region0: #{_lambda_.3}
  #allocation0 [shape = 'u32[]', space=smem, size = 0x4, offset = 0x4, fixed_abs, tag = 'smem constant byte address 0x4 - core index']
  #allocation1 [shape = 'u32[144,128]{1,0:T(1,128)}', space=vmem, size = 0x12000, scoped, tag = 'internal scratch']
  %s0 = inlined_call_operand.vmem [shape: bf16[1,16,32], index: 0, kind: input, shape index: {}]
  %s1 = inlined_call_operand.vmem [shape: bf16[2,1,32,128], index: 1, kind: input, shape index: {}]
  %s2 = inlined_call_operand.vmem [shape: f32[2,1,128], index: 2, kind: input, shape index: {}]
  %s3 = inlined_call_operand.vmem [shape: bf16[2,32,128], index: 3, kind: input, shape index: {}]
  %s4 = inlined_call_operand.vmem [shape: bf16[2,16,32], index: 4, kind: output, shape index: {0}]
  %s5 = inlined_call_operand.vmem [shape: f32[2,2,32], index: 5, kind: output, shape index: {1}]
  %s6 = inlined_call_operand.vmem [shape: f32[2,2,32], index: 6, kind: output, shape index: {2}]
  %7 = xla_tuple %s4, %s5, %s6
  %s8 = sld [smem:[#allocation0]]
  $region77: #{_lambda_.3} parent=0
    _
  %s10 = ssub.s32 1, %s8
  %s11 = scalar_select 0, %s10, %s8
  loop: start=0, step=1, limit=6
  $region2: #{_lambda_.3} parent=0 // loop_pre_header
    _
  $region3: #{_lambda_.3} parent=0 // loop_header
    %s13 = sphi 0, %s17
    %p14 = scmp.ge.s32.totalorder %s13, 6
    %s20 = sphi 0, %s32
    %s21 = sphi 0, %s28
    %s22 = sphi 0, %s20
    %s23 = sphi 0, %s21
    %s24 = sphi 0, %s22
    %s25 = sphi 0, %s23
    %s43 = sphi 0, %s45
    %s46 = sphi 0, %s43
    %s47 = sphi 0, %s46
    %s63 = sphi 0, %s47
    %s69 = sphi 0, %s71
    %s72 = sphi 0, %s69
    %s73 = sphi 0, %s72
    %s89 = sphi 0, %s73
    %s95 = sphi 0, %s97
    %s98 = sphi 0, %s95
    %s99 = sphi 0, %s98
    %s115 = sphi 0, %s99
    %s121 = sphi 0, %s123
    %s124 = sphi 0, %s121
    %s125 = sphi 0, %s124
    %s141 = sphi 0, %s125
    %s157 = sphi 0, %s159
    %s160 = sphi 0, %s157
    %s161 = sphi 0, %s160
    %s177 = sphi 0, %s161
    %s183 = sphi 0, %s185
    %s186 = sphi 0, %s183
    %s187 = sphi 0, %s186
    %s203 = sphi 0, %s187
    %s209 = sphi 0, %s211
    %s212 = sphi 0, %s209
    %s213 = sphi 0, %s212
    %s229 = sphi 0, %s213
  $region4: #{_lambda_.3} parent=0 // loop_header_branch
    %16 = sbr.rel (%p14) target = $region8
  $region5: #{_lambda_.3} parent=0 // loop_body
    %s18 = ssub.s32 %s13, 1
    %s19 = ssub.s32 %s13, 2
    %s26 = sadd.s32 1, %s21
    %p27 = scmp.ge.s32.totalorder %s26, 2
    %s28 = scalar_select %p27, 0, %s26
    %s29 = sadd.s32 1, %s20
    %s30 = scalar_select %p27, %s29, %s20
    %p31 = scmp.ge.s32.totalorder %s30, 2
    %s32 = scalar_select %p31, 0, %s30
    %s33 = smul.u32 %s21, 2
    %s34 = ssub.s32 1, %s33
    %s35 = smul.u32 %s20, %s34
    %s36 = sadd.s32 %s21, %s35
    %s37 = smul.u32 %s28, 2
    %s38 = ssub.s32 1, %s37
    %s39 = smul.u32 %s32, %s38
    %s40 = sadd.s32 %s28, %s39
    %s41 = ssub.s32 %s36, %s40
    %p42 = scmp.eq.s32.totalorder %s41, 0
    %s44 = sadd.s32 %s43, 1
    %s45 = scalar_select %p42, %s43, %s44
    %p48 = pneg %p42
    %p49 = scmp.eq.s32.totalorder %s13, 3
    %p50 = por %p48, %p49
    %p51 = scmp.ne.s32.totalorder %s43, %s46
    %p52 = scmp.eq.s32.totalorder %s13, 0
    %p53 = por %p51, %p52
    %p54 = scmp.ne.s32.totalorder %s43, %s46
    %p55 = scmp.eq.s32.totalorder %s18, 3
    %p56 = por %p54, %p55
    %p57 = scmp.ne.s32.totalorder %s46, %s47
    %p58 = scmp.eq.s32.totalorder %s18, 0
    %p59 = por %p57, %p58
    %p60 = scmp.ne.s32.totalorder %s46, %s47
    %p61 = scmp.eq.s32.totalorder %s19, 3
    %p62 = por %p60, %p61
    %p64 = scmp.ne.s32.totalorder %s47, %s63
    %p65 = scmp.eq.s32.totalorder %s19, 0
    %p66 = por %p64, %p65
    %s67 = ssub.s32 %s20, %s32
    %p68 = scmp.eq.s32.totalorder %s67, 0
    %s70 = sadd.s32 %s69, 1
    %s71 = scalar_select %p68, %s69, %s70
    %p74 = pneg %p68
    %p75 = scmp.eq.s32.totalorder %s13, 3
    %p76 = por %p74, %p75
    %p77 = scmp.ne.s32.totalorder %s69, %s72
    %p78 = scmp.eq.s32.totalorder %s13, 0
    %p79 = por %p77, %p78
    %p80 = scmp.ne.s32.totalorder %s69, %s72
    %p81 = scmp.eq.s32.totalorder %s18, 3
    %p82 = por %p80, %p81
    %p83 = scmp.ne.s32.totalorder %s72, %s73
    %p84 = scmp.eq.s32.totalorder %s18, 0
    %p85 = por %p83, %p84
    %p86 = scmp.ne.s32.totalorder %s72, %s73
    %p87 = scmp.eq.s32.totalorder %s19, 3
    %p88 = por %p86, %p87
    %p90 = scmp.ne.s32.totalorder %s73, %s89
    %p91 = scmp.eq.s32.totalorder %s19, 0
    %p92 = por %p90, %p91
    %s93 = ssub.s32 %s20, %s32
    %p94 = scmp.eq.s32.totalorder %s93, 0
    %s96 = sadd.s32 %s95, 1
    %s97 = scalar_select %p94, %s95, %s96
    %p100 = pneg %p94
    %p101 = scmp.eq.s32.totalorder %s13, 3
    %p102 = por %p100, %p101
    %p103 = scmp.ne.s32.totalorder %s95, %s98
    %p104 = scmp.eq.s32.totalorder %s13, 0
    %p105 = por %p103, %p104
    %p106 = scmp.ne.s32.totalorder %s95, %s98
    %p107 = scmp.eq.s32.totalorder %s18, 3
    %p108 = por %p106, %p107
    %p109 = scmp.ne.s32.totalorder %s98, %s99
    %p110 = scmp.eq.s32.totalorder %s18, 0
    %p111 = por %p109, %p110
    %p112 = scmp.ne.s32.totalorder %s98, %s99
    %p113 = scmp.eq.s32.totalorder %s19, 3
    %p114 = por %p112, %p113
    %p116 = scmp.ne.s32.totalorder %s99, %s115
    %p117 = scmp.eq.s32.totalorder %s19, 0
    %p118 = por %p116, %p117
    %s119 = ssub.s32 %s20, %s32
    %p120 = scmp.eq.s32.totalorder %s119, 0
    %s122 = sadd.s32 %s121, 1
    %s123 = scalar_select %p120, %s121, %s122
    %p126 = pneg %p120
    %p127 = scmp.eq.s32.totalorder %s13, 3
    %p128 = por %p126, %p127
    %p129 = scmp.ne.s32.totalorder %s121, %s124
    %p130 = scmp.eq.s32.totalorder %s13, 0
    %p131 = por %p129, %p130
    %p132 = scmp.ne.s32.totalorder %s121, %s124
    %p133 = scmp.eq.s32.totalorder %s18, 3
    %p134 = por %p132, %p133
    %p135 = scmp.ne.s32.totalorder %s124, %s125
    %p136 = scmp.eq.s32.totalorder %s18, 0
    %p137 = por %p135, %p136
    %p138 = scmp.ne.s32.totalorder %s124, %s125
    %p139 = scmp.eq.s32.totalorder %s19, 3
    %p140 = por %p138, %p139
    %p142 = scmp.ne.s32.totalorder %s125, %s141
    %p143 = scmp.eq.s32.totalorder %s19, 0
    %p144 = por %p142, %p143
    %s145 = smul.u32 %s21, 2
    %s146 = ssub.s32 1, %s145
    %s147 = smul.u32 %s20, %s146
    %s148 = sadd.s32 %s21, %s147
    %s149 = smul.u32 %s28, 2
    %s150 = ssub.s32 1, %s149
    %s151 = smul.u32 %s32, %s150
    %s152 = sadd.s32 %s28, %s151
    %s153 = ssub.s32 %s20, %s32
    %s154 = ssub.s32 %s148, %s152
    %s155 = sor.u32 %s153, %s154
    %p156 = scmp.eq.s32.totalorder %s155, 0
    %s158 = sadd.s32 %s157, 1
    %s159 = scalar_select %p156, %s157, %s158
    %p162 = pneg %p156
    %p163 = scmp.eq.s32.totalorder %s13, 3
    %p164 = por %p162, %p163
    %p165 = scmp.ne.s32.totalorder %s157, %s160
    %p166 = scmp.eq.s32.totalorder %s13, 0
    %p167 = por %p165, %p166
    %p168 = scmp.ne.s32.totalorder %s157, %s160
    %p169 = scmp.eq.s32.totalorder %s18, 3
    %p170 = por %p168, %p169
    %p171 = scmp.ne.s32.totalorder %s160, %s161
    %p172 = scmp.eq.s32.totalorder %s18, 0
    %p173 = por %p171, %p172
    %p174 = scmp.ne.s32.totalorder %s160, %s161
    %p175 = scmp.eq.s32.totalorder %s19, 3
    %p176 = por %p174, %p175
    %p178 = scmp.ne.s32.totalorder %s161, %s177
    %p179 = scmp.eq.s32.totalorder %s19, 0
    %p180 = por %p178, %p179
    %s181 = ssub.s32 %s20, %s32
    %p182 = scmp.eq.s32.totalorder %s181, 0
    %s184 = sadd.s32 %s183, 1
    %s185 = scalar_select %p182, %s183, %s184
    %p188 = pneg %p182
    %p189 = scmp.eq.s32.totalorder %s13, 3
    %p190 = por %p188, %p189
    %p191 = scmp.ne.s32.totalorder %s183, %s186
    %p192 = scmp.eq.s32.totalorder %s13, 0
    %p193 = por %p191, %p192
    %p194 = scmp.ne.s32.totalorder %s183, %s186
    %p195 = scmp.eq.s32.totalorder %s18, 3
    %p196 = por %p194, %p195
    %p197 = scmp.ne.s32.totalorder %s186, %s187
    %p198 = scmp.eq.s32.totalorder %s18, 0
    %p199 = por %p197, %p198
    %p200 = scmp.ne.s32.totalorder %s186, %s187
    %p201 = scmp.eq.s32.totalorder %s19, 3
    %p202 = por %p200, %p201
    %p204 = scmp.ne.s32.totalorder %s187, %s203
    %p205 = scmp.eq.s32.totalorder %s19, 0
    %p206 = por %p204, %p205
    %s207 = ssub.s32 %s20, %s32
    %p208 = scmp.eq.s32.totalorder %s207, 0
    %s210 = sadd.s32 %s209, 1
    %s211 = scalar_select %p208, %s209, %s210
    %p214 = pneg %p208
    %p215 = scmp.eq.s32.totalorder %s13, 3
    %p216 = por %p214, %p215
    %p217 = scmp.ne.s32.totalorder %s209, %s212
    %p218 = scmp.eq.s32.totalorder %s13, 0
    %p219 = por %p217, %p218
    %p220 = scmp.ne.s32.totalorder %s209, %s212
    %p221 = scmp.eq.s32.totalorder %s18, 3
    %p222 = por %p220, %p221
    %p223 = scmp.ne.s32.totalorder %s212, %s213
    %p224 = scmp.eq.s32.totalorder %s18, 0
    %p225 = por %p223, %p224
    %p226 = scmp.ne.s32.totalorder %s212, %s213
    %p227 = scmp.eq.s32.totalorder %s19, 3
    %p228 = por %p226, %p227
    %p230 = scmp.ne.s32.totalorder %s213, %s229
    %p231 = scmp.eq.s32.totalorder %s19, 0
    %p232 = por %p230, %p231
    %p233 = scmp.le.s32.totalorder 1, %s13
    %p234 = scmp.lt.s32.totalorder %s13, 5
    %p235 = pnand %p233, %p234
    %p236 = pneg %p235
    // Predicated region
    $region9: #{_lambda_.3} parent=5 // pred_check
      _
    $region10: #{_lambda_.3} parent=5 // pred_check_branch
      %238 = sbr.rel (%p235) target = $region12
    $region11: #{_lambda_.3} parent=5 // pred_region
      %s239 = ssub.s32 %s13, 1
    $region12: #{_lambda_.3} parent=5 // pred_fallthru
      _
    %p240 = scmp.lt.s32.totalorder %s13, 4
    // Predicated region
    $region13: #{_lambda_.3} parent=5 // pred_check
      %p241 = pneg %p240
    $region14: #{_lambda_.3} parent=5 // pred_check_branch
      %243 = sbr.rel (%p241) target = $region16
    $region15: #{_lambda_.3} parent=5 // pred_region
      // Predicated region
      $region17: #{_lambda_.3} parent=15 // pred_check
        %p244 = pneg %p53
      $region18: #{_lambda_.3} parent=15 // pred_check_branch
        %246 = sbr.rel (%p244) target = $region20
      $region19: #{_lambda_.3} parent=15 // pred_region
        %s247 = smul.u32 %s21, 2
        %s248 = ssub.s32 1, %s247
        %s249 = smul.u32 %s20, %s248
        %s250 = sadd.s32 %s21, %s249
        %p251 = scmp.lt.s32.totalorder %s250, 1
        %s252 = scalar_select %p251, %s250, 1
        %s253 = smul.addr %s252, 4
        %s254 = scalar_lea.vmem %s0, %s253
        %s255 = smul.u32 %s21, 2
        %s256 = ssub.s32 1, %s255
        %s257 = smul.u32 %s20, %s256
        %s258 = sadd.s32 %s21, %s257
      $region20: #{_lambda_.3} parent=15 // pred_fallthru
        _
      // Predicated region
      $region21: #{_lambda_.3} parent=15 // pred_check
        %p259 = pneg %p79
      $region22: #{_lambda_.3} parent=15 // pred_check_branch
        %261 = sbr.rel (%p259) target = $region24
      $region23: #{_lambda_.3} parent=15 // pred_region
        %p262 = scmp.lt.s32.totalorder %s20, 1
        %s263 = scalar_select %p262, %s20, 1
        %s264 = smul.addr %s263, 4
        %s265 = smul.addr %s264, 4
        %s266 = scalar_lea.vmem %s1, %s265
      $region24: #{_lambda_.3} parent=15 // pred_fallthru
        _
      // Predicated region
      $region25: #{_lambda_.3} parent=15 // pred_check
        %p267 = pneg %p105
      $region26: #{_lambda_.3} parent=15 // pred_check_branch
        %269 = sbr.rel (%p267) target = $region28
      $region27: #{_lambda_.3} parent=15 // pred_region
        %p270 = scmp.lt.s32.totalorder %s20, 1
        %s271 = scalar_select %p270, %s20, 1
        %s272 = scalar_lea.vmem %s2, %s271
      $region28: #{_lambda_.3} parent=15 // pred_fallthru
        _
      // Predicated region
      $region29: #{_lambda_.3} parent=15 // pred_check
        %p273 = pneg %p131
      $region30: #{_lambda_.3} parent=15 // pred_check_branch
        %275 = sbr.rel (%p273) target = $region32
      $region31: #{_lambda_.3} parent=15 // pred_region
        %p276 = scmp.lt.s32.totalorder %s20, 1
        %s277 = scalar_select %p276, %s20, 1
        %s278 = smul.addr %s277, 4
        %s279 = smul.addr %s278, 4
        %s280 = scalar_lea.vmem %s3, %s279
      $region32: #{_lambda_.3} parent=15 // pred_fallthru
        _
    $region16: #{_lambda_.3} parent=5 // pred_fallthru
      _
    %p281 = scmp.le.s32.totalorder 1, %s13
    %p282 = scmp.lt.s32.totalorder %s13, 5
    %p283 = pnand %p281, %p282
    %p284 = pneg %p283
    // Predicated region
    $region33: #{_lambda_.3} parent=5 // pred_check
      _
    $region34: #{_lambda_.3} parent=5 // pred_check_branch
      %286 = sbr.rel (%p283) target = $region36
    $region35: #{_lambda_.3} parent=5 // pred_region
      %s287 = ssub.s32 %s13, 1
      %s288 = smul.u32 %s23, 2
      %s289 = ssub.s32 1, %s288
      %s290 = smul.u32 %s22, %s289
      %s291 = sadd.s32 %s23, %s290
      %p292 = scmp.lt.s32.totalorder %s291, 1
      %s293 = scalar_select %p292, %s291, 1
      %s294 = smul.addr %s293, 4
      %s295 = scalar_lea.vmem %s0, %s294
      %p296 = pneg %p59
      %p297 = pneg %p56
      %p298 = scmp.lt.s32.totalorder %s22, 1
      %s299 = scalar_select %p298, %s22, 1
      %s300 = smul.addr %s299, 4
      %s301 = smul.addr %s300, 4
      %s302 = scalar_lea.vmem %s1, %s301
      %p303 = pneg %p85
      %p304 = pneg %p82
      %p305 = scmp.lt.s32.totalorder %s22, 1
      %s306 = scalar_select %p305, %s22, 1
      %s307 = scalar_lea.vmem %s2, %s306
      %p308 = pneg %p111
      %p309 = pneg %p108
      %p310 = scmp.lt.s32.totalorder %s22, 1
      %s311 = scalar_select %p310, %s22, 1
      %s312 = smul.addr %s311, 4
      %s313 = smul.addr %s312, 4
      %s314 = scalar_lea.vmem %s3, %s313
      %p315 = pneg %p137
      %p316 = pneg %p134
      %p317 = pneg %p173
      %p318 = pneg %p170
      %s319 = smul.u32 %s23, 2
      %s320 = ssub.s32 1, %s319
      %s321 = smul.u32 %s22, %s320
      %s322 = sadd.s32 %s23, %s321
      %p323 = scmp.lt.s32.totalorder %s22, 1
      %s324 = scalar_select %p323, %s22, 1
      %p325 = scmp.lt.s32.totalorder %s322, 1
      %s326 = scalar_select %p325, %s322, 1
      %s327 = smul.addr %s324, 2
      %s328 = sadd.s32 %s326, %s327
      %s329 = smul.addr %s328, 4
      %s330 = scalar_lea.vmem %s4, %s329
      %p331 = pneg %p199
      %p332 = pneg %p196
      %p333 = scmp.lt.s32.totalorder %s22, 1
      %s334 = scalar_select %p333, %s22, 1
      %s335 = smul.addr %s334, 2
      %s336 = scalar_lea.vmem %s5, %s335
      %p337 = pneg %p225
      %p338 = pneg %p222
      %p339 = scmp.lt.s32.totalorder %s22, 1
      %s340 = scalar_select %p339, %s22, 1
      %s341 = smul.addr %s340, 2
      %s342 = scalar_lea.vmem %s6, %s341
      %s343 = smul.u32 %s23, 2
      %s344 = ssub.s32 1, %s343
      %s345 = smul.u32 %s22, %s344
      %s346 = sadd.s32 %s23, %s345
      %p347 = scmp.lt.s32.totalorder %s346, 1
      %s348 = scalar_select %p347, %s346, 1
      %s349 = smul.addr %s348, 4
      %s350 = scalar_lea.vmem %s0, %s349
      %s351 = smul.u32 %s23, 2
      %s352 = ssub.s32 1, %s351
      %s353 = smul.u32 %s22, %s352
      %s354 = sadd.s32 %s23, %s353
      %p355 = scmp.lt.s32.totalorder %s22, 1
      %s356 = scalar_select %p355, %s22, 1
      %s357 = smul.addr %s356, 4
      %s358 = smul.addr %s357, 4
      %s359 = scalar_lea.vmem %s1, %s358
      %p360 = scmp.lt.s32.totalorder %s22, 1
      %s361 = scalar_select %p360, %s22, 1
      %s362 = scalar_lea.vmem %s2, %s361
      %p363 = scmp.lt.s32.totalorder %s22, 1
      %s364 = scalar_select %p363, %s22, 1
      %s365 = smul.addr %s364, 4
      %s366 = smul.addr %s365, 4
      %s367 = scalar_lea.vmem %s3, %s366
      %s368 = smul.u32 %s23, 2
      %s369 = ssub.s32 1, %s368
      %s370 = smul.u32 %s22, %s369
      %s371 = sadd.s32 %s23, %s370
      %p372 = scmp.lt.s32.totalorder %s22, 1
      %s373 = scalar_select %p372, %s22, 1
      %p374 = scmp.lt.s32.totalorder %s371, 1
      %s375 = scalar_select %p374, %s371, 1
      %s376 = smul.addr %s373, 2
      %s377 = sadd.s32 %s375, %s376
      %s378 = smul.addr %s377, 4
      %s379 = scalar_lea.vmem %s4, %s378
      %s380 = smul.u32 %s23, 2
      %s381 = ssub.s32 1, %s380
      %s382 = smul.u32 %s22, %s381
      %s383 = sadd.s32 %s23, %s382
      %p384 = scmp.lt.s32.totalorder %s22, 1
      %s385 = scalar_select %p384, %s22, 1
      %s386 = smul.addr %s385, 2
      %s387 = scalar_lea.vmem %s5, %s386
      %p388 = scmp.lt.s32.totalorder %s22, 1
      %s389 = scalar_select %p388, %s22, 1
      %s390 = smul.addr %s389, 2
      %s391 = scalar_lea.vmem %s6, %s390
      %p393 = scmp.eq.s32.totalorder %s23, 0
      // Predicated region
      $region37: #{_lambda_.3} parent=35 // pred_check
        %p394 = pneg %p393
      $region38: #{_lambda_.3} parent=35 // pred_check_branch
        %396 = sbr.rel (%p394) target = $region40
      $region39: #{_lambda_.3} parent=35 // pred_region
        %vm397 = vcmask 254976
        %398 = vst.msk [vmem:[%s387] sm:$0x3] %vm397, 0.0
        %399 = vst.msk [vmem:[%s391] sm:$0x3] %vm397, 0.0
      $region40: #{_lambda_.3} parent=35 // pred_fallthru
        _
      %v400 = vld [vmem:[%s362] sm:$0x1]
      %v401 = vld [vmem:[%s350] sm:$0xf]
      %v402 = vld [vmem:[%s359] sm:$0xf]
      %v403 = vld [vmem:[%s359 + $0x4] sm:$0xf]
      %v404 = vld [vmem:[%s359 + $0x8] sm:$0xf]
      %v405 = vld [vmem:[%s359 + $0xc] sm:$0xf]
      %v410 = vunpack.c.l.b16 %v402
      %v411 = vunpack.c.l.b16 %v403
      %v412 = vunpack.c.l.b16 %v404
      %v413 = vunpack.c.l.b16 %v405
      %v414 = vpack.c.b16 %v411, %v410
      %v415 = vpack.c.b16 %v413, %v412
      %vm418 = vcmask 261120
      %v420 = vsel %vm418, %v401, 0
      %422 = vmatprep.subr.bf16.mxu0 0
      %423 = vmatpush1.bf16.msra.mxu0 0
      %424 = vmatprep.subr.bf16.mxu0 0
      %425 = vmatpush1.bf16.msra.mxu0 0
      %426 = vmatprep.subr.bf16.mxu0 0
      %427 = vmatpush1.bf16.msra.mxu0 0
      %428 = vmatprep.subr.bf16.mxu0 0
      %429 = vmatpush1.bf16.msra.mxu0 0
      %430 = vmatprep.subr.bf16.mxu0 0
      %431 = vmatpush1.bf16.msra.mxu0 0
      %432 = vmatprep.subr.bf16.mxu0 0
      %433 = vmatpush1.bf16.msra.mxu0 0
      %434 = vmatprep.subr.bf16.mxu0 0
      %435 = vmatpush1.bf16.msra.mxu0 %v415
      %436 = vmatprep.subr.bf16.mxu0 0
      %437 = vmatpush1.bf16.msra.mxu0 %v414
      %438 = vmatprep.subr.bf16.mxu0 0
      %439 = vmatpush2.bf16.msra.mxu0 0
      %440 = vmatprep.subr.bf16.mxu0 0
      %441 = vmatpush2.bf16.msra.mxu0 0
      %442 = vmatprep.subr.bf16.mxu0 0
      %443 = vmatpush2.bf16.msra.mxu0 0
      %444 = vmatprep.subr.bf16.mxu0 0
      %445 = vmatpush2.bf16.msra.mxu0 0
      %446 = vmatprep.subr.bf16.mxu0 0
      %447 = vmatpush2.bf16.msra.mxu0 0
      %448 = vmatprep.subr.bf16.mxu0 0
      %449 = vmatpush2.bf16.msra.mxu0 0
      %450 = vmatprep.subr.bf16.mxu0 0
      %451 = vmatpush2.bf16.msra.mxu0 0
      %452 = vmatprep.subr.bf16.mxu0 0
      %453 = vmatpush2.bf16.msra.mxu0 0
      %454 = vmatprep.mubr.bf16.mxu0 0
      %455 = vmatmul.mubr.bf16.gmra.mxu0 %v420
      %v456 = vpop.f32.mrf.mxu0
      %v457 = vadd.f32 0.0, %v456
      %v458 = vpop.f32.mrf.mxu0
      %v459 = vpop.f32.mrf.mxu0
      %v460 = vpop.f32.mrf.mxu0
      %461 = vdwg.mxu0
      %v463 = vlaneseq
      %v464 = vshrl.u32 %v463, 7
      %v465 = vsub.s32 0, %v464
      %v466 = vrot.slane %v400, %v465
      %v468 = vadd.f32 %v466, %v457
      %v469 = vld [vmem:[%s367] sm:$0xf]
      %v470 = vld [vmem:[%s367 + $0x4] sm:$0xf]
      %v471 = vld [vmem:[%s367 + $0x8] sm:$0xf]
      %v472 = vld [vmem:[%s367 + $0xc] sm:$0xf]
      %p473 = scmp.eq.s32.totalorder %s22, 0
      // Predicated region
      $region41: #{_lambda_.3} parent=35 // pred_check
        %p474 = pneg %p473
      $region42: #{_lambda_.3} parent=35 // pred_check_branch
        %476 = sbr.rel (%p474) target = $region44
      $region43: #{_lambda_.3} parent=35 // pred_region
        %v477 = vld [vmem:[%s387] sm:$0x3]
        %v478 = vld [vmem:[%s391] sm:$0x3]
        %v479 = vpack.c.bf16 %v477, %v477
        %v484 = vunpack.c.l.b16 %v469
        %v485 = vunpack.c.l.b16 %v470
        %v486 = vunpack.c.l.b16 %v471
        %v487 = vunpack.c.l.b16 %v472
        %v488 = vpack.c.b16 %v485, %v484
        %v489 = vpack.c.b16 %v487, %v486
        %v493 = vsel %vm418, %v479, 0
        %495 = vmatprep.subr.bf16.mxu0 0
        %496 = vmatpush1.bf16.msra.mxu0 0
        %497 = vmatprep.subr.bf16.mxu0 0
        %498 = vmatpush1.bf16.msra.mxu0 0
        %499 = vmatprep.subr.bf16.mxu0 0
        %500 = vmatpush1.bf16.msra.mxu0 0
        %501 = vmatprep.subr.bf16.mxu0 0
        %502 = vmatpush1.bf16.msra.mxu0 0
        %503 = vmatprep.subr.bf16.mxu0 0
        %504 = vmatpush1.bf16.msra.mxu0 0
        %505 = vmatprep.subr.bf16.mxu0 0
        %506 = vmatpush1.bf16.msra.mxu0 0
        %507 = vmatprep.subr.bf16.mxu0 0
        %508 = vmatpush1.bf16.msra.mxu0 %v489
        %509 = vmatprep.subr.bf16.mxu0 0
        %510 = vmatpush1.bf16.msra.mxu0 %v488
        %511 = vmatprep.subr.bf16.mxu0 0
        %512 = vmatpush2.bf16.msra.mxu0 0
        %513 = vmatprep.subr.bf16.mxu0 0
        %514 = vmatpush2.bf16.msra.mxu0 0
        %515 = vmatprep.subr.bf16.mxu0 0
        %516 = vmatpush2.bf16.msra.mxu0 0
        %517 = vmatprep.subr.bf16.mxu0 0
        %518 = vmatpush2.bf16.msra.mxu0 0
        %519 = vmatprep.subr.bf16.mxu0 0
        %520 = vmatpush2.bf16.msra.mxu0 0
        %521 = vmatprep.subr.bf16.mxu0 0
        %522 = vmatpush2.bf16.msra.mxu0 0
        %523 = vmatprep.subr.bf16.mxu0 0
        %524 = vmatpush2.bf16.msra.mxu0 0
        %525 = vmatprep.subr.bf16.mxu0 0
        %526 = vmatpush2.bf16.msra.mxu0 0
        %527 = vmatprep.mubr.bf16.mxu0 0
        %528 = vmatmul.mubr.bf16.gmra.mxu0 %v493
        %v529 = vpop.f32.mrf.mxu0
        %v530 = vadd.f32 0.0, %v529
        %v531 = vpop.f32.mrf.mxu0
        %v532 = vpop.f32.mrf.mxu0
        %v533 = vpop.f32.mrf.mxu0
        %534 = vdwg.mxu0
        %v535 = vadd.f32 %v468, %v530
        %v536 = vxor.u32 %v535, 2147483648
        %v537 = vmul.f32 %v536, 1.442695
        %v538 = vpow.pop %v537
        %v539 = vadd.f32 %v538, 1.0
        %v540 = vrcp.pop %v539
        %v541 = vmul.f32 1.0, %v540
        %v542 = vtanh.pop %v535
        %544 = vrot.lane.b32.xlu0 %v478, 32
        %v545 = vpop.permute.xlu0 %544
        %v547 = vmul.f32 %v541, %v545
        %549 = vrot.lane.b32.xlu0 %v542, 32
        %v550 = vpop.permute.xlu0 %549
        %v552 = vmul.f32 %v541, %v550
        %554 = vrot.lane.b32.xlu0 %v552, 32
        %v555 = vpop.permute.xlu0 %554
        %v557 = vadd.f32 %v547, %v555
        %v558 = vtanh.pop %v557
        %560 = vrot.lane.b32.xlu0 %v558, 32
        %v561 = vpop.permute.xlu0 %560
        %v563 = vmul.f32 %v541, %v561
        %v564 = vpack.c.bf16 %v563, %v563
        %v566 = vunpack.c.l.b16 %v564
        %v567 = vpack.c.b16 %v566, %v566
        %568 = vrot.lane.b32.xlu0 %v567, 64
        %v569 = vpop.permute.xlu0 %568
        %vm571 = vcmask 253952
        %572 = vst.msk [vmem:[%s379] sm:$0x1] %vm571, %v569
        %573 = vrot.lane.b32.xlu0 %v564, 64
        %v574 = vpop.permute.xlu0 %573
        %v576 = vsel %vm418, %v574, 0
        %578 = vmatprep.subr.bf16.mxu0 0
        %579 = vmatpush1.bf16.msra.mxu0 0
        %580 = vmatprep.subr.bf16.mxu0 0
        %581 = vmatpush1.bf16.msra.mxu0 0
        %582 = vmatprep.subr.bf16.mxu0 0
        %583 = vmatpush1.bf16.msra.mxu0 0
        %584 = vmatprep.subr.bf16.mxu0 0
        %585 = vmatpush1.bf16.msra.mxu0 0
        %586 = vmatprep.subr.bf16.mxu0 0
        %587 = vmatpush1.bf16.msra.mxu0 0
        %588 = vmatprep.subr.bf16.mxu0 0
        %589 = vmatpush1.bf16.msra.mxu0 0
        %590 = vmatprep.subr.bf16.mxu0 0
        %591 = vmatpush1.bf16.msra.mxu0 %v489
        %592 = vmatprep.subr.bf16.mxu0 0
        %593 = vmatpush1.bf16.msra.mxu0 %v488
        %594 = vmatprep.subr.bf16.mxu0 0
        %595 = vmatpush2.bf16.msra.mxu0 0
        %596 = vmatprep.subr.bf16.mxu0 0
        %597 = vmatpush2.bf16.msra.mxu0 0
        %598 = vmatprep.subr.bf16.mxu0 0
        %599 = vmatpush2.bf16.msra.mxu0 0
        %600 = vmatprep.subr.bf16.mxu0 0
        %601 = vmatpush2.bf16.msra.mxu0 0
        %602 = vmatprep.subr.bf16.mxu0 0
        %603 = vmatpush2.bf16.msra.mxu0 0
        %604 = vmatprep.subr.bf16.mxu0 0
        %605 = vmatpush2.bf16.msra.mxu0 0
        %606 = vmatprep.subr.bf16.mxu0 0
        %607 = vmatpush2.bf16.msra.mxu0 0
        %608 = vmatprep.subr.bf16.mxu0 0
        %609 = vmatpush2.bf16.msra.mxu0 0
        %610 = vmatprep.mubr.bf16.mxu0 0
        %611 = vmatmul.mubr.bf16.gmra.mxu0 %v576
        %v612 = vpop.f32.mrf.mxu0
        %v613 = vadd.f32 0.0, %v612
        %v614 = vpop.f32.mrf.mxu0
        %v615 = vpop.f32.mrf.mxu0
        %v616 = vpop.f32.mrf.mxu0
        %617 = vdwg.mxu0
        %v619 = vrot.slane %v613, 6
        %v621 = vadd.f32 %v468, %v619
        %v622 = vxor.u32 %v621, 2147483648
        %v623 = vmul.f32 %v622, 1.442695
        %v624 = vpow.pop %v623
        %v625 = vadd.f32 %v624, 1.0
        %v626 = vrcp.pop %v625
        %v627 = vmul.f32 1.0, %v626
        %v628 = vtanh.pop %v621
        %v630 = vrot.slane %v557, 6
        %v632 = vmul.f32 %v627, %v630
        %634 = vrot.lane.b32.xlu0 %v628, 32
        %v635 = vpop.permute.xlu0 %634
        %v637 = vmul.f32 %v627, %v635
        %639 = vrot.lane.b32.xlu0 %v637, 32
        %v640 = vpop.permute.xlu0 %639
        %v642 = vadd.f32 %v632, %v640
        %v643 = vtanh.pop %v642
        %645 = vrot.lane.b32.xlu0 %v643, 32
        %v646 = vpop.permute.xlu0 %645
        %v648 = vmul.f32 %v627, %v646
        %v649 = vpack.c.bf16 %v648, %v648
        %v651 = vunpack.c.l.b16 %v649
        %v652 = vpack.c.b16 %v651, %v651
        %653 = vrot.lane.b32.xlu0 %v652, 64
        %v654 = vpop.permute.xlu0 %653
        %vm656 = vcmask 254977
        %657 = vst.msk [vmem:[%s379] sm:$0x2] %vm656, %v654
        %v658 = vrot.slane %v649, 1
        %659 = vrot.lane.b32.xlu0 %v658, 64
        %v660 = vpop.permute.xlu0 %659
        %v662 = vsel %vm418, %v660, 0
        %664 = vmatprep.subr.bf16.mxu0 0
        %665 = vmatpush1.bf16.msra.mxu0 0
        %666 = vmatprep.subr.bf16.mxu0 0
        %667 = vmatpush1.bf16.msra.mxu0 0
        %668 = vmatprep.subr.bf16.mxu0 0
        %669 = vmatpush1.bf16.msra.mxu0 0
        %670 = vmatprep.subr.bf16.mxu0 0
        %671 = vmatpush1.bf16.msra.mxu0 0
        %672 = vmatprep.subr.bf16.mxu0 0
        %673 = vmatpush1.bf16.msra.mxu0 0
        %674 = vmatprep.subr.bf16.mxu0 0
        %675 = vmatpush1.bf16.msra.mxu0 0
        %676 = vmatprep.subr.bf16.mxu0 0
        %677 = vmatpush1.bf16.msra.mxu0 %v489
        %678 = vmatprep.subr.bf16.mxu0 0
        %679 = vmatpush1.bf16.msra.mxu0 %v488
        %680 = vmatprep.subr.bf16.mxu0 0
        %681 = vmatpush2.bf16.msra.mxu0 0
        %682 = vmatprep.subr.bf16.mxu0 0
        %683 = vmatpush2.bf16.msra.mxu0 0
        %684 = vmatprep.subr.bf16.mxu0 0
        %685 = vmatpush2.bf16.msra.mxu0 0
        %686 = vmatprep.subr.bf16.mxu0 0
        %687 = vmatpush2.bf16.msra.mxu0 0
        %688 = vmatprep.subr.bf16.mxu0 0
        %689 = vmatpush2.bf16.msra.mxu0 0
        %690 = vmatprep.subr.bf16.mxu0 0
        %691 = vmatpush2.bf16.msra.mxu0 0
        %692 = vmatprep.subr.bf16.mxu0 0
        %693 = vmatpush2.bf16.msra.mxu0 0
        %694 = vmatprep.subr.bf16.mxu0 0
        %695 = vmatpush2.bf16.msra.mxu0 0
        %696 = vmatprep.mubr.bf16.mxu0 0
        %697 = vmatmul.mubr.bf16.gmra.mxu0 %v662
        %v698 = vpop.f32.mrf.mxu0
        %v699 = vadd.f32 0.0, %v698
        %v700 = vpop.f32.mrf.mxu0
        %v701 = vpop.f32.mrf.mxu0
        %v702 = vpop.f32.mrf.mxu0
        %703 = vdwg.mxu0
        %v705 = vrot.slane %v699, 4
        %v707 = vadd.f32 %v468, %v705
        %v708 = vxor.u32 %v707, 2147483648
        %v709 = vmul.f32 %v708, 1.442695
        %v710 = vpow.pop %v709
        %v711 = vadd.f32 %v710, 1.0
        %v712 = vrcp.pop %v711
        %v713 = vmul.f32 1.0, %v712
        %v714 = vtanh.pop %v707
        %v716 = vrot.slane %v642, 6
        %v718 = vmul.f32 %v713, %v716
        %720 = vrot.lane.b32.xlu0 %v714, 32
        %v721 = vpop.permute.xlu0 %720
        %v723 = vmul.f32 %v713, %v721
        %725 = vrot.lane.b32.xlu0 %v723, 32
        %v726 = vpop.permute.xlu0 %725
        %v728 = vadd.f32 %v718, %v726
        %v729 = vtanh.pop %v728
        %731 = vrot.lane.b32.xlu0 %v729, 32
        %v732 = vpop.permute.xlu0 %731
        %v734 = vmul.f32 %v713, %v732
        %v735 = vpack.c.bf16 %v734, %v734
        %v737 = vunpack.c.l.b16 %v735
        %v738 = vpack.c.b16 %v737, %v737
        %739 = vrot.lane.b32.xlu0 %v738, 64
        %v740 = vpop.permute.xlu0 %739
        %vm742 = vcmask 256002
        %743 = vst.msk [vmem:[%s379] sm:$0x4] %vm742, %v740
        %v744 = vrot.slane %v735, 2
        %745 = vrot.lane.b32.xlu0 %v744, 64
        %v746 = vpop.permute.xlu0 %745
        %v748 = vsel %vm418, %v746, 0
        %750 = vmatprep.subr.bf16.mxu0 0
        %751 = vmatpush1.bf16.msra.mxu0 0
        %752 = vmatprep.subr.bf16.mxu0 0
        %753 = vmatpush1.bf16.msra.mxu0 0
        %754 = vmatprep.subr.bf16.mxu0 0
        %755 = vmatpush1.bf16.msra.mxu0 0
        %756 = vmatprep.subr.bf16.mxu0 0
        %757 = vmatpush1.bf16.msra.mxu0 0
        %758 = vmatprep.subr.bf16.mxu0 0
        %759 = vmatpush1.bf16.msra.mxu0 0
        %760 = vmatprep.subr.bf16.mxu0 0
        %761 = vmatpush1.bf16.msra.mxu0 0
        %762 = vmatprep.subr.bf16.mxu0 0
        %763 = vmatpush1.bf16.msra.mxu0 %v489
        %764 = vmatprep.subr.bf16.mxu0 0
        %765 = vmatpush1.bf16.msra.mxu0 %v488
        %766 = vmatprep.subr.bf16.mxu0 0
        %767 = vmatpush2.bf16.msra.mxu0 0
        %768 = vmatprep.subr.bf16.mxu0 0
        %769 = vmatpush2.bf16.msra.mxu0 0
        %770 = vmatprep.subr.bf16.mxu0 0
        %771 = vmatpush2.bf16.msra.mxu0 0
        %772 = vmatprep.subr.bf16.mxu0 0
        %773 = vmatpush2.bf16.msra.mxu0 0
        %774 = vmatprep.subr.bf16.mxu0 0
        %775 = vmatpush2.bf16.msra.mxu0 0
        %776 = vmatprep.subr.bf16.mxu0 0
        %777 = vmatpush2.bf16.msra.mxu0 0
        %778 = vmatprep.subr.bf16.mxu0 0
        %779 = vmatpush2.bf16.msra.mxu0 0
        %780 = vmatprep.subr.bf16.mxu0 0
        %781 = vmatpush2.bf16.msra.mxu0 0
        %782 = vmatprep.mubr.bf16.mxu0 0
        %783 = vmatmul.mubr.bf16.gmra.mxu0 %v748
        %v784 = vpop.f32.mrf.mxu0
        %v785 = vadd.f32 0.0, %v784
        %v786 = vpop.f32.mrf.mxu0
        %v787 = vpop.f32.mrf.mxu0
        %v788 = vpop.f32.mrf.mxu0
        %789 = vdwg.mxu0
        %v791 = vrot.slane %v785, 2
        %v793 = vadd.f32 %v468, %v791
        %v794 = vxor.u32 %v793, 2147483648
        %v795 = vmul.f32 %v794, 1.442695
        %v796 = vpow.pop %v795
        %v797 = vadd.f32 %v796, 1.0
        %v798 = vrcp.pop %v797
        %v799 = vmul.f32 1.0, %v798
        %v800 = vtanh.pop %v793
        %v802 = vrot.slane %v728, 6
        %v804 = vmul.f32 %v799, %v802
        %806 = vrot.lane.b32.xlu0 %v800, 32
        %v807 = vpop.permute.xlu0 %806
        %v809 = vmul.f32 %v799, %v807
        %811 = vrot.lane.b32.xlu0 %v809, 32
        %v812 = vpop.permute.xlu0 %811
        %v814 = vadd.f32 %v804, %v812
        %v815 = vtanh.pop %v814
        %817 = vrot.lane.b32.xlu0 %v815, 32
        %v818 = vpop.permute.xlu0 %817
        %v820 = vmul.f32 %v799, %v818
        %v821 = vpack.c.bf16 %v820, %v820
        %v823 = vunpack.c.l.b16 %v821
        %v824 = vpack.c.b16 %v823, %v823
        %825 = vrot.lane.b32.xlu0 %v824, 64
        %v826 = vpop.permute.xlu0 %825
        %vm828 = vcmask 257027
        %829 = vst.msk [vmem:[%s379] sm:$0x8] %vm828, %v826
        %831 = vrot.lane.b32.xlu0 %v820, 64
        %v832 = vpop.permute.xlu0 %831
        %vm834 = vcmask 261126
        %835 = vst.msk [vmem:[%s387 - $0x6] sm:$0xc0] %vm834, %v832
        %837 = vrot.lane.b32.xlu0 %v814, 96
        %v838 = vpop.permute.xlu0 %837
        %840 = vst.msk [vmem:[%s391 - $0x6] sm:$0xc0] %vm834, %v838
      $region44: #{_lambda_.3} parent=35 // pred_fallthru
        _
      %p841 = scmp.eq.s32.totalorder %s22, 1
      // Predicated region
      $region45: #{_lambda_.3} parent=35 // pred_check
        %p842 = pneg %p841
      $region46: #{_lambda_.3} parent=35 // pred_check_branch
        %844 = sbr.rel (%p842) target = $region48
      $region47: #{_lambda_.3} parent=35 // pred_region
        %v845 = vld [vmem:[%s387] sm:$0x3]
        %v846 = vld [vmem:[%s391] sm:$0x3]
        %v847 = vpack.c.bf16 %v845, %v845
        %v852 = vunpack.c.l.b16 %v469
        %v853 = vunpack.c.l.b16 %v470
        %v854 = vunpack.c.l.b16 %v471
        %v855 = vunpack.c.l.b16 %v472
        %v856 = vpack.c.b16 %v853, %v852
        %v857 = vpack.c.b16 %v855, %v854
        %v861 = vsel %vm418, %v847, 0
        %863 = vmatprep.subr.bf16.mxu0 0
        %864 = vmatpush1.bf16.msra.mxu0 0
        %865 = vmatprep.subr.bf16.mxu0 0
        %866 = vmatpush1.bf16.msra.mxu0 0
        %867 = vmatprep.subr.bf16.mxu0 0
        %868 = vmatpush1.bf16.msra.mxu0 0
        %869 = vmatprep.subr.bf16.mxu0 0
        %870 = vmatpush1.bf16.msra.mxu0 0
        %871 = vmatprep.subr.bf16.mxu0 0
        %872 = vmatpush1.bf16.msra.mxu0 0
        %873 = vmatprep.subr.bf16.mxu0 0
        %874 = vmatpush1.bf16.msra.mxu0 0
        %875 = vmatprep.subr.bf16.mxu0 0
        %876 = vmatpush1.bf16.msra.mxu0 %v857
        %877 = vmatprep.subr.bf16.mxu0 0
        %878 = vmatpush1.bf16.msra.mxu0 %v856
        %879 = vmatprep.subr.bf16.mxu0 0
        %880 = vmatpush2.bf16.msra.mxu0 0
        %881 = vmatprep.subr.bf16.mxu0 0
        %882 = vmatpush2.bf16.msra.mxu0 0
        %883 = vmatprep.subr.bf16.mxu0 0
        %884 = vmatpush2.bf16.msra.mxu0 0
        %885 = vmatprep.subr.bf16.mxu0 0
        %886 = vmatpush2.bf16.msra.mxu0 0
        %887 = vmatprep.subr.bf16.mxu0 0
        %888 = vmatpush2.bf16.msra.mxu0 0
        %889 = vmatprep.subr.bf16.mxu0 0
        %890 = vmatpush2.bf16.msra.mxu0 0
        %891 = vmatprep.subr.bf16.mxu0 0
        %892 = vmatpush2.bf16.msra.mxu0 0
        %893 = vmatprep.subr.bf16.mxu0 0
        %894 = vmatpush2.bf16.msra.mxu0 0
        %895 = vmatprep.mubr.bf16.mxu0 0
        %896 = vmatmul.mubr.bf16.gmra.mxu0 %v861
        %v897 = vpop.f32.mrf.mxu0
        %v898 = vadd.f32 0.0, %v897
        %v899 = vpop.f32.mrf.mxu0
        %v900 = vpop.f32.mrf.mxu0
        %v901 = vpop.f32.mrf.mxu0
        %902 = vdwg.mxu0
        %v904 = vrot.slane %v898, 2
        %v906 = vadd.f32 %v468, %v904
        %v907 = vxor.u32 %v906, 2147483648
        %v908 = vmul.f32 %v907, 1.442695
        %v909 = vpow.pop %v908
        %v910 = vadd.f32 %v909, 1.0
        %v911 = vrcp.pop %v910
        %v912 = vmul.f32 1.0, %v911
        %v913 = vtanh.pop %v906
        %v915 = vrot.slane %v846, 2
        %916 = vrot.lane.b32.xlu0 %v915, 32
        %v917 = vpop.permute.xlu0 %916
        %v919 = vmul.f32 %v912, %v917
        %921 = vrot.lane.b32.xlu0 %v913, 32
        %v922 = vpop.permute.xlu0 %921
        %v924 = vmul.f32 %v912, %v922
        %926 = vrot.lane.b32.xlu0 %v924, 32
        %v927 = vpop.permute.xlu0 %926
        %v929 = vadd.f32 %v919, %v927
        %v930 = vtanh.pop %v929
        %932 = vrot.lane.b32.xlu0 %v930, 32
        %v933 = vpop.permute.xlu0 %932
        %v935 = vmul.f32 %v912, %v933
        %v936 = vpack.c.bf16 %v935, %v935
        %v938 = vunpack.c.l.b16 %v936
        %v939 = vpack.c.b16 %v938, %v938
        %940 = vrot.lane.b32.xlu0 %v939, 64
        %v941 = vpop.permute.xlu0 %940
        %vm943 = vcmask 257027
        %944 = vst.msk [vmem:[%s379] sm:$0x8] %vm943, %v941
        %v945 = vrot.slane %v936, 3
        %946 = vrot.lane.b32.xlu0 %v945, 64
        %v947 = vpop.permute.xlu0 %946
        %v949 = vsel %vm418, %v947, 0
        %951 = vmatprep.subr.bf16.mxu0 0
        %952 = vmatpush1.bf16.msra.mxu0 0
        %953 = vmatprep.subr.bf16.mxu0 0
        %954 = vmatpush1.bf16.msra.mxu0 0
        %955 = vmatprep.subr.bf16.mxu0 0
        %956 = vmatpush1.bf16.msra.mxu0 0
        %957 = vmatprep.subr.bf16.mxu0 0
        %958 = vmatpush1.bf16.msra.mxu0 0
        %959 = vmatprep.subr.bf16.mxu0 0
        %960 = vmatpush1.bf16.msra.mxu0 0
        %961 = vmatprep.subr.bf16.mxu0 0
        %962 = vmatpush1.bf16.msra.mxu0 0
        %963 = vmatprep.subr.bf16.mxu0 0
        %964 = vmatpush1.bf16.msra.mxu0 %v857
        %965 = vmatprep.subr.bf16.mxu0 0
        %966 = vmatpush1.bf16.msra.mxu0 %v856
        %967 = vmatprep.subr.bf16.mxu0 0
        %968 = vmatpush2.bf16.msra.mxu0 0
        %969 = vmatprep.subr.bf16.mxu0 0
        %970 = vmatpush2.bf16.msra.mxu0 0
        %971 = vmatprep.subr.bf16.mxu0 0
        %972 = vmatpush2.bf16.msra.mxu0 0
        %973 = vmatprep.subr.bf16.mxu0 0
        %974 = vmatpush2.bf16.msra.mxu0 0
        %975 = vmatprep.subr.bf16.mxu0 0
        %976 = vmatpush2.bf16.msra.mxu0 0
        %977 = vmatprep.subr.bf16.mxu0 0
        %978 = vmatpush2.bf16.msra.mxu0 0
        %979 = vmatprep.subr.bf16.mxu0 0
        %980 = vmatpush2.bf16.msra.mxu0 0
        %981 = vmatprep.subr.bf16.mxu0 0
        %982 = vmatpush2.bf16.msra.mxu0 0
        %983 = vmatprep.mubr.bf16.mxu0 0
        %984 = vmatmul.mubr.bf16.gmra.mxu0 %v949
        %v985 = vpop.f32.mrf.mxu0
        %v986 = vadd.f32 0.0, %v985
        %v987 = vpop.f32.mrf.mxu0
        %v988 = vpop.f32.mrf.mxu0
        %v989 = vpop.f32.mrf.mxu0
        %990 = vdwg.mxu0
        %v992 = vrot.slane %v986, 4
        %v994 = vadd.f32 %v468, %v992
        %v995 = vxor.u32 %v994, 2147483648
        %v996 = vmul.f32 %v995, 1.442695
        %v997 = vpow.pop %v996
        %v998 = vadd.f32 %v997, 1.0
        %v999 = vrcp.pop %v998
        %v1000 = vmul.f32 1.0, %v999
        %v1001 = vtanh.pop %v994
        %v1003 = vrot.slane %v929, 2
        %v1005 = vmul.f32 %v1000, %v1003
        %1007 = vrot.lane.b32.xlu0 %v1001, 32
        %v1008 = vpop.permute.xlu0 %1007
        %v1010 = vmul.f32 %v1000, %v1008
        %1012 = vrot.lane.b32.xlu0 %v1010, 32
        %v1013 = vpop.permute.xlu0 %1012
        %v1015 = vadd.f32 %v1005, %v1013
        %v1016 = vtanh.pop %v1015
        %1018 = vrot.lane.b32.xlu0 %v1016, 32
        %v1019 = vpop.permute.xlu0 %1018
        %v1021 = vmul.f32 %v1000, %v1019
        %v1022 = vpack.c.bf16 %v1021, %v1021
        %v1024 = vunpack.c.l.b16 %v1022
        %v1025 = vpack.c.b16 %v1024, %v1024
        %1026 = vrot.lane.b32.xlu0 %v1025, 64
        %v1027 = vpop.permute.xlu0 %1026
        %vm1029 = vcmask 256002
        %1030 = vst.msk [vmem:[%s379] sm:$0x4] %vm1029, %v1027
        %v1031 = vrot.slane %v1022, 2
        %1032 = vrot.lane.b32.xlu0 %v1031, 64
        %v1033 = vpop.permute.xlu0 %1032
        %v1035 = vsel %vm418, %v1033, 0
        %1037 = vmatprep.subr.bf16.mxu0 0
        %1038 = vmatpush1.bf16.msra.mxu0 0
        %1039 = vmatprep.subr.bf16.mxu0 0
        %1040 = vmatpush1.bf16.msra.mxu0 0
        %1041 = vmatprep.subr.bf16.mxu0 0
        %1042 = vmatpush1.bf16.msra.mxu0 0
        %1043 = vmatprep.subr.bf16.mxu0 0
        %1044 = vmatpush1.bf16.msra.mxu0 0
        %1045 = vmatprep.subr.bf16.mxu0 0
        %1046 = vmatpush1.bf16.msra.mxu0 0
        %1047 = vmatprep.subr.bf16.mxu0 0
        %1048 = vmatpush1.bf16.msra.mxu0 0
        %1049 = vmatprep.subr.bf16.mxu0 0
        %1050 = vmatpush1.bf16.msra.mxu0 %v857
        %1051 = vmatprep.subr.bf16.mxu0 0
        %1052 = vmatpush1.bf16.msra.mxu0 %v856
        %1053 = vmatprep.subr.bf16.mxu0 0
        %1054 = vmatpush2.bf16.msra.mxu0 0
        %1055 = vmatprep.subr.bf16.mxu0 0
        %1056 = vmatpush2.bf16.msra.mxu0 0
        %1057 = vmatprep.subr.bf16.mxu0 0
        %1058 = vmatpush2.bf16.msra.mxu0 0
        %1059 = vmatprep.subr.bf16.mxu0 0
        %1060 = vmatpush2.bf16.msra.mxu0 0
        %1061 = vmatprep.subr.bf16.mxu0 0
        %1062 = vmatpush2.bf16.msra.mxu0 0
        %1063 = vmatprep.subr.bf16.mxu0 0
        %1064 = vmatpush2.bf16.msra.mxu0 0
        %1065 = vmatprep.subr.bf16.mxu0 0
        %1066 = vmatpush2.bf16.msra.mxu0 0
        %1067 = vmatprep.subr.bf16.mxu0 0
        %1068 = vmatpush2.bf16.msra.mxu0 0
        %1069 = vmatprep.mubr.bf16.mxu0 0
        %1070 = vmatmul.mubr.bf16.gmra.mxu0 %v1035
        %v1071 = vpop.f32.mrf.mxu0
        %v1072 = vadd.f32 0.0, %v1071
        %v1073 = vpop.f32.mrf.mxu0
        %v1074 = vpop.f32.mrf.mxu0
        %v1075 = vpop.f32.mrf.mxu0
        %1076 = vdwg.mxu0
        %v1078 = vrot.slane %v1072, 6
        %v1080 = vadd.f32 %v468, %v1078
        %v1081 = vxor.u32 %v1080, 2147483648
        %v1082 = vmul.f32 %v1081, 1.442695
        %v1083 = vpow.pop %v1082
        %v1084 = vadd.f32 %v1083, 1.0
        %v1085 = vrcp.pop %v1084
        %v1086 = vmul.f32 1.0, %v1085
        %v1087 = vtanh.pop %v1080
        %v1089 = vrot.slane %v1015, 2
        %v1091 = vmul.f32 %v1086, %v1089
        %1093 = vrot.lane.b32.xlu0 %v1087, 32
        %v1094 = vpop.permute.xlu0 %1093
        %v1096 = vmul.f32 %v1086, %v1094
        %1098 = vrot.lane.b32.xlu0 %v1096, 32
        %v1099 = vpop.permute.xlu0 %1098
        %v1101 = vadd.f32 %v1091, %v1099
        %v1102 = vtanh.pop %v1101
        %1104 = vrot.lane.b32.xlu0 %v1102, 32
        %v1105 = vpop.permute.xlu0 %1104
        %v1107 = vmul.f32 %v1086, %v1105
        %v1108 = vpack.c.bf16 %v1107, %v1107
        %v1110 = vunpack.c.l.b16 %v1108
        %v1111 = vpack.c.b16 %v1110, %v1110
        %1112 = vrot.lane.b32.xlu0 %v1111, 64
        %v1113 = vpop.permute.xlu0 %1112
        %vm1115 = vcmask 254977
        %1116 = vst.msk [vmem:[%s379] sm:$0x2] %vm1115, %v1113
        %v1117 = vrot.slane %v1108, 1
        %1118 = vrot.lane.b32.xlu0 %v1117, 64
        %v1119 = vpop.permute.xlu0 %1118
        %v1121 = vsel %vm418, %v1119, 0
        %1123 = vmatprep.subr.bf16.mxu0 0
        %1124 = vmatpush1.bf16.msra.mxu0 0
        %1125 = vmatprep.subr.bf16.mxu0 0
        %1126 = vmatpush1.bf16.msra.mxu0 0
        %1127 = vmatprep.subr.bf16.mxu0 0
        %1128 = vmatpush1.bf16.msra.mxu0 0
        %1129 = vmatprep.subr.bf16.mxu0 0
        %1130 = vmatpush1.bf16.msra.mxu0 0
        %1131 = vmatprep.subr.bf16.mxu0 0
        %1132 = vmatpush1.bf16.msra.mxu0 0
        %1133 = vmatprep.subr.bf16.mxu0 0
        %1134 = vmatpush1.bf16.msra.mxu0 0
        %1135 = vmatprep.subr.bf16.mxu0 0
        %1136 = vmatpush1.bf16.msra.mxu0 %v857
        %1137 = vmatprep.subr.bf16.mxu0 0
        %1138 = vmatpush1.bf16.msra.mxu0 %v856
        %1139 = vmatprep.subr.bf16.mxu0 0
        %1140 = vmatpush2.bf16.msra.mxu0 0
        %1141 = vmatprep.subr.bf16.mxu0 0
        %1142 = vmatpush2.bf16.msra.mxu0 0
        %1143 = vmatprep.subr.bf16.mxu0 0
        %1144 = vmatpush2.bf16.msra.mxu0 0
        %1145 = vmatprep.subr.bf16.mxu0 0
        %1146 = vmatpush2.bf16.msra.mxu0 0
        %1147 = vmatprep.subr.bf16.mxu0 0
        %1148 = vmatpush2.bf16.msra.mxu0 0
        %1149 = vmatprep.subr.bf16.mxu0 0
        %1150 = vmatpush2.bf16.msra.mxu0 0
        %1151 = vmatprep.subr.bf16.mxu0 0
        %1152 = vmatpush2.bf16.msra.mxu0 0
        %1153 = vmatprep.subr.bf16.mxu0 0
        %1154 = vmatpush2.bf16.msra.mxu0 0
        %1155 = vmatprep.mubr.bf16.mxu0 0
        %1156 = vmatmul.mubr.bf16.gmra.mxu0 %v1121
        %v1157 = vpop.f32.mrf.mxu0
        %v1158 = vadd.f32 0.0, %v1157
        %v1159 = vpop.f32.mrf.mxu0
        %v1160 = vpop.f32.mrf.mxu0
        %v1161 = vpop.f32.mrf.mxu0
        %1162 = vdwg.mxu0
        %v1163 = vadd.f32 %v468, %v1158
        %v1164 = vxor.u32 %v1163, 2147483648
        %v1165 = vmul.f32 %v1164, 1.442695
        %v1166 = vpow.pop %v1165
        %v1167 = vadd.f32 %v1166, 1.0
        %v1168 = vrcp.pop %v1167
        %v1169 = vmul.f32 1.0, %v1168
        %v1170 = vtanh.pop %v1163
        %v1172 = vrot.slane %v1101, 2
        %v1174 = vmul.f32 %v1169, %v1172
        %1176 = vrot.lane.b32.xlu0 %v1170, 32
        %v1177 = vpop.permute.xlu0 %1176
        %v1179 = vmul.f32 %v1169, %v1177
        %1181 = vrot.lane.b32.xlu0 %v1179, 32
        %v1182 = vpop.permute.xlu0 %1181
        %v1184 = vadd.f32 %v1174, %v1182
        %v1185 = vtanh.pop %v1184
        %1187 = vrot.lane.b32.xlu0 %v1185, 32
        %v1188 = vpop.permute.xlu0 %1187
        %v1190 = vmul.f32 %v1169, %v1188
        %v1191 = vpack.c.bf16 %v1190, %v1190
        %v1193 = vunpack.c.l.b16 %v1191
        %v1194 = vpack.c.b16 %v1193, %v1193
        %1195 = vrot.lane.b32.xlu0 %v1194, 64
        %v1196 = vpop.permute.xlu0 %1195
        %vm1198 = vcmask 253952
        %1199 = vst.msk [vmem:[%s379] sm:$0x1] %vm1198, %v1196
        %1201 = vrot.lane.b32.xlu0 %v1190, 64
        %v1202 = vpop.permute.xlu0 %1201
        %vm1204 = vcmask 254976
        %1205 = vst.msk [vmem:[%s387] sm:$0x3] %vm1204, %v1202
        %1207 = vrot.lane.b32.xlu0 %v1184, 96
        %v1208 = vpop.permute.xlu0 %1207
        %1210 = vst.msk [vmem:[%s391] sm:$0x3] %vm1204, %v1208
      $region48: #{_lambda_.3} parent=35 // pred_fallthru
        _
      %s1211 = smul.u32 %s23, 2
      %s1212 = ssub.s32 1, %s1211
      %s1213 = smul.u32 %s22, %s1212
      %s1214 = sadd.s32 %s23, %s1213
      %p1215 = scmp.lt.s32.totalorder %s22, 1
      %s1216 = scalar_select %p1215, %s22, 1
      %p1217 = scmp.lt.s32.totalorder %s1214, 1
      %s1218 = scalar_select %p1217, %s1214, 1
      %s1219 = smul.addr %s1216, 2
      %s1220 = sadd.s32 %s1218, %s1219
      %s1221 = smul.addr %s1220, 4
      %s1222 = scalar_lea.vmem %s4, %s1221
      %p1223 = scmp.lt.s32.totalorder %s22, 1
      %s1224 = scalar_select %p1223, %s22, 1
      %s1225 = smul.addr %s1224, 2
      %s1226 = scalar_lea.vmem %s5, %s1225
      %p1227 = scmp.lt.s32.totalorder %s22, 1
      %s1228 = scalar_select %p1227, %s22, 1
      %s1229 = smul.addr %s1228, 2
      %s1230 = scalar_lea.vmem %s6, %s1229
      // Predicated region
      $region49: #{_lambda_.3} parent=35 // pred_check
        %p1231 = pneg %p170
      $region50: #{_lambda_.3} parent=35 // pred_check_branch
        %1233 = sbr.rel (%p1231) target = $region52
      $region51: #{_lambda_.3} parent=35 // pred_region
        %s1234 = smul.u32 %s23, 2
        %s1235 = ssub.s32 1, %s1234
        %s1236 = smul.u32 %s22, %s1235
        %s1237 = sadd.s32 %s23, %s1236
      $region52: #{_lambda_.3} parent=35 // pred_fallthru
        _
      // Predicated region
      $region53: #{_lambda_.3} parent=35 // pred_check
        %p1238 = pneg %p196
      $region54: #{_lambda_.3} parent=35 // pred_check_branch
        %1240 = sbr.rel (%p1238) target = $region56
      $region55: #{_lambda_.3} parent=35 // pred_region
        _
      $region56: #{_lambda_.3} parent=35 // pred_fallthru
        _
      // Predicated region
      $region57: #{_lambda_.3} parent=35 // pred_check
        %p1241 = pneg %p222
      $region58: #{_lambda_.3} parent=35 // pred_check_branch
        %1243 = sbr.rel (%p1241) target = $region60
      $region59: #{_lambda_.3} parent=35 // pred_region
        _
      $region60: #{_lambda_.3} parent=35 // pred_fallthru
        _
    $region36: #{_lambda_.3} parent=5 // pred_fallthru
      _
    %p1244 = scmp.le.s32.totalorder 2, %s13
    // Predicated region
    $region61: #{_lambda_.3} parent=5 // pred_check
      %p1245 = pneg %p1244
    $region62: #{_lambda_.3} parent=5 // pred_check_branch
      %1247 = sbr.rel (%p1245) target = $region64
    $region63: #{_lambda_.3} parent=5 // pred_region
      %s1248 = ssub.s32 %s13, 2
      // Predicated region
      $region65: #{_lambda_.3} parent=63 // pred_check
        %p1249 = pneg %p176
      $region66: #{_lambda_.3} parent=63 // pred_check_branch
        %1251 = sbr.rel (%p1249) target = $region68
      $region67: #{_lambda_.3} parent=63 // pred_region
        %s1252 = smul.u32 %s25, 2
        %s1253 = ssub.s32 1, %s1252
        %s1254 = smul.u32 %s24, %s1253
        %s1255 = sadd.s32 %s25, %s1254
        %p1256 = scmp.lt.s32.totalorder %s24, 1
        %s1257 = scalar_select %p1256, %s24, 1
        %p1258 = scmp.lt.s32.totalorder %s1255, 1
        %s1259 = scalar_select %p1258, %s1255, 1
        %s1260 = smul.addr %s1257, 2
        %s1261 = sadd.s32 %s1259, %s1260
        %s1262 = smul.addr %s1261, 4
        %s1263 = scalar_lea.vmem %s4, %s1262
      $region68: #{_lambda_.3} parent=63 // pred_fallthru
        _
      // Predicated region
      $region69: #{_lambda_.3} parent=63 // pred_check
        %p1264 = pneg %p202
      $region70: #{_lambda_.3} parent=63 // pred_check_branch
        %1266 = sbr.rel (%p1264) target = $region72
      $region71: #{_lambda_.3} parent=63 // pred_region
        %p1267 = scmp.lt.s32.totalorder %s24, 1
        %s1268 = scalar_select %p1267, %s24, 1
        %s1269 = smul.addr %s1268, 2
        %s1270 = scalar_lea.vmem %s5, %s1269
      $region72: #{_lambda_.3} parent=63 // pred_fallthru
        _
      // Predicated region
      $region73: #{_lambda_.3} parent=63 // pred_check
        %p1271 = pneg %p228
      $region74: #{_lambda_.3} parent=63 // pred_check_branch
        %1273 = sbr.rel (%p1271) target = $region76
      $region75: #{_lambda_.3} parent=63 // pred_region
        %p1274 = scmp.lt.s32.totalorder %s24, 1
        %s1275 = scalar_select %p1274, %s24, 1
        %s1276 = smul.addr %s1275, 2
        %s1277 = scalar_lea.vmem %s6, %s1276
      $region76: #{_lambda_.3} parent=63 // pred_fallthru
        _
    $region64: #{_lambda_.3} parent=5 // pred_fallthru
      _
  $region6: #{_lambda_.3} parent=0 // loop_footer
    %s17 = sadd.s32 1, %s13
  $region7: #{_lambda_.3} parent=0 // loop_footer_branch
    %12 = sbr.rel target = $region3
  $region8: #{_lambda_.3} parent=0 // loop_exit
    _

// kernel: _lambda_.4
$region0: #{_lambda_.4}
  #allocation0 [shape = 'u32[]', space=smem, size = 0x4, offset = 0x4, fixed_abs, tag = 'smem constant byte address 0x4 - core index']
  #allocation1 [shape = 'u32[144,128]{1,0:T(1,128)}', space=vmem, size = 0x12000, scoped, tag = 'internal scratch']
  %s0 = inlined_call_operand.vmem [shape: bf16[2,16,32], index: 0, kind: input, shape index: {}]
  %s1 = inlined_call_operand.vmem [shape: bf16[2,2,32,128], index: 1, kind: input, shape index: {}]
  %s2 = inlined_call_operand.vmem [shape: f32[2,1,128], index: 2, kind: input, shape index: {}]
  %s3 = inlined_call_operand.vmem [shape: bf16[2,32,128], index: 3, kind: input, shape index: {}]
  %s4 = inlined_call_operand.vmem [shape: bf16[2,16,32], index: 4, kind: output, shape index: {0}]
  %s5 = inlined_call_operand.vmem [shape: f32[2,2,32], index: 5, kind: output, shape index: {1}]
  %s6 = inlined_call_operand.vmem [shape: f32[2,2,32], index: 6, kind: output, shape index: {2}]
  %7 = xla_tuple %s4, %s5, %s6
  %s8 = sld [smem:[#allocation0]]
  $region118: #{_lambda_.4} parent=0
    _
  %s10 = ssub.s32 1, %s8
  %s11 = scalar_select 0, %s10, %s8
  $region1: #{_lambda_.4} parent=0
    #allocation2 [shape = 'u8[8192]{0}', space=vmem, size = 0x2000, scoped, tag = 'input window, operand 0']
    loop: start=0, step=1, limit=6
    $region2: #{_lambda_.4} parent=1 // loop_pre_header
      _
    $region3: #{_lambda_.4} parent=1 // loop_header
      %s13 = sphi 0, %s17
      %p14 = scmp.ge.s32.totalorder %s13, 6
      %s20 = sphi 0, %s32
      %s21 = sphi 0, %s28
      %s22 = sphi 0, %s20
      %s23 = sphi 0, %s21
      %s24 = sphi 0, %s22
      %s25 = sphi 0, %s23
      %s43 = sphi 0, %s45
      %s46 = sphi 0, %s43
      %s47 = sphi 0, %s46
      %s63 = sphi 0, %s47
      %s69 = sphi 0, %s71
      %s72 = sphi 0, %s69
      %s73 = sphi 0, %s72
      %s89 = sphi 0, %s73
      %s95 = sphi 0, %s97
      %s98 = sphi 0, %s95
      %s99 = sphi 0, %s98
      %s115 = sphi 0, %s99
      %s121 = sphi 0, %s123
      %s124 = sphi 0, %s121
      %s125 = sphi 0, %s124
      %s141 = sphi 0, %s125
      %s157 = sphi 0, %s159
      %s160 = sphi 0, %s157
      %s161 = sphi 0, %s160
      %s177 = sphi 0, %s161
      %s183 = sphi 0, %s185
      %s186 = sphi 0, %s183
      %s187 = sphi 0, %s186
      %s203 = sphi 0, %s187
      %s209 = sphi 0, %s211
      %s212 = sphi 0, %s209
      %s213 = sphi 0, %s212
      %s229 = sphi 0, %s213
    $region4: #{_lambda_.4} parent=1 // loop_header_branch
      %16 = sbr.rel (%p14) target = $region8
    $region5: #{_lambda_.4} parent=1 // loop_body
      %s18 = ssub.s32 %s13, 1
      %s19 = ssub.s32 %s13, 2
      %s26 = sadd.s32 1, %s21
      %p27 = scmp.ge.s32.totalorder %s26, 2
      %s28 = scalar_select %p27, 0, %s26
      %s29 = sadd.s32 1, %s20
      %s30 = scalar_select %p27, %s29, %s20
      %p31 = scmp.ge.s32.totalorder %s30, 2
      %s32 = scalar_select %p31, 0, %s30
      %s33 = smul.u32 %s21, 2
      %s34 = ssub.s32 1, %s33
      %s35 = smul.u32 %s20, %s34
      %s36 = sadd.s32 %s21, %s35
      %s37 = smul.u32 %s28, 2
      %s38 = ssub.s32 1, %s37
      %s39 = smul.u32 %s32, %s38
      %s40 = sadd.s32 %s28, %s39
      %s41 = ssub.s32 %s36, %s40
      %p42 = scmp.eq.s32.totalorder %s41, 0
      %s44 = sadd.s32 %s43, 1
      %s45 = scalar_select %p42, %s43, %s44
      %p48 = pneg %p42
      %p49 = scmp.eq.s32.totalorder %s13, 3
      %p50 = por %p48, %p49
      %p51 = scmp.ne.s32.totalorder %s43, %s46
      %p52 = scmp.eq.s32.totalorder %s13, 0
      %p53 = por %p51, %p52
      %p54 = scmp.ne.s32.totalorder %s43, %s46
      %p55 = scmp.eq.s32.totalorder %s18, 3
      %p56 = por %p54, %p55
      %p57 = scmp.ne.s32.totalorder %s46, %s47
      %p58 = scmp.eq.s32.totalorder %s18, 0
      %p59 = por %p57, %p58
      %p60 = scmp.ne.s32.totalorder %s46, %s47
      %p61 = scmp.eq.s32.totalorder %s19, 3
      %p62 = por %p60, %p61
      %p64 = scmp.ne.s32.totalorder %s47, %s63
      %p65 = scmp.eq.s32.totalorder %s19, 0
      %p66 = por %p64, %p65
      %s67 = ssub.s32 %s20, %s32
      %p68 = scmp.eq.s32.totalorder %s67, 0
      %s70 = sadd.s32 %s69, 1
      %s71 = scalar_select %p68, %s69, %s70
      %p74 = pneg %p68
      %p75 = scmp.eq.s32.totalorder %s13, 3
      %p76 = por %p74, %p75
      %p77 = scmp.ne.s32.totalorder %s69, %s72
      %p78 = scmp.eq.s32.totalorder %s13, 0
      %p79 = por %p77, %p78
      %p80 = scmp.ne.s32.totalorder %s69, %s72
      %p81 = scmp.eq.s32.totalorder %s18, 3
      %p82 = por %p80, %p81
      %p83 = scmp.ne.s32.totalorder %s72, %s73
      %p84 = scmp.eq.s32.totalorder %s18, 0
      %p85 = por %p83, %p84
      %p86 = scmp.ne.s32.totalorder %s72, %s73
      %p87 = scmp.eq.s32.totalorder %s19, 3
      %p88 = por %p86, %p87
      %p90 = scmp.ne.s32.totalorder %s73, %s89
      %p91 = scmp.eq.s32.totalorder %s19, 0
      %p92 = por %p90, %p91
      %s93 = ssub.s32 %s20, %s32
      %p94 = scmp.eq.s32.totalorder %s93, 0
      %s96 = sadd.s32 %s95, 1
      %s97 = scalar_select %p94, %s95, %s96
      %p100 = pneg %p94
      %p101 = scmp.eq.s32.totalorder %s13, 3
      %p102 = por %p100, %p101
      %p103 = scmp.ne.s32.totalorder %s95, %s98
      %p104 = scmp.eq.s32.totalorder %s13, 0
      %p105 = por %p103, %p104
      %p106 = scmp.ne.s32.totalorder %s95, %s98
      %p107 = scmp.eq.s32.totalorder %s18, 3
      %p108 = por %p106, %p107
      %p109 = scmp.ne.s32.totalorder %s98, %s99
      %p110 = scmp.eq.s32.totalorder %s18, 0
      %p111 = por %p109, %p110
      %p112 = scmp.ne.s32.totalorder %s98, %s99
      %p113 = scmp.eq.s32.totalorder %s19, 3
      %p114 = por %p112, %p113
      %p116 = scmp.ne.s32.totalorder %s99, %s115
      %p117 = scmp.eq.s32.totalorder %s19, 0
      %p118 = por %p116, %p117
      %s119 = ssub.s32 %s20, %s32
      %p120 = scmp.eq.s32.totalorder %s119, 0
      %s122 = sadd.s32 %s121, 1
      %s123 = scalar_select %p120, %s121, %s122
      %p126 = pneg %p120
      %p127 = scmp.eq.s32.totalorder %s13, 3
      %p128 = por %p126, %p127
      %p129 = scmp.ne.s32.totalorder %s121, %s124
      %p130 = scmp.eq.s32.totalorder %s13, 0
      %p131 = por %p129, %p130
      %p132 = scmp.ne.s32.totalorder %s121, %s124
      %p133 = scmp.eq.s32.totalorder %s18, 3
      %p134 = por %p132, %p133
      %p135 = scmp.ne.s32.totalorder %s124, %s125
      %p136 = scmp.eq.s32.totalorder %s18, 0
      %p137 = por %p135, %p136
      %p138 = scmp.ne.s32.totalorder %s124, %s125
      %p139 = scmp.eq.s32.totalorder %s19, 3
      %p140 = por %p138, %p139
      %p142 = scmp.ne.s32.totalorder %s125, %s141
      %p143 = scmp.eq.s32.totalorder %s19, 0
      %p144 = por %p142, %p143
      %s145 = smul.u32 %s21, 2
      %s146 = ssub.s32 1, %s145
      %s147 = smul.u32 %s20, %s146
      %s148 = sadd.s32 %s21, %s147
      %s149 = smul.u32 %s28, 2
      %s150 = ssub.s32 1, %s149
      %s151 = smul.u32 %s32, %s150
      %s152 = sadd.s32 %s28, %s151
      %s153 = ssub.s32 %s20, %s32
      %s154 = ssub.s32 %s148, %s152
      %s155 = sor.u32 %s153, %s154
      %p156 = scmp.eq.s32.totalorder %s155, 0
      %s158 = sadd.s32 %s157, 1
      %s159 = scalar_select %p156, %s157, %s158
      %p162 = pneg %p156
      %p163 = scmp.eq.s32.totalorder %s13, 3
      %p164 = por %p162, %p163
      %p165 = scmp.ne.s32.totalorder %s157, %s160
      %p166 = scmp.eq.s32.totalorder %s13, 0
      %p167 = por %p165, %p166
      %p168 = scmp.ne.s32.totalorder %s157, %s160
      %p169 = scmp.eq.s32.totalorder %s18, 3
      %p170 = por %p168, %p169
      %p171 = scmp.ne.s32.totalorder %s160, %s161
      %p172 = scmp.eq.s32.totalorder %s18, 0
      %p173 = por %p171, %p172
      %p174 = scmp.ne.s32.totalorder %s160, %s161
      %p175 = scmp.eq.s32.totalorder %s19, 3
      %p176 = por %p174, %p175
      %p178 = scmp.ne.s32.totalorder %s161, %s177
      %p179 = scmp.eq.s32.totalorder %s19, 0
      %p180 = por %p178, %p179
      %s181 = ssub.s32 %s20, %s32
      %p182 = scmp.eq.s32.totalorder %s181, 0
      %s184 = sadd.s32 %s183, 1
      %s185 = scalar_select %p182, %s183, %s184
      %p188 = pneg %p182
      %p189 = scmp.eq.s32.totalorder %s13, 3
      %p190 = por %p188, %p189
      %p191 = scmp.ne.s32.totalorder %s183, %s186
      %p192 = scmp.eq.s32.totalorder %s13, 0
      %p193 = por %p191, %p192
      %p194 = scmp.ne.s32.totalorder %s183, %s186
      %p195 = scmp.eq.s32.totalorder %s18, 3
      %p196 = por %p194, %p195
      %p197 = scmp.ne.s32.totalorder %s186, %s187
      %p198 = scmp.eq.s32.totalorder %s18, 0
      %p199 = por %p197, %p198
      %p200 = scmp.ne.s32.totalorder %s186, %s187
      %p201 = scmp.eq.s32.totalorder %s19, 3
      %p202 = por %p200, %p201
      %p204 = scmp.ne.s32.totalorder %s187, %s203
      %p205 = scmp.eq.s32.totalorder %s19, 0
      %p206 = por %p204, %p205
      %s207 = ssub.s32 %s20, %s32
      %p208 = scmp.eq.s32.totalorder %s207, 0
      %s210 = sadd.s32 %s209, 1
      %s211 = scalar_select %p208, %s209, %s210
      %p214 = pneg %p208
      %p215 = scmp.eq.s32.totalorder %s13, 3
      %p216 = por %p214, %p215
      %p217 = scmp.ne.s32.totalorder %s209, %s212
      %p218 = scmp.eq.s32.totalorder %s13, 0
      %p219 = por %p217, %p218
      %p220 = scmp.ne.s32.totalorder %s209, %s212
      %p221 = scmp.eq.s32.totalorder %s18, 3
      %p222 = por %p220, %p221
      %p223 = scmp.ne.s32.totalorder %s212, %s213
      %p224 = scmp.eq.s32.totalorder %s18, 0
      %p225 = por %p223, %p224
      %p226 = scmp.ne.s32.totalorder %s212, %s213
      %p227 = scmp.eq.s32.totalorder %s19, 3
      %p228 = por %p226, %p227
      %p230 = scmp.ne.s32.totalorder %s213, %s229
      %p231 = scmp.eq.s32.totalorder %s19, 0
      %p232 = por %p230, %p231
      %p233 = scmp.le.s32.totalorder 1, %s13
      %p234 = scmp.lt.s32.totalorder %s13, 5
      %p235 = pnand %p233, %p234
      %p236 = pneg %p235
      // Predicated region
      $region9: #{_lambda_.4} parent=5 // pred_check
        _
      $region10: #{_lambda_.4} parent=5 // pred_check_branch
        %238 = sbr.rel (%p235) target = $region12
      $region11: #{_lambda_.4} parent=5 // pred_region
        %s239 = ssub.s32 %s13, 1
      $region12: #{_lambda_.4} parent=5 // pred_fallthru
        _
      %p240 = scmp.lt.s32.totalorder %s13, 4
      // Predicated region
      $region13: #{_lambda_.4} parent=5 // pred_check
        %p241 = pneg %p240
      $region14: #{_lambda_.4} parent=5 // pred_check_branch
        %243 = sbr.rel (%p241) target = $region16
      $region15: #{_lambda_.4} parent=5 // pred_region
        // Predicated region
        $region17: #{_lambda_.4} parent=15 // pred_check
          %p244 = pneg %p53
        $region18: #{_lambda_.4} parent=15 // pred_check_branch
          %246 = sbr.rel (%p244) target = $region20
        $region19: #{_lambda_.4} parent=15 // pred_region
          %s247 = sand.u32 %s43, 1
          %s248 = sand.u32 %s43, 1
          %s249 = smul.addr %s248, 8
          %s250 = scalar_lea.vmem [#allocation2], %s249
          %s251 = smul.u32 %s21, 2
          %s252 = ssub.s32 1, %s251
          %s253 = smul.u32 %s20, %s252
          %s254 = sadd.s32 %s21, %s253
          %s255 = smul.addr %s254, 4
          %s256 = scalar_lea.vmem %s0, %s255
          // Predicated region
          $region21: #{_lambda_.4} parent=19 // pred_check
            _
          $region22: #{_lambda_.4} parent=19 // pred_check_branch
            %258 = sbr.rel (0) target = $region24
          $region23: #{_lambda_.4} parent=19 // pred_region
            // Predicated region
            $region25: #{_lambda_.4} parent=23 // pred_check
              _
            $region26: #{_lambda_.4} parent=23 // pred_check_branch
              %260 = sbr.rel target = $region28
            $region27: #{_lambda_.4} parent=23 // pred_region
              // Predicated region
              $region40: #{_lambda_.4} parent=27 // pred_check
                _
              $region41: #{_lambda_.4} parent=27 // pred_check_branch
                %278 = sbr.rel (0) target = $region43
              $region42: #{_lambda_.4} parent=27 // pred_region
                loop: start=0, step=1, limit=1
                $region44: #{_lambda_.4} parent=42 // loop_pre_header
                  _
                $region45: #{_lambda_.4} parent=42 // loop_header
                  %s280 = sphi 0, %s284
                  %p281 = scmp.ge.s32.totalorder %s280, 1
                  %s285 = sphi %s256, %s256
                  %s286 = sphi %s250, %s250
                $region46: #{_lambda_.4} parent=42 // loop_header_branch
                  %283 = sbr.rel (%p281) target = $region50
                $region47: #{_lambda_.4} parent=42 // loop_body
                  _
                $region48: #{_lambda_.4} parent=42 // loop_footer
                  %s284 = sadd.s32 1, %s280
                $region49: #{_lambda_.4} parent=42 // loop_footer_branch
                  %279 = sbr.rel target = $region45
                $region50: #{_lambda_.4} parent=42 // loop_exit
                  _
                %s288 = ssub.s32 16, 1
                loop: start=0, step=1, limit=1
                $region51: #{_lambda_.4} parent=42 // loop_pre_header
                  _
                $region52: #{_lambda_.4} parent=42 // loop_header
                  %s290 = sphi 0, %s294
                  %p291 = scmp.ge.s32.totalorder %s290, 1
                  %s295 = sphi %s256, %s256
                  %s296 = sphi %s250, %s250
                $region53: #{_lambda_.4} parent=42 // loop_header_branch
                  %293 = sbr.rel (%p291) target = $region57
                $region54: #{_lambda_.4} parent=42 // loop_body
                  %v297 = vld [vmem:[%s295] sm:%s288]
                  %298 = vst [vmem:[%s296] sm:%s288] %v297
                  %v299 = vld [vmem:[%s295 + $0x8] sm:%s288]
                  %300 = vst [vmem:[%s296 + $0x4] sm:%s288] %v299
                $region55: #{_lambda_.4} parent=42 // loop_footer
                  %s294 = sadd.s32 1, %s290
                $region56: #{_lambda_.4} parent=42 // loop_footer_branch
                  %289 = sbr.rel target = $region52
                $region57: #{_lambda_.4} parent=42 // loop_exit
                  _
              $region43: #{_lambda_.4} parent=27 // pred_fallthru
                _
            $region28: #{_lambda_.4} parent=23 // pred_fallthru
              _
            // Predicated region
            $region29: #{_lambda_.4} parent=23 // pred_check
              _
            $region30: #{_lambda_.4} parent=23 // pred_check_branch
              %262 = sbr.rel (0) target = $region32
            $region31: #{_lambda_.4} parent=23 // pred_region
              %s264 = ssub.s32 16, 1
              loop: start=0, step=1, limit=1
              $region33: #{_lambda_.4} parent=31 // loop_pre_header
                _
              $region34: #{_lambda_.4} parent=31 // loop_header
                %s266 = sphi 0, %s270
                %p267 = scmp.ge.s32.totalorder %s266, 1
                %s271 = sphi %s256, %s256
                %s272 = sphi %s250, %s250
              $region35: #{_lambda_.4} parent=31 // loop_header_branch
                %269 = sbr.rel (%p267) target = $region39
              $region36: #{_lambda_.4} parent=31 // loop_body
                %v273 = vld [vmem:[%s271] sm:%s264]
                %274 = vst [vmem:[%s272] sm:%s264] %v273
                %v275 = vld [vmem:[%s271 + $0x8] sm:%s264]
                %276 = vst [vmem:[%s272 + $0x4] sm:%s264] %v275
              $region37: #{_lambda_.4} parent=31 // loop_footer
                %s270 = sadd.s32 1, %s266
              $region38: #{_lambda_.4} parent=31 // loop_footer_branch
                %265 = sbr.rel target = $region34
              $region39: #{_lambda_.4} parent=31 // loop_exit
                _
            $region32: #{_lambda_.4} parent=23 // pred_fallthru
              _
          $region24: #{_lambda_.4} parent=19 // pred_fallthru
            _
          %301 = vnop
        $region20: #{_lambda_.4} parent=15 // pred_fallthru
          _
        // Predicated region
        $region58: #{_lambda_.4} parent=15 // pred_check
          %p302 = pneg %p79
        $region59: #{_lambda_.4} parent=15 // pred_check_branch
          %304 = sbr.rel (%p302) target = $region61
        $region60: #{_lambda_.4} parent=15 // pred_region
          %p305 = scmp.lt.s32.totalorder %s20, 1
          %s306 = scalar_select %p305, %s20, 1
          %s307 = smul.addr %s306, 8
          %s308 = smul.addr %s307, 4
          %s309 = scalar_lea.vmem %s1, %s308
        $region61: #{_lambda_.4} parent=15 // pred_fallthru
          _
        // Predicated region
        $region62: #{_lambda_.4} parent=15 // pred_check
          %p310 = pneg %p105
        $region63: #{_lambda_.4} parent=15 // pred_check_branch
          %312 = sbr.rel (%p310) target = $region65
        $region64: #{_lambda_.4} parent=15 // pred_region
          %p313 = scmp.lt.s32.totalorder %s20, 1
          %s314 = scalar_select %p313, %s20, 1
          %s315 = scalar_lea.vmem %s2, %s314
        $region65: #{_lambda_.4} parent=15 // pred_fallthru
          _
        // Predicated region
        $region66: #{_lambda_.4} parent=15 // pred_check
          %p316 = pneg %p131
        $region67: #{_lambda_.4} parent=15 // pred_check_branch
          %318 = sbr.rel (%p316) target = $region69
        $region68: #{_lambda_.4} parent=15 // pred_region
          %p319 = scmp.lt.s32.totalorder %s20, 1
          %s320 = scalar_select %p319, %s20, 1
          %s321 = smul.addr %s320, 4
          %s322 = smul.addr %s321, 4
          %s323 = scalar_lea.vmem %s3, %s322
        $region69: #{_lambda_.4} parent=15 // pred_fallthru
          _
      $region16: #{_lambda_.4} parent=5 // pred_fallthru
        _
      %p324 = scmp.le.s32.totalorder 1, %s13
      %p325 = scmp.lt.s32.totalorder %s13, 5
      %p326 = pnand %p324, %p325
      %p327 = pneg %p326
      // Predicated region
      $region70: #{_lambda_.4} parent=5 // pred_check
        _
      $region71: #{_lambda_.4} parent=5 // pred_check_branch
        %329 = sbr.rel (%p326) target = $region73
      $region72: #{_lambda_.4} parent=5 // pred_region
        %s330 = ssub.s32 %s13, 1
        %s331 = sand.u32 %s46, 1
        %s332 = sand.u32 %s46, 1
        %s333 = smul.addr %s332, 8
        %s334 = scalar_lea.vmem [#allocation2], %s333
        // Predicated region
        $region74: #{_lambda_.4} parent=72 // pred_check
          %p335 = pneg %p59
        $region75: #{_lambda_.4} parent=72 // pred_check_branch
          %337 = sbr.rel (%p335) target = $region77
        $region76: #{_lambda_.4} parent=72 // pred_region
          _
        $region77: #{_lambda_.4} parent=72 // pred_fallthru
          _
        %s338 = sand.u32 %s46, 1
        %s339 = sand.u32 %s46, 1
        %s340 = smul.addr %s339, 8
        %s341 = scalar_lea.vmem [#allocation2], %s340
        %p342 = pneg %p59
        %p343 = pneg %p56
        %p344 = scmp.lt.s32.totalorder %s22, 1
        %s345 = scalar_select %p344, %s22, 1
        %s346 = smul.addr %s345, 8
        %s347 = smul.addr %s346, 4
        %s348 = scalar_lea.vmem %s1, %s347
        %p349 = pneg %p85
        %p350 = pneg %p82
        %p351 = scmp.lt.s32.totalorder %s22, 1
        %s352 = scalar_select %p351, %s22, 1
        %s353 = scalar_lea.vmem %s2, %s352
        %p354 = pneg %p111
        %p355 = pneg %p108
        %p356 = scmp.lt.s32.totalorder %s22, 1
        %s357 = scalar_select %p356, %s22, 1
        %s358 = smul.addr %s357, 4
        %s359 = smul.addr %s358, 4
        %s360 = scalar_lea.vmem %s3, %s359
        %p361 = pneg %p137
        %p362 = pneg %p134
        %p363 = pneg %p173
        %p364 = pneg %p170
        %s365 = smul.u32 %s23, 2
        %s366 = ssub.s32 1, %s365
        %s367 = smul.u32 %s22, %s366
        %s368 = sadd.s32 %s23, %s367
        %p369 = scmp.lt.s32.totalorder %s22, 1
        %s370 = scalar_select %p369, %s22, 1
        %p371 = scmp.lt.s32.totalorder %s368, 1
        %s372 = scalar_select %p371, %s368, 1
        %s373 = smul.addr %s370, 2
        %s374 = sadd.s32 %s372, %s373
        %s375 = smul.addr %s374, 4
        %s376 = scalar_lea.vmem %s4, %s375
        %p377 = pneg %p199
        %p378 = pneg %p196
        %p379 = scmp.lt.s32.totalorder %s22, 1
        %s380 = scalar_select %p379, %s22, 1
        %s381 = smul.addr %s380, 2
        %s382 = scalar_lea.vmem %s5, %s381
        %p383 = pneg %p225
        %p384 = pneg %p222
        %p385 = scmp.lt.s32.totalorder %s22, 1
        %s386 = scalar_select %p385, %s22, 1
        %s387 = smul.addr %s386, 2
        %s388 = scalar_lea.vmem %s6, %s387
        %s389 = smul.u32 %s23, 2
        %s390 = ssub.s32 1, %s389
        %s391 = smul.u32 %s22, %s390
        %s392 = sadd.s32 %s23, %s391
        %p393 = scmp.lt.s32.totalorder %s22, 1
        %s394 = scalar_select %p393, %s22, 1
        %s395 = smul.addr %s394, 8
        %s396 = smul.addr %s395, 4
        %s397 = scalar_lea.vmem %s1, %s396
        %p398 = scmp.lt.s32.totalorder %s22, 1
        %s399 = scalar_select %p398, %s22, 1
        %s400 = scalar_lea.vmem %s2, %s399
        %p401 = scmp.lt.s32.totalorder %s22, 1
        %s402 = scalar_select %p401, %s22, 1
        %s403 = smul.addr %s402, 4
        %s404 = smul.addr %s403, 4
        %s405 = scalar_lea.vmem %s3, %s404
        %s406 = smul.u32 %s23, 2
        %s407 = ssub.s32 1, %s406
        %s408 = smul.u32 %s22, %s407
        %s409 = sadd.s32 %s23, %s408
        %p410 = scmp.lt.s32.totalorder %s22, 1
        %s411 = scalar_select %p410, %s22, 1
        %p412 = scmp.lt.s32.totalorder %s409, 1
        %s413 = scalar_select %p412, %s409, 1
        %s414 = smul.addr %s411, 2
        %s415 = sadd.s32 %s413, %s414
        %s416 = smul.addr %s415, 4
        %s417 = scalar_lea.vmem %s4, %s416
        %s418 = smul.u32 %s23, 2
        %s419 = ssub.s32 1, %s418
        %s420 = smul.u32 %s22, %s419
        %s421 = sadd.s32 %s23, %s420
        %p422 = scmp.lt.s32.totalorder %s22, 1
        %s423 = scalar_select %p422, %s22, 1
        %s424 = smul.addr %s423, 2
        %s425 = scalar_lea.vmem %s5, %s424
        %p426 = scmp.lt.s32.totalorder %s22, 1
        %s427 = scalar_select %p426, %s22, 1
        %s428 = smul.addr %s427, 2
        %s429 = scalar_lea.vmem %s6, %s428
        %p431 = scmp.eq.s32.totalorder %s23, 0
        // Predicated region
        $region78: #{_lambda_.4} parent=72 // pred_check
          %p432 = pneg %p431
        $region79: #{_lambda_.4} parent=72 // pred_check_branch
          %434 = sbr.rel (%p432) target = $region81
        $region80: #{_lambda_.4} parent=72 // pred_region
          %vm435 = vcmask 254976
          %436 = vst.msk [vmem:[%s425] sm:$0x3] %vm435, 0.0
          %437 = vst.msk [vmem:[%s429] sm:$0x3] %vm435, 0.0
        $region81: #{_lambda_.4} parent=72 // pred_fallthru
          _
        %v438 = vld [vmem:[%s400] sm:$0x1]
        %v439 = vld [vmem:[%s334] sm:$0xf]
        %v440 = vld [vmem:[%s397] sm:$0xf]
        %v441 = vld [vmem:[%s397 + $0x4] sm:$0xf]
        %v442 = vld [vmem:[%s397 + $0x8] sm:$0xf]
        %v443 = vld [vmem:[%s397 + $0xc] sm:$0xf]
        %v448 = vunpack.c.l.b16 %v440
        %v449 = vunpack.c.l.b16 %v441
        %v450 = vunpack.c.l.b16 %v442
        %v451 = vunpack.c.l.b16 %v443
        %v452 = vpack.c.b16 %v449, %v448
        %v453 = vpack.c.b16 %v451, %v450
        %vm456 = vcmask 261120
        %v458 = vsel %vm456, %v439, 0
        %460 = vmatprep.subr.bf16.mxu0 0
        %461 = vmatpush1.bf16.msra.mxu0 0
        %462 = vmatprep.subr.bf16.mxu0 0
        %463 = vmatpush1.bf16.msra.mxu0 0
        %464 = vmatprep.subr.bf16.mxu0 0
        %465 = vmatpush1.bf16.msra.mxu0 0
        %466 = vmatprep.subr.bf16.mxu0 0
        %467 = vmatpush1.bf16.msra.mxu0 0
        %468 = vmatprep.subr.bf16.mxu0 0
        %469 = vmatpush1.bf16.msra.mxu0 0
        %470 = vmatprep.subr.bf16.mxu0 0
        %471 = vmatpush1.bf16.msra.mxu0 0
        %472 = vmatprep.subr.bf16.mxu0 0
        %473 = vmatpush1.bf16.msra.mxu0 %v453
        %474 = vmatprep.subr.bf16.mxu0 0
        %475 = vmatpush1.bf16.msra.mxu0 %v452
        %476 = vmatprep.subr.bf16.mxu0 0
        %477 = vmatpush2.bf16.msra.mxu0 0
        %478 = vmatprep.subr.bf16.mxu0 0
        %479 = vmatpush2.bf16.msra.mxu0 0
        %480 = vmatprep.subr.bf16.mxu0 0
        %481 = vmatpush2.bf16.msra.mxu0 0
        %482 = vmatprep.subr.bf16.mxu0 0
        %483 = vmatpush2.bf16.msra.mxu0 0
        %484 = vmatprep.subr.bf16.mxu0 0
        %485 = vmatpush2.bf16.msra.mxu0 0
        %486 = vmatprep.subr.bf16.mxu0 0
        %487 = vmatpush2.bf16.msra.mxu0 0
        %488 = vmatprep.subr.bf16.mxu0 0
        %489 = vmatpush2.bf16.msra.mxu0 0
        %490 = vmatprep.subr.bf16.mxu0 0
        %491 = vmatpush2.bf16.msra.mxu0 0
        %492 = vmatprep.mubr.bf16.mxu0 0
        %493 = vmatmul.mubr.bf16.gmra.mxu0 %v458
        %v494 = vpop.f32.mrf.mxu0
        %v495 = vadd.f32 0.0, %v494
        %v496 = vpop.f32.mrf.mxu0
        %v497 = vpop.f32.mrf.mxu0
        %v498 = vpop.f32.mrf.mxu0
        %499 = vdwg.mxu0
        %v501 = vlaneseq
        %v502 = vshrl.u32 %v501, 7
        %v503 = vsub.s32 0, %v502
        %v504 = vrot.slane %v438, %v503
        %v506 = vadd.f32 %v504, %v495
        %s507 = scalar_lea.vmem %s334, 4 [#allocation2]
        %v508 = vld [vmem:[%s507] sm:$0xf]
        %s509 = scalar_lea.vmem %s397, 16
        %v510 = vld [vmem:[%s509] sm:$0xf]
        %v511 = vld [vmem:[%s509 + $0x4] sm:$0xf]
        %v512 = vld [vmem:[%s509 + $0x8] sm:$0xf]
        %v513 = vld [vmem:[%s509 + $0xc] sm:$0xf]
        %v518 = vunpack.c.l.b16 %v510
        %v519 = vunpack.c.l.b16 %v511
        %v520 = vunpack.c.l.b16 %v512
        %v521 = vunpack.c.l.b16 %v513
        %v522 = vpack.c.b16 %v519, %v518
        %v523 = vpack.c.b16 %v521, %v520
        %v527 = vsel %vm456, %v508, 0
        %529 = vmatprep.subr.bf16.mxu0 0
        %530 = vmatpush1.bf16.msra.mxu0 0
        %531 = vmatprep.subr.bf16.mxu0 0
        %532 = vmatpush1.bf16.msra.mxu0 0
        %533 = vmatprep.subr.bf16.mxu0 0
        %534 = vmatpush1.bf16.msra.mxu0 0
        %535 = vmatprep.subr.bf16.mxu0 0
        %536 = vmatpush1.bf16.msra.mxu0 0
        %537 = vmatprep.subr.bf16.mxu0 0
        %538 = vmatpush1.bf16.msra.mxu0 0
        %539 = vmatprep.subr.bf16.mxu0 0
        %540 = vmatpush1.bf16.msra.mxu0 0
        %541 = vmatprep.subr.bf16.mxu0 0
        %542 = vmatpush1.bf16.msra.mxu0 %v523
        %543 = vmatprep.subr.bf16.mxu0 0
        %544 = vmatpush1.bf16.msra.mxu0 %v522
        %545 = vmatprep.subr.bf16.mxu0 0
        %546 = vmatpush2.bf16.msra.mxu0 0
        %547 = vmatprep.subr.bf16.mxu0 0
        %548 = vmatpush2.bf16.msra.mxu0 0
        %549 = vmatprep.subr.bf16.mxu0 0
        %550 = vmatpush2.bf16.msra.mxu0 0
        %551 = vmatprep.subr.bf16.mxu0 0
        %552 = vmatpush2.bf16.msra.mxu0 0
        %553 = vmatprep.subr.bf16.mxu0 0
        %554 = vmatpush2.bf16.msra.mxu0 0
        %555 = vmatprep.subr.bf16.mxu0 0
        %556 = vmatpush2.bf16.msra.mxu0 0
        %557 = vmatprep.subr.bf16.mxu0 0
        %558 = vmatpush2.bf16.msra.mxu0 0
        %559 = vmatprep.subr.bf16.mxu0 0
        %560 = vmatpush2.bf16.msra.mxu0 0
        %561 = vmatprep.mubr.bf16.mxu0 0
        %562 = vmatmul.mubr.bf16.gmra.mxu0 %v527
        %v563 = vpop.f32.mrf.mxu0
        %v564 = vadd.f32 0.0, %v563
        %v565 = vpop.f32.mrf.mxu0
        %v566 = vpop.f32.mrf.mxu0
        %v567 = vpop.f32.mrf.mxu0
        %568 = vdwg.mxu0
        %v569 = vadd.f32 %v506, %v564
        %v570 = vld [vmem:[%s405] sm:$0xf]
        %v571 = vld [vmem:[%s405 + $0x4] sm:$0xf]
        %v572 = vld [vmem:[%s405 + $0x8] sm:$0xf]
        %v573 = vld [vmem:[%s405 + $0xc] sm:$0xf]
        %p574 = scmp.eq.s32.totalorder %s22, 0
        // Predicated region
        $region82: #{_lambda_.4} parent=72 // pred_check
          %p575 = pneg %p574
        $region83: #{_lambda_.4} parent=72 // pred_check_branch
          %577 = sbr.rel (%p575) target = $region85
        $region84: #{_lambda_.4} parent=72 // pred_region
          %v578 = vld [vmem:[%s425] sm:$0x3]
          %v579 = vld [vmem:[%s429] sm:$0x3]
          %v580 = vpack.c.bf16 %v578, %v578
          %v585 = vunpack.c.l.b16 %v570
          %v586 = vunpack.c.l.b16 %v571
          %v587 = vunpack.c.l.b16 %v572
          %v588 = vunpack.c.l.b16 %v573
          %v589 = vpack.c.b16 %v586, %v585
          %v590 = vpack.c.b16 %v588, %v587
          %v594 = vsel %vm456, %v580, 0
          %596 = vmatprep.subr.bf16.mxu0 0
          %597 = vmatpush1.bf16.msra.mxu0 0
          %598 = vmatprep.subr.bf16.mxu0 0
          %599 = vmatpush1.bf16.msra.mxu0 0
          %600 = vmatprep.subr.bf16.mxu0 0
          %601 = vmatpush1.bf16.msra.mxu0 0
          %602 = vmatprep.subr.bf16.mxu0 0
          %603 = vmatpush1.bf16.msra.mxu0 0
          %604 = vmatprep.subr.bf16.mxu0 0
          %605 = vmatpush1.bf16.msra.mxu0 0
          %606 = vmatprep.subr.bf16.mxu0 0
          %607 = vmatpush1.bf16.msra.mxu0 0
          %608 = vmatprep.subr.bf16.mxu0 0
          %609 = vmatpush1.bf16.msra.mxu0 %v590
          %610 = vmatprep.subr.bf16.mxu0 0
          %611 = vmatpush1.bf16.msra.mxu0 %v589
          %612 = vmatprep.subr.bf16.mxu0 0
          %613 = vmatpush2.bf16.msra.mxu0 0
          %614 = vmatprep.subr.bf16.mxu0 0
          %615 = vmatpush2.bf16.msra.mxu0 0
          %616 = vmatprep.subr.bf16.mxu0 0
          %617 = vmatpush2.bf16.msra.mxu0 0
          %618 = vmatprep.subr.bf16.mxu0 0
          %619 = vmatpush2.bf16.msra.mxu0 0
          %620 = vmatprep.subr.bf16.mxu0 0
          %621 = vmatpush2.bf16.msra.mxu0 0
          %622 = vmatprep.subr.bf16.mxu0 0
          %623 = vmatpush2.bf16.msra.mxu0 0
          %624 = vmatprep.subr.bf16.mxu0 0
          %625 = vmatpush2.bf16.msra.mxu0 0
          %626 = vmatprep.subr.bf16.mxu0 0
          %627 = vmatpush2.bf16.msra.mxu0 0
          %628 = vmatprep.mubr.bf16.mxu0 0
          %629 = vmatmul.mubr.bf16.gmra.mxu0 %v594
          %v630 = vpop.f32.mrf.mxu0
          %v631 = vadd.f32 0.0, %v630
          %v632 = vpop.f32.mrf.mxu0
          %v633 = vpop.f32.mrf.mxu0
          %v634 = vpop.f32.mrf.mxu0
          %635 = vdwg.mxu0
          %v636 = vadd.f32 %v569, %v631
          %v637 = vxor.u32 %v636, 2147483648
          %v638 = vmul.f32 %v637, 1.442695
          %v639 = vpow.pop %v638
          %v640 = vadd.f32 %v639, 1.0
          %v641 = vrcp.pop %v640
          %v642 = vmul.f32 1.0, %v641
          %v643 = vtanh.pop %v636
          %645 = vrot.lane.b32.xlu0 %v579, 32
          %v646 = vpop.permute.xlu0 %645
          %v648 = vmul.f32 %v642, %v646
          %650 = vrot.lane.b32.xlu0 %v643, 32
          %v651 = vpop.permute.xlu0 %650
          %v653 = vmul.f32 %v642, %v651
          %655 = vrot.lane.b32.xlu0 %v653, 32
          %v656 = vpop.permute.xlu0 %655
          %v658 = vadd.f32 %v648, %v656
          %v659 = vtanh.pop %v658
          %661 = vrot.lane.b32.xlu0 %v659, 32
          %v662 = vpop.permute.xlu0 %661
          %v664 = vmul.f32 %v642, %v662
          %v665 = vpack.c.bf16 %v664, %v664
          %v667 = vunpack.c.l.b16 %v665
          %v668 = vpack.c.b16 %v667, %v667
          %669 = vrot.lane.b32.xlu0 %v668, 64
          %v670 = vpop.permute.xlu0 %669
          %vm672 = vcmask 253952
          %673 = vst.msk [vmem:[%s417] sm:$0x1] %vm672, %v670
          %674 = vrot.lane.b32.xlu0 %v665, 64
          %v675 = vpop.permute.xlu0 %674
          %v677 = vsel %vm456, %v675, 0
          %679 = vmatprep.subr.bf16.mxu0 0
          %680 = vmatpush1.bf16.msra.mxu0 0
          %681 = vmatprep.subr.bf16.mxu0 0
          %682 = vmatpush1.bf16.msra.mxu0 0
          %683 = vmatprep.subr.bf16.mxu0 0
          %684 = vmatpush1.bf16.msra.mxu0 0
          %685 = vmatprep.subr.bf16.mxu0 0
          %686 = vmatpush1.bf16.msra.mxu0 0
          %687 = vmatprep.subr.bf16.mxu0 0
          %688 = vmatpush1.bf16.msra.mxu0 0
          %689 = vmatprep.subr.bf16.mxu0 0
          %690 = vmatpush1.bf16.msra.mxu0 0
          %691 = vmatprep.subr.bf16.mxu0 0
          %692 = vmatpush1.bf16.msra.mxu0 %v590
          %693 = vmatprep.subr.bf16.mxu0 0
          %694 = vmatpush1.bf16.msra.mxu0 %v589
          %695 = vmatprep.subr.bf16.mxu0 0
          %696 = vmatpush2.bf16.msra.mxu0 0
          %697 = vmatprep.subr.bf16.mxu0 0
          %698 = vmatpush2.bf16.msra.mxu0 0
          %699 = vmatprep.subr.bf16.mxu0 0
          %700 = vmatpush2.bf16.msra.mxu0 0
          %701 = vmatprep.subr.bf16.mxu0 0
          %702 = vmatpush2.bf16.msra.mxu0 0
          %703 = vmatprep.subr.bf16.mxu0 0
          %704 = vmatpush2.bf16.msra.mxu0 0
          %705 = vmatprep.subr.bf16.mxu0 0
          %706 = vmatpush2.bf16.msra.mxu0 0
          %707 = vmatprep.subr.bf16.mxu0 0
          %708 = vmatpush2.bf16.msra.mxu0 0
          %709 = vmatprep.subr.bf16.mxu0 0
          %710 = vmatpush2.bf16.msra.mxu0 0
          %711 = vmatprep.mubr.bf16.mxu0 0
          %712 = vmatmul.mubr.bf16.gmra.mxu0 %v677
          %v713 = vpop.f32.mrf.mxu0
          %v714 = vadd.f32 0.0, %v713
          %v715 = vpop.f32.mrf.mxu0
          %v716 = vpop.f32.mrf.mxu0
          %v717 = vpop.f32.mrf.mxu0
          %718 = vdwg.mxu0
          %v720 = vrot.slane %v714, 6
          %v722 = vadd.f32 %v569, %v720
          %v723 = vxor.u32 %v722, 2147483648
          %v724 = vmul.f32 %v723, 1.442695
          %v725 = vpow.pop %v724
          %v726 = vadd.f32 %v725, 1.0
          %v727 = vrcp.pop %v726
          %v728 = vmul.f32 1.0, %v727
          %v729 = vtanh.pop %v722
          %v731 = vrot.slane %v658, 6
          %v733 = vmul.f32 %v728, %v731
          %735 = vrot.lane.b32.xlu0 %v729, 32
          %v736 = vpop.permute.xlu0 %735
          %v738 = vmul.f32 %v728, %v736
          %740 = vrot.lane.b32.xlu0 %v738, 32
          %v741 = vpop.permute.xlu0 %740
          %v743 = vadd.f32 %v733, %v741
          %v744 = vtanh.pop %v743
          %746 = vrot.lane.b32.xlu0 %v744, 32
          %v747 = vpop.permute.xlu0 %746
          %v749 = vmul.f32 %v728, %v747
          %v750 = vpack.c.bf16 %v749, %v749
          %v752 = vunpack.c.l.b16 %v750
          %v753 = vpack.c.b16 %v752, %v752
          %754 = vrot.lane.b32.xlu0 %v753, 64
          %v755 = vpop.permute.xlu0 %754
          %vm757 = vcmask 254977
          %758 = vst.msk [vmem:[%s417] sm:$0x2] %vm757, %v755
          %v759 = vrot.slane %v750, 1
          %760 = vrot.lane.b32.xlu0 %v759, 64
          %v761 = vpop.permute.xlu0 %760
          %v763 = vsel %vm456, %v761, 0
          %765 = vmatprep.subr.bf16.mxu0 0
          %766 = vmatpush1.bf16.msra.mxu0 0
          %767 = vmatprep.subr.bf16.mxu0 0
          %768 = vmatpush1.bf16.msra.mxu0 0
          %769 = vmatprep.subr.bf16.mxu0 0
          %770 = vmatpush1.bf16.msra.mxu0 0
          %771 = vmatprep.subr.bf16.mxu0 0
          %772 = vmatpush1.bf16.msra.mxu0 0
          %773 = vmatprep.subr.bf16.mxu0 0
          %774 = vmatpush1.bf16.msra.mxu0 0
          %775 = vmatprep.subr.bf16.mxu0 0
          %776 = vmatpush1.bf16.msra.mxu0 0
          %777 = vmatprep.subr.bf16.mxu0 0
          %778 = vmatpush1.bf16.msra.mxu0 %v590
          %779 = vmatprep.subr.bf16.mxu0 0
          %780 = vmatpush1.bf16.msra.mxu0 %v589
          %781 = vmatprep.subr.bf16.mxu0 0
          %782 = vmatpush2.bf16.msra.mxu0 0
          %783 = vmatprep.subr.bf16.mxu0 0
          %784 = vmatpush2.bf16.msra.mxu0 0
          %785 = vmatprep.subr.bf16.mxu0 0
          %786 = vmatpush2.bf16.msra.mxu0 0
          %787 = vmatprep.subr.bf16.mxu0 0
          %788 = vmatpush2.bf16.msra.mxu0 0
          %789 = vmatprep.subr.bf16.mxu0 0
          %790 = vmatpush2.bf16.msra.mxu0 0
          %791 = vmatprep.subr.bf16.mxu0 0
          %792 = vmatpush2.bf16.msra.mxu0 0
          %793 = vmatprep.subr.bf16.mxu0 0
          %794 = vmatpush2.bf16.msra.mxu0 0
          %795 = vmatprep.subr.bf16.mxu0 0
          %796 = vmatpush2.bf16.msra.mxu0 0
          %797 = vmatprep.mubr.bf16.mxu0 0
          %798 = vmatmul.mubr.bf16.gmra.mxu0 %v763
          %v799 = vpop.f32.mrf.mxu0
          %v800 = vadd.f32 0.0, %v799
          %v801 = vpop.f32.mrf.mxu0
          %v802 = vpop.f32.mrf.mxu0
          %v803 = vpop.f32.mrf.mxu0
          %804 = vdwg.mxu0
          %v806 = vrot.slane %v800, 4
          %v808 = vadd.f32 %v569, %v806
          %v809 = vxor.u32 %v808, 2147483648
          %v810 = vmul.f32 %v809, 1.442695
          %v811 = vpow.pop %v810
          %v812 = vadd.f32 %v811, 1.0
          %v813 = vrcp.pop %v812
          %v814 = vmul.f32 1.0, %v813
          %v815 = vtanh.pop %v808
          %v817 = vrot.slane %v743, 6
          %v819 = vmul.f32 %v814, %v817
          %821 = vrot.lane.b32.xlu0 %v815, 32
          %v822 = vpop.permute.xlu0 %821
          %v824 = vmul.f32 %v814, %v822
          %826 = vrot.lane.b32.xlu0 %v824, 32
          %v827 = vpop.permute.xlu0 %826
          %v829 = vadd.f32 %v819, %v827
          %v830 = vtanh.pop %v829
          %832 = vrot.lane.b32.xlu0 %v830, 32
          %v833 = vpop.permute.xlu0 %832
          %v835 = vmul.f32 %v814, %v833
          %v836 = vpack.c.bf16 %v835, %v835
          %v838 = vunpack.c.l.b16 %v836
          %v839 = vpack.c.b16 %v838, %v838
          %840 = vrot.lane.b32.xlu0 %v839, 64
          %v841 = vpop.permute.xlu0 %840
          %vm843 = vcmask 256002
          %844 = vst.msk [vmem:[%s417] sm:$0x4] %vm843, %v841
          %v845 = vrot.slane %v836, 2
          %846 = vrot.lane.b32.xlu0 %v845, 64
          %v847 = vpop.permute.xlu0 %846
          %v849 = vsel %vm456, %v847, 0
          %851 = vmatprep.subr.bf16.mxu0 0
          %852 = vmatpush1.bf16.msra.mxu0 0
          %853 = vmatprep.subr.bf16.mxu0 0
          %854 = vmatpush1.bf16.msra.mxu0 0
          %855 = vmatprep.subr.bf16.mxu0 0
          %856 = vmatpush1.bf16.msra.mxu0 0
          %857 = vmatprep.subr.bf16.mxu0 0
          %858 = vmatpush1.bf16.msra.mxu0 0
          %859 = vmatprep.subr.bf16.mxu0 0
          %860 = vmatpush1.bf16.msra.mxu0 0
          %861 = vmatprep.subr.bf16.mxu0 0
          %862 = vmatpush1.bf16.msra.mxu0 0
          %863 = vmatprep.subr.bf16.mxu0 0
          %864 = vmatpush1.bf16.msra.mxu0 %v590
          %865 = vmatprep.subr.bf16.mxu0 0
          %866 = vmatpush1.bf16.msra.mxu0 %v589
          %867 = vmatprep.subr.bf16.mxu0 0
          %868 = vmatpush2.bf16.msra.mxu0 0
          %869 = vmatprep.subr.bf16.mxu0 0
          %870 = vmatpush2.bf16.msra.mxu0 0
          %871 = vmatprep.subr.bf16.mxu0 0
          %872 = vmatpush2.bf16.msra.mxu0 0
          %873 = vmatprep.subr.bf16.mxu0 0
          %874 = vmatpush2.bf16.msra.mxu0 0
          %875 = vmatprep.subr.bf16.mxu0 0
          %876 = vmatpush2.bf16.msra.mxu0 0
          %877 = vmatprep.subr.bf16.mxu0 0
          %878 = vmatpush2.bf16.msra.mxu0 0
          %879 = vmatprep.subr.bf16.mxu0 0
          %880 = vmatpush2.bf16.msra.mxu0 0
          %881 = vmatprep.subr.bf16.mxu0 0
          %882 = vmatpush2.bf16.msra.mxu0 0
          %883 = vmatprep.mubr.bf16.mxu0 0
          %884 = vmatmul.mubr.bf16.gmra.mxu0 %v849
          %v885 = vpop.f32.mrf.mxu0
          %v886 = vadd.f32 0.0, %v885
          %v887 = vpop.f32.mrf.mxu0
          %v888 = vpop.f32.mrf.mxu0
          %v889 = vpop.f32.mrf.mxu0
          %890 = vdwg.mxu0
          %v892 = vrot.slane %v886, 2
          %v894 = vadd.f32 %v569, %v892
          %v895 = vxor.u32 %v894, 2147483648
          %v896 = vmul.f32 %v895, 1.442695
          %v897 = vpow.pop %v896
          %v898 = vadd.f32 %v897, 1.0
          %v899 = vrcp.pop %v898
          %v900 = vmul.f32 1.0, %v899
          %v901 = vtanh.pop %v894
          %v903 = vrot.slane %v829, 6
          %v905 = vmul.f32 %v900, %v903
          %907 = vrot.lane.b32.xlu0 %v901, 32
          %v908 = vpop.permute.xlu0 %907
          %v910 = vmul.f32 %v900, %v908
          %912 = vrot.lane.b32.xlu0 %v910, 32
          %v913 = vpop.permute.xlu0 %912
          %v915 = vadd.f32 %v905, %v913
          %v916 = vtanh.pop %v915
          %918 = vrot.lane.b32.xlu0 %v916, 32
          %v919 = vpop.permute.xlu0 %918
          %v921 = vmul.f32 %v900, %v919
          %v922 = vpack.c.bf16 %v921, %v921
          %v924 = vunpack.c.l.b16 %v922
          %v925 = vpack.c.b16 %v924, %v924
          %926 = vrot.lane.b32.xlu0 %v925, 64
          %v927 = vpop.permute.xlu0 %926
          %vm929 = vcmask 257027
          %930 = vst.msk [vmem:[%s417] sm:$0x8] %vm929, %v927
          %932 = vrot.lane.b32.xlu0 %v921, 64
          %v933 = vpop.permute.xlu0 %932
          %vm935 = vcmask 261126
          %936 = vst.msk [vmem:[%s425 - $0x6] sm:$0xc0] %vm935, %v933
          %938 = vrot.lane.b32.xlu0 %v915, 96
          %v939 = vpop.permute.xlu0 %938
          %941 = vst.msk [vmem:[%s429 - $0x6] sm:$0xc0] %vm935, %v939
        $region85: #{_lambda_.4} parent=72 // pred_fallthru
          _
        %p942 = scmp.eq.s32.totalorder %s22, 1
        // Predicated region
        $region86: #{_lambda_.4} parent=72 // pred_check
          %p943 = pneg %p942
        $region87: #{_lambda_.4} parent=72 // pred_check_branch
          %945 = sbr.rel (%p943) target = $region89
        $region88: #{_lambda_.4} parent=72 // pred_region
          %v946 = vld [vmem:[%s425] sm:$0x3]
          %v947 = vld [vmem:[%s429] sm:$0x3]
          %v948 = vpack.c.bf16 %v946, %v946
          %v953 = vunpack.c.l.b16 %v570
          %v954 = vunpack.c.l.b16 %v571
          %v955 = vunpack.c.l.b16 %v572
          %v956 = vunpack.c.l.b16 %v573
          %v957 = vpack.c.b16 %v954, %v953
          %v958 = vpack.c.b16 %v956, %v955
          %v962 = vsel %vm456, %v948, 0
          %964 = vmatprep.subr.bf16.mxu0 0
          %965 = vmatpush1.bf16.msra.mxu0 0
          %966 = vmatprep.subr.bf16.mxu0 0
          %967 = vmatpush1.bf16.msra.mxu0 0
          %968 = vmatprep.subr.bf16.mxu0 0
          %969 = vmatpush1.bf16.msra.mxu0 0
          %970 = vmatprep.subr.bf16.mxu0 0
          %971 = vmatpush1.bf16.msra.mxu0 0
          %972 = vmatprep.subr.bf16.mxu0 0
          %973 = vmatpush1.bf16.msra.mxu0 0
          %974 = vmatprep.subr.bf16.mxu0 0
          %975 = vmatpush1.bf16.msra.mxu0 0
          %976 = vmatprep.subr.bf16.mxu0 0
          %977 = vmatpush1.bf16.msra.mxu0 %v958
          %978 = vmatprep.subr.bf16.mxu0 0
          %979 = vmatpush1.bf16.msra.mxu0 %v957
          %980 = vmatprep.subr.bf16.mxu0 0
          %981 = vmatpush2.bf16.msra.mxu0 0
          %982 = vmatprep.subr.bf16.mxu0 0
          %983 = vmatpush2.bf16.msra.mxu0 0
          %984 = vmatprep.subr.bf16.mxu0 0
          %985 = vmatpush2.bf16.msra.mxu0 0
          %986 = vmatprep.subr.bf16.mxu0 0
          %987 = vmatpush2.bf16.msra.mxu0 0
          %988 = vmatprep.subr.bf16.mxu0 0
          %989 = vmatpush2.bf16.msra.mxu0 0
          %990 = vmatprep.subr.bf16.mxu0 0
          %991 = vmatpush2.bf16.msra.mxu0 0
          %992 = vmatprep.subr.bf16.mxu0 0
          %993 = vmatpush2.bf16.msra.mxu0 0
          %994 = vmatprep.subr.bf16.mxu0 0
          %995 = vmatpush2.bf16.msra.mxu0 0
          %996 = vmatprep.mubr.bf16.mxu0 0
          %997 = vmatmul.mubr.bf16.gmra.mxu0 %v962
          %v998 = vpop.f32.mrf.mxu0
          %v999 = vadd.f32 0.0, %v998
          %v1000 = vpop.f32.mrf.mxu0
          %v1001 = vpop.f32.mrf.mxu0
          %v1002 = vpop.f32.mrf.mxu0
          %1003 = vdwg.mxu0
          %v1005 = vrot.slane %v999, 2
          %v1007 = vadd.f32 %v569, %v1005
          %v1008 = vxor.u32 %v1007, 2147483648
          %v1009 = vmul.f32 %v1008, 1.442695
          %v1010 = vpow.pop %v1009
          %v1011 = vadd.f32 %v1010, 1.0
          %v1012 = vrcp.pop %v1011
          %v1013 = vmul.f32 1.0, %v1012
          %v1014 = vtanh.pop %v1007
          %v1016 = vrot.slane %v947, 2
          %1017 = vrot.lane.b32.xlu0 %v1016, 32
          %v1018 = vpop.permute.xlu0 %1017
          %v1020 = vmul.f32 %v1013, %v1018
          %1022 = vrot.lane.b32.xlu0 %v1014, 32
          %v1023 = vpop.permute.xlu0 %1022
          %v1025 = vmul.f32 %v1013, %v1023
          %1027 = vrot.lane.b32.xlu0 %v1025, 32
          %v1028 = vpop.permute.xlu0 %1027
          %v1030 = vadd.f32 %v1020, %v1028
          %v1031 = vtanh.pop %v1030
          %1033 = vrot.lane.b32.xlu0 %v1031, 32
          %v1034 = vpop.permute.xlu0 %1033
          %v1036 = vmul.f32 %v1013, %v1034
          %v1037 = vpack.c.bf16 %v1036, %v1036
          %v1039 = vunpack.c.l.b16 %v1037
          %v1040 = vpack.c.b16 %v1039, %v1039
          %1041 = vrot.lane.b32.xlu0 %v1040, 64
          %v1042 = vpop.permute.xlu0 %1041
          %vm1044 = vcmask 257027
          %1045 = vst.msk [vmem:[%s417] sm:$0x8] %vm1044, %v1042
          %v1046 = vrot.slane %v1037, 3
          %1047 = vrot.lane.b32.xlu0 %v1046, 64
          %v1048 = vpop.permute.xlu0 %1047
          %v1050 = vsel %vm456, %v1048, 0
          %1052 = vmatprep.subr.bf16.mxu0 0
          %1053 = vmatpush1.bf16.msra.mxu0 0
          %1054 = vmatprep.subr.bf16.mxu0 0
          %1055 = vmatpush1.bf16.msra.mxu0 0
          %1056 = vmatprep.subr.bf16.mxu0 0
          %1057 = vmatpush1.bf16.msra.mxu0 0
          %1058 = vmatprep.subr.bf16.mxu0 0
          %1059 = vmatpush1.bf16.msra.mxu0 0
          %1060 = vmatprep.subr.bf16.mxu0 0
          %1061 = vmatpush1.bf16.msra.mxu0 0
          %1062 = vmatprep.subr.bf16.mxu0 0
          %1063 = vmatpush1.bf16.msra.mxu0 0
          %1064 = vmatprep.subr.bf16.mxu0 0
          %1065 = vmatpush1.bf16.msra.mxu0 %v958
          %1066 = vmatprep.subr.bf16.mxu0 0
          %1067 = vmatpush1.bf16.msra.mxu0 %v957
          %1068 = vmatprep.subr.bf16.mxu0 0
          %1069 = vmatpush2.bf16.msra.mxu0 0
          %1070 = vmatprep.subr.bf16.mxu0 0
          %1071 = vmatpush2.bf16.msra.mxu0 0
          %1072 = vmatprep.subr.bf16.mxu0 0
          %1073 = vmatpush2.bf16.msra.mxu0 0
          %1074 = vmatprep.subr.bf16.mxu0 0
          %1075 = vmatpush2.bf16.msra.mxu0 0
          %1076 = vmatprep.subr.bf16.mxu0 0
          %1077 = vmatpush2.bf16.msra.mxu0 0
          %1078 = vmatprep.subr.bf16.mxu0 0
          %1079 = vmatpush2.bf16.msra.mxu0 0
          %1080 = vmatprep.subr.bf16.mxu0 0
          %1081 = vmatpush2.bf16.msra.mxu0 0
          %1082 = vmatprep.subr.bf16.mxu0 0
          %1083 = vmatpush2.bf16.msra.mxu0 0
          %1084 = vmatprep.mubr.bf16.mxu0 0
          %1085 = vmatmul.mubr.bf16.gmra.mxu0 %v1050
          %v1086 = vpop.f32.mrf.mxu0
          %v1087 = vadd.f32 0.0, %v1086
          %v1088 = vpop.f32.mrf.mxu0
          %v1089 = vpop.f32.mrf.mxu0
          %v1090 = vpop.f32.mrf.mxu0
          %1091 = vdwg.mxu0
          %v1093 = vrot.slane %v1087, 4
          %v1095 = vadd.f32 %v569, %v1093
          %v1096 = vxor.u32 %v1095, 2147483648
          %v1097 = vmul.f32 %v1096, 1.442695
          %v1098 = vpow.pop %v1097
          %v1099 = vadd.f32 %v1098, 1.0
          %v1100 = vrcp.pop %v1099
          %v1101 = vmul.f32 1.0, %v1100
          %v1102 = vtanh.pop %v1095
          %v1104 = vrot.slane %v1030, 2
          %v1106 = vmul.f32 %v1101, %v1104
          %1108 = vrot.lane.b32.xlu0 %v1102, 32
          %v1109 = vpop.permute.xlu0 %1108
          %v1111 = vmul.f32 %v1101, %v1109
          %1113 = vrot.lane.b32.xlu0 %v1111, 32
          %v1114 = vpop.permute.xlu0 %1113
          %v1116 = vadd.f32 %v1106, %v1114
          %v1117 = vtanh.pop %v1116
          %1119 = vrot.lane.b32.xlu0 %v1117, 32
          %v1120 = vpop.permute.xlu0 %1119
          %v1122 = vmul.f32 %v1101, %v1120
          %v1123 = vpack.c.bf16 %v1122, %v1122
          %v1125 = vunpack.c.l.b16 %v1123
          %v1126 = vpack.c.b16 %v1125, %v1125
          %1127 = vrot.lane.b32.xlu0 %v1126, 64
          %v1128 = vpop.permute.xlu0 %1127
          %vm1130 = vcmask 256002
          %1131 = vst.msk [vmem:[%s417] sm:$0x4] %vm1130, %v1128
          %v1132 = vrot.slane %v1123, 2
          %1133 = vrot.lane.b32.xlu0 %v1132, 64
          %v1134 = vpop.permute.xlu0 %1133
          %v1136 = vsel %vm456, %v1134, 0
          %1138 = vmatprep.subr.bf16.mxu0 0
          %1139 = vmatpush1.bf16.msra.mxu0 0
          %1140 = vmatprep.subr.bf16.mxu0 0
          %1141 = vmatpush1.bf16.msra.mxu0 0
          %1142 = vmatprep.subr.bf16.mxu0 0
          %1143 = vmatpush1.bf16.msra.mxu0 0
          %1144 = vmatprep.subr.bf16.mxu0 0
          %1145 = vmatpush1.bf16.msra.mxu0 0
          %1146 = vmatprep.subr.bf16.mxu0 0
          %1147 = vmatpush1.bf16.msra.mxu0 0
          %1148 = vmatprep.subr.bf16.mxu0 0
          %1149 = vmatpush1.bf16.msra.mxu0 0
          %1150 = vmatprep.subr.bf16.mxu0 0
          %1151 = vmatpush1.bf16.msra.mxu0 %v958
          %1152 = vmatprep.subr.bf16.mxu0 0
          %1153 = vmatpush1.bf16.msra.mxu0 %v957
          %1154 = vmatprep.subr.bf16.mxu0 0
          %1155 = vmatpush2.bf16.msra.mxu0 0
          %1156 = vmatprep.subr.bf16.mxu0 0
          %1157 = vmatpush2.bf16.msra.mxu0 0
          %1158 = vmatprep.subr.bf16.mxu0 0
          %1159 = vmatpush2.bf16.msra.mxu0 0
          %1160 = vmatprep.subr.bf16.mxu0 0
          %1161 = vmatpush2.bf16.msra.mxu0 0
          %1162 = vmatprep.subr.bf16.mxu0 0
          %1163 = vmatpush2.bf16.msra.mxu0 0
          %1164 = vmatprep.subr.bf16.mxu0 0
          %1165 = vmatpush2.bf16.msra.mxu0 0
          %1166 = vmatprep.subr.bf16.mxu0 0
          %1167 = vmatpush2.bf16.msra.mxu0 0
          %1168 = vmatprep.subr.bf16.mxu0 0
          %1169 = vmatpush2.bf16.msra.mxu0 0
          %1170 = vmatprep.mubr.bf16.mxu0 0
          %1171 = vmatmul.mubr.bf16.gmra.mxu0 %v1136
          %v1172 = vpop.f32.mrf.mxu0
          %v1173 = vadd.f32 0.0, %v1172
          %v1174 = vpop.f32.mrf.mxu0
          %v1175 = vpop.f32.mrf.mxu0
          %v1176 = vpop.f32.mrf.mxu0
          %1177 = vdwg.mxu0
          %v1179 = vrot.slane %v1173, 6
          %v1181 = vadd.f32 %v569, %v1179
          %v1182 = vxor.u32 %v1181, 2147483648
          %v1183 = vmul.f32 %v1182, 1.442695
          %v1184 = vpow.pop %v1183
          %v1185 = vadd.f32 %v1184, 1.0
          %v1186 = vrcp.pop %v1185
          %v1187 = vmul.f32 1.0, %v1186
          %v1188 = vtanh.pop %v1181
          %v1190 = vrot.slane %v1116, 2
          %v1192 = vmul.f32 %v1187, %v1190
          %1194 = vrot.lane.b32.xlu0 %v1188, 32
          %v1195 = vpop.permute.xlu0 %1194
          %v1197 = vmul.f32 %v1187, %v1195
          %1199 = vrot.lane.b32.xlu0 %v1197, 32
          %v1200 = vpop.permute.xlu0 %1199
          %v1202 = vadd.f32 %v1192, %v1200
          %v1203 = vtanh.pop %v1202
          %1205 = vrot.lane.b32.xlu0 %v1203, 32
          %v1206 = vpop.permute.xlu0 %1205
          %v1208 = vmul.f32 %v1187, %v1206
          %v1209 = vpack.c.bf16 %v1208, %v1208
          %v1211 = vunpack.c.l.b16 %v1209
          %v1212 = vpack.c.b16 %v1211, %v1211
          %1213 = vrot.lane.b32.xlu0 %v1212, 64
          %v1214 = vpop.permute.xlu0 %1213
          %vm1216 = vcmask 254977
          %1217 = vst.msk [vmem:[%s417] sm:$0x2] %vm1216, %v1214
          %v1218 = vrot.slane %v1209, 1
          %1219 = vrot.lane.b32.xlu0 %v1218, 64
          %v1220 = vpop.permute.xlu0 %1219
          %v1222 = vsel %vm456, %v1220, 0
          %1224 = vmatprep.subr.bf16.mxu0 0
          %1225 = vmatpush1.bf16.msra.mxu0 0
          %1226 = vmatprep.subr.bf16.mxu0 0
          %1227 = vmatpush1.bf16.msra.mxu0 0
          %1228 = vmatprep.subr.bf16.mxu0 0
          %1229 = vmatpush1.bf16.msra.mxu0 0
          %1230 = vmatprep.subr.bf16.mxu0 0
          %1231 = vmatpush1.bf16.msra.mxu0 0
          %1232 = vmatprep.subr.bf16.mxu0 0
          %1233 = vmatpush1.bf16.msra.mxu0 0
          %1234 = vmatprep.subr.bf16.mxu0 0
          %1235 = vmatpush1.bf16.msra.mxu0 0
          %1236 = vmatprep.subr.bf16.mxu0 0
          %1237 = vmatpush1.bf16.msra.mxu0 %v958
          %1238 = vmatprep.subr.bf16.mxu0 0
          %1239 = vmatpush1.bf16.msra.mxu0 %v957
          %1240 = vmatprep.subr.bf16.mxu0 0
          %1241 = vmatpush2.bf16.msra.mxu0 0
          %1242 = vmatprep.subr.bf16.mxu0 0
          %1243 = vmatpush2.bf16.msra.mxu0 0
          %1244 = vmatprep.subr.bf16.mxu0 0
          %1245 = vmatpush2.bf16.msra.mxu0 0
          %1246 = vmatprep.subr.bf16.mxu0 0
          %1247 = vmatpush2.bf16.msra.mxu0 0
          %1248 = vmatprep.subr.bf16.mxu0 0
          %1249 = vmatpush2.bf16.msra.mxu0 0
          %1250 = vmatprep.subr.bf16.mxu0 0
          %1251 = vmatpush2.bf16.msra.mxu0 0
          %1252 = vmatprep.subr.bf16.mxu0 0
          %1253 = vmatpush2.bf16.msra.mxu0 0
          %1254 = vmatprep.subr.bf16.mxu0 0
          %1255 = vmatpush2.bf16.msra.mxu0 0
          %1256 = vmatprep.mubr.bf16.mxu0 0
          %1257 = vmatmul.mubr.bf16.gmra.mxu0 %v1222
          %v1258 = vpop.f32.mrf.mxu0
          %v1259 = vadd.f32 0.0, %v1258
          %v1260 = vpop.f32.mrf.mxu0
          %v1261 = vpop.f32.mrf.mxu0
          %v1262 = vpop.f32.mrf.mxu0
          %1263 = vdwg.mxu0
          %v1264 = vadd.f32 %v569, %v1259
          %v1265 = vxor.u32 %v1264, 2147483648
          %v1266 = vmul.f32 %v1265, 1.442695
          %v1267 = vpow.pop %v1266
          %v1268 = vadd.f32 %v1267, 1.0
          %v1269 = vrcp.pop %v1268
          %v1270 = vmul.f32 1.0, %v1269
          %v1271 = vtanh.pop %v1264
          %v1273 = vrot.slane %v1202, 2
          %v1275 = vmul.f32 %v1270, %v1273
          %1277 = vrot.lane.b32.xlu0 %v1271, 32
          %v1278 = vpop.permute.xlu0 %1277
          %v1280 = vmul.f32 %v1270, %v1278
          %1282 = vrot.lane.b32.xlu0 %v1280, 32
          %v1283 = vpop.permute.xlu0 %1282
          %v1285 = vadd.f32 %v1275, %v1283
          %v1286 = vtanh.pop %v1285
          %1288 = vrot.lane.b32.xlu0 %v1286, 32
          %v1289 = vpop.permute.xlu0 %1288
          %v1291 = vmul.f32 %v1270, %v1289
          %v1292 = vpack.c.bf16 %v1291, %v1291
          %v1294 = vunpack.c.l.b16 %v1292
          %v1295 = vpack.c.b16 %v1294, %v1294
          %1296 = vrot.lane.b32.xlu0 %v1295, 64
          %v1297 = vpop.permute.xlu0 %1296
          %vm1299 = vcmask 253952
          %1300 = vst.msk [vmem:[%s417] sm:$0x1] %vm1299, %v1297
          %1302 = vrot.lane.b32.xlu0 %v1291, 64
          %v1303 = vpop.permute.xlu0 %1302
          %vm1305 = vcmask 254976
          %1306 = vst.msk [vmem:[%s425] sm:$0x3] %vm1305, %v1303
          %1308 = vrot.lane.b32.xlu0 %v1285, 96
          %v1309 = vpop.permute.xlu0 %1308
          %1311 = vst.msk [vmem:[%s429] sm:$0x3] %vm1305, %v1309
        $region89: #{_lambda_.4} parent=72 // pred_fallthru
          _
        %s1312 = smul.u32 %s23, 2
        %s1313 = ssub.s32 1, %s1312
        %s1314 = smul.u32 %s22, %s1313
        %s1315 = sadd.s32 %s23, %s1314
        %p1316 = scmp.lt.s32.totalorder %s22, 1
        %s1317 = scalar_select %p1316, %s22, 1
        %p1318 = scmp.lt.s32.totalorder %s1315, 1
        %s1319 = scalar_select %p1318, %s1315, 1
        %s1320 = smul.addr %s1317, 2
        %s1321 = sadd.s32 %s1319, %s1320
        %s1322 = smul.addr %s1321, 4
        %s1323 = scalar_lea.vmem %s4, %s1322
        %p1324 = scmp.lt.s32.totalorder %s22, 1
        %s1325 = scalar_select %p1324, %s22, 1
        %s1326 = smul.addr %s1325, 2
        %s1327 = scalar_lea.vmem %s5, %s1326
        %p1328 = scmp.lt.s32.totalorder %s22, 1
        %s1329 = scalar_select %p1328, %s22, 1
        %s1330 = smul.addr %s1329, 2
        %s1331 = scalar_lea.vmem %s6, %s1330
        // Predicated region
        $region90: #{_lambda_.4} parent=72 // pred_check
          %p1332 = pneg %p170
        $region91: #{_lambda_.4} parent=72 // pred_check_branch
          %1334 = sbr.rel (%p1332) target = $region93
        $region92: #{_lambda_.4} parent=72 // pred_region
          %s1335 = smul.u32 %s23, 2
          %s1336 = ssub.s32 1, %s1335
          %s1337 = smul.u32 %s22, %s1336
          %s1338 = sadd.s32 %s23, %s1337
        $region93: #{_lambda_.4} parent=72 // pred_fallthru
          _
        // Predicated region
        $region94: #{_lambda_.4} parent=72 // pred_check
          %p1339 = pneg %p196
        $region95: #{_lambda_.4} parent=72 // pred_check_branch
          %1341 = sbr.rel (%p1339) target = $region97
        $region96: #{_lambda_.4} parent=72 // pred_region
          _
        $region97: #{_lambda_.4} parent=72 // pred_fallthru
          _
        // Predicated region
        $region98: #{_lambda_.4} parent=72 // pred_check
          %p1342 = pneg %p222
        $region99: #{_lambda_.4} parent=72 // pred_check_branch
          %1344 = sbr.rel (%p1342) target = $region101
        $region100: #{_lambda_.4} parent=72 // pred_region
          _
        $region101: #{_lambda_.4} parent=72 // pred_fallthru
          _
      $region73: #{_lambda_.4} parent=5 // pred_fallthru
        _
      %p1345 = scmp.le.s32.totalorder 2, %s13
      // Predicated region
      $region102: #{_lambda_.4} parent=5 // pred_check
        %p1346 = pneg %p1345
      $region103: #{_lambda_.4} parent=5 // pred_check_branch
        %1348 = sbr.rel (%p1346) target = $region105
      $region104: #{_lambda_.4} parent=5 // pred_region
        %s1349 = ssub.s32 %s13, 2
        // Predicated region
        $region106: #{_lambda_.4} parent=104 // pred_check
          %p1350 = pneg %p176
        $region107: #{_lambda_.4} parent=104 // pred_check_branch
          %1352 = sbr.rel (%p1350) target = $region109
        $region108: #{_lambda_.4} parent=104 // pred_region
          %s1353 = smul.u32 %s25, 2
          %s1354 = ssub.s32 1, %s1353
          %s1355 = smul.u32 %s24, %s1354
          %s1356 = sadd.s32 %s25, %s1355
          %p1357 = scmp.lt.s32.totalorder %s24, 1
          %s1358 = scalar_select %p1357, %s24, 1
          %p1359 = scmp.lt.s32.totalorder %s1356, 1
          %s1360 = scalar_select %p1359, %s1356, 1
          %s1361 = smul.addr %s1358, 2
          %s1362 = sadd.s32 %s1360, %s1361
          %s1363 = smul.addr %s1362, 4
          %s1364 = scalar_lea.vmem %s4, %s1363
        $region109: #{_lambda_.4} parent=104 // pred_fallthru
          _
        // Predicated region
        $region110: #{_lambda_.4} parent=104 // pred_check
          %p1365 = pneg %p202
        $region111: #{_lambda_.4} parent=104 // pred_check_branch
          %1367 = sbr.rel (%p1365) target = $region113
        $region112: #{_lambda_.4} parent=104 // pred_region
          %p1368 = scmp.lt.s32.totalorder %s24, 1
          %s1369 = scalar_select %p1368, %s24, 1
          %s1370 = smul.addr %s1369, 2
          %s1371 = scalar_lea.vmem %s5, %s1370
        $region113: #{_lambda_.4} parent=104 // pred_fallthru
          _
        // Predicated region
        $region114: #{_lambda_.4} parent=104 // pred_check
          %p1372 = pneg %p228
        $region115: #{_lambda_.4} parent=104 // pred_check_branch
          %1374 = sbr.rel (%p1372) target = $region117
        $region116: #{_lambda_.4} parent=104 // pred_region
          %p1375 = scmp.lt.s32.totalorder %s24, 1
          %s1376 = scalar_select %p1375, %s24, 1
          %s1377 = smul.addr %s1376, 2
          %s1378 = scalar_lea.vmem %s6, %s1377
        $region117: #{_lambda_.4} parent=104 // pred_fallthru
          _
      $region105: #{_lambda_.4} parent=5 // pred_fallthru
        _
    $region6: #{_lambda_.4} parent=1 // loop_footer
      %s17 = sadd.s32 1, %s13
    $region7: #{_lambda_.4} parent=1 // loop_footer_branch
      %12 = sbr.rel target = $region3
    $region8: #{_lambda_.4} parent=1 // loop_exit
      _

</llo_original>
